<compile_context>
chip_gen: v7x
topology: tpu7x:2x2x1
jax: 0.10.0
libtpu: 0.0.40
codegen_flags: <defaults>
</compile_context>

<pallas_src>
import functools

import jax
import jax.numpy as jnp
from jax import lax
from jax.experimental import pallas as pl
from jax.experimental.pallas import tpu as pltpu


def _ceil_to(x, m):
    return ((x + m - 1) // m) * m


# ---------------------------------------------------------------------------
# Fused kernel: entire FSRCNN forward for one batch element.
# ---------------------------------------------------------------------------
def _fsrcnn_kernel(conv_cfg, dec_cfg, dims,
                   alphas_ref, x_ref, mask_ref, w_ref, b_ref,
                   out_ref, act_ref, pad_ref):
    Ws, Pc, LP, PW = dims
    K, d_p, OFFp, Lo, dec_c0, G = dec_cfg
    n_conv = len(conv_cfg)

    # (Re)zero regions that are read but never written this step.  Done every
    # grid step (not under program_id == 0) so it stays correct when the
    # "parallel" batch axis is split across TensorCores on a megacore part.
    act_rows = act_ref.shape[0]
    act_ref[:, Pc:LP] = jnp.zeros((act_rows, LP - Pc), jnp.bfloat16)
    pad_ref[:, 0:OFFp] = jnp.zeros((d_p, OFFp), jnp.bfloat16)
    if PW > OFFp + Pc:
        pad_ref[:, OFFp + Pc:PW] = jnp.zeros((d_p, PW - OFFp - Pc),
                                             jnp.bfloat16)

    # ---- conv + PReLU stages: feature, shrink, m x mapping, expand --------
    # One folded matmul per layer: stack kh*kw shifted patches along the
    # contraction axis and hit them with the (cout_p, kh*kw*cin_p) weight.
    for l, (kh, kw, cin_p, cout_p, c0, a_idx) in enumerate(conv_cfg):
        kcols = kh * kw * cin_p

        def tap(off, _l=l, _cin=cin_p):
            if _l == 0:
                return x_ref[0, :, off:off + Pc]          # (cin_p, Pc) bf16
            return act_ref[0:_cin, off:off + Pc]          # (cin_p, Pc) bf16

        if kh == 1 and kw == 1:
            stack = tap(0)
        else:
            pieces = [tap(i * Ws + j) for i in range(kh) for j in range(kw)]
            stack = jnp.concatenate(pieces, axis=0)       # (kcols, Pc) bf16

        acc = jnp.dot(w_ref[0:cout_p, c0:c0 + kcols], stack,
                      preferred_element_type=jnp.float32)  # (cout_p, Pc) f32
        acc = acc + b_ref[0:cout_p, l:l + 1]
        alpha = alphas_ref[a_idx]                          # PReLU slope (SMEM)
        acc = jnp.where(acc > 0, acc, acc * alpha)
        acc = acc.astype(jnp.bfloat16)                     # bf16-resident

        if l < n_conv - 1:
            act_ref[0:cout_p, 0:Pc] = acc
        else:
            # expand output -> deconv gather buffer; NaN-safe masked select so
            # garbage in invalid lanes can never leak into the deconv.
            valid = mask_ref[...] > 0.0                    # (1, Pc) bool
            pad_ref[:, OFFp:OFFp + Pc] = jnp.where(
                valid, acc, jnp.zeros_like(acc))

    # ---- ConvTranspose2d(d, 3, K), stride 1, pad 0 (gather form) -----------
    # Taps folded into contraction groups of G (G*d_p ~ MXU depth).
    out = None
    for t0 in range(0, K * K, G):
        ng = min(G, K * K - t0)
        pieces = []
        for t in range(t0, t0 + ng):
            p, q = t // K, t % K
            start = OFFp - (p * Ws + q)                    # gather shift
            pieces.append(pad_ref[:, start:start + Lo])    # (d_p, Lo) bf16
        stack = pieces[0] if ng == 1 else jnp.concatenate(pieces, axis=0)
        wg = w_ref[0:3, dec_c0 + t0 * d_p: dec_c0 + (t0 + ng) * d_p]
        part = jnp.dot(wg, stack, preferred_element_type=jnp.float32)
        out = part if out is None else out + part
    out_ref[0] = out + b_ref[0:3, n_conv:n_conv + 1]


# ---------------------------------------------------------------------------
# Wrapper: layout plumbing + weight packing + pallas_call
# ---------------------------------------------------------------------------
def fsrcnn_forward(params, x):
    """x: (N, 3, H, W) float32 NCHW.  Returns (N, 3, H+4-2m, W+4-2m) f32."""
    N, cin, H, W = x.shape
    m = len(params["map_w"])
    d = params["feat_w"].shape[0]
    s = params["shrink_w"].shape[0]
    Kd = params["deconv_w"].shape[2]

    OHe, OWe = H - 4 - 2 * m, W - 4 - 2 * m          # expand-output valid size
    assert OHe > 0 and OWe > 0, "input too small for this FSRCNN config"
    OH, OW = OHe + Kd - 1, OWe + Kd - 1              # module output size

    Ws = max(W, OW)                                  # flat row stride
    assert Ws - OWe >= Kd - 1                        # deconv wrap-around safety
    Pc = _ceil_to(H * Ws, 128)                       # positions per layer
    max_off = 4 * Ws + 4                             # largest tap shift (5x5)
    LP = Pc + _ceil_to(max_off, 128)                 # activation lane width
    OFFp = _ceil_to((Kd - 1) * Ws + (Kd - 1), 128)   # deconv zero prefix
    Lo = _ceil_to(OH * Ws, 128)                      # deconv output lane width
    PW = OFFp + max(Pc, Lo)                          # deconv gather buf width

    cin_p = _ceil_to(cin, 8)
    d_p = _ceil_to(d, 8)
    s_p = _ceil_to(s, 8)

    # ---- one boundary layout change: NCHW -> (N, cin_p, LP) bf16 ----------
    xp = jnp.pad(x, ((0, 0), (0, cin_p - cin), (0, 0), (0, Ws - W)))
    x_flat = xp.reshape(N, cin_p, H * Ws)
    x_flat = jnp.pad(x_flat, ((0, 0), (0, 0), (0, LP - H * Ws)))
    x_flat = x_flat.astype(jnp.bfloat16)

    # ---- pack every layer into ONE weight array + ONE bias array ----------
    def pack_conv(w, cip, cop):
        co, ci, kh, kw = w.shape
        wpad = jnp.pad(w, ((0, cop - co), (0, cip - ci), (0, 0), (0, 0)))
        # tap-major contraction blocks: (cop, kh, kw, cip) -> (cop, kh*kw*cip)
        return jnp.transpose(wpad, (0, 2, 3, 1)).reshape(cop, kh * kw * cip)

    layers = [("feat", 5, cin_p, d, d_p, 0),
              ("shrink", 1, d_p, s, s_p, 1)]
    for i in range(m):
        layers.append((("map", i), 3, s_p, s, s_p, 2 + i))
    layers.append(("expand", 1, s_p, d, d_p, 2 + m))

    Rw = _ceil_to(max(d_p, s_p, 3), 8)
    conv_cfg, blocks, biases, col = [], [], [], 0
    for name, k, cip, co, cop, a_idx in layers:
        if isinstance(name, tuple):
            w_raw, b_raw = params["map_w"][name[1]], params["map_b"][name[1]]
        else:
            w_raw, b_raw = params[name + "_w"], params[name + "_b"]
        packed = pack_conv(w_raw, cip, cop)
        conv_cfg.append((k, k, cip, cop, col, a_idx))
        blocks.append((col, packed))
        biases.append(b_raw)
        col = _ceil_to(col + packed.shape[1], 128)   # keep layer starts aligned

    wd = params["deconv_w"]                          # torch (Cin=d, Cout=3, K, K)
    wd_pad = jnp.pad(wd, ((0, d_p - d), (0, 0), (0, 0), (0, 0)))
    wd_packed = jnp.transpose(wd_pad, (1, 2, 3, 0)).reshape(3, Kd * Kd * d_p)
    dec_c0 = col
    Wcols = _ceil_to(dec_c0 + wd_packed.shape[1], 128)

    w_all = jnp.zeros((Rw, Wcols), jnp.float32)
    for c0, pw in blocks:
        w_all = w_all.at[:pw.shape[0], c0:c0 + pw.shape[1]].set(pw)
    w_all = w_all.at[:3, dec_c0:dec_c0 + wd_packed.shape[1]].set(wd_packed)
    w_all = w_all.astype(jnp.bfloat16)

    n_conv = len(layers)
    BC = _ceil_to(n_conv + 1, 128)
    b_all = jnp.zeros((Rw, BC), jnp.float32)
    for l, b_raw in enumerate(biases):
        b_all = b_all.at[:b_raw.shape[0], l].set(b_raw)
    b_all = b_all.at[:3, n_conv].set(params["deconv_b"])

    alphas = jnp.stack([params["alpha_extract"], params["alpha_shrink"],
                        *params["map_alpha"], params["alpha_expand"]]
                       ).astype(jnp.float32)

    # validity mask of the expand output (deconv input) on the flat grid
    cols = jnp.arange(Pc, dtype=jnp.int32)
    dec_mask = ((cols < OHe * Ws) & (cols % Ws < OWe)
                ).astype(jnp.float32)[None, :]

    # deconv taps per contraction group (~256 matches v6e/v7x MXU depth; a
    # 256-deep group simply becomes two pushes on v5e's 128-deep MXU)
    G = max(1, min(Kd * Kd, 256 // d_p))

    kernel = functools.partial(
        _fsrcnn_kernel, tuple(conv_cfg),
        (Kd, d_p, OFFp, Lo, dec_c0, G), (Ws, Pc, LP, PW))

    out_flat = pl.pallas_call(
        kernel,
        out_shape=jax.ShapeDtypeStruct((N, 3, Lo), jnp.float32),
        grid=(N,),
        in_specs=[
            pl.BlockSpec(memory_space=pltpu.MemorySpace.SMEM),  # PReLU slopes
            pl.BlockSpec((1, cin_p, LP), lambda n: (n, 0, 0)),  # input image
            pl.BlockSpec((1, Pc), lambda n: (0, 0)),            # deconv mask
            pl.BlockSpec((Rw, Wcols), lambda n: (0, 0)),        # all weights
            pl.BlockSpec((Rw, BC), lambda n: (0, 0)),           # all biases
        ],
        out_specs=pl.BlockSpec((1, 3, Lo), lambda n: (n, 0, 0)),
        scratch_shapes=[pltpu.VMEM((max(d_p, s_p), LP), jnp.bfloat16),
                        pltpu.VMEM((d_p, PW), jnp.bfloat16)],
        compiler_params=pltpu.CompilerParams(
            dimension_semantics=("parallel",),
            vmem_limit_bytes=64 * 1024 * 1024),
    )(alphas, x_flat, dec_mask, w_all, b_all)

    # strip the row-stride / tail padding and restore NCHW
    y = out_flat[:, :, :OH * Ws].reshape(N, 3, OH, Ws)[:, :, :, :OW]
    return y


# ---------------------------------------------------------------------------
# Deterministic synthetic parameters + pure-JAX reference (for validation)
# ---------------------------------------------------------------------------
def init_fsrcnn_params(key, d, s, m):
    ks = list(jax.random.split(key, 8 + 2 * m))
    p = {}
    p["feat_w"] = 0.1 * jax.random.normal(ks[0], (d, 3, 5, 5), jnp.float32)
    p["feat_b"] = 0.01 * jax.random.normal(ks[1], (d,), jnp.float32)
    p["shrink_w"] = 0.1 * jax.random.normal(ks[2], (s, d, 1, 1), jnp.float32)
    p["shrink_b"] = 0.01 * jax.random.normal(ks[3], (s,), jnp.float32)
    p["map_w"], p["map_b"], p["map_alpha"] = [], [], []
    for i in range(m):
        p["map_w"].append(0.1 * jax.random.normal(ks[4 + 2 * i], (s, s, 3, 3),
                                                  jnp.float32))
        p["map_b"].append(0.01 * jax.random.normal(ks[5 + 2 * i], (s,),
                                                   jnp.float32))
        p["map_alpha"].append(jnp.float32(0.25))          # nn.PReLU default
    base = 4 + 2 * m
    p["expand_w"] = 0.1 * jax.random.normal(ks[base], (d, s, 1, 1), jnp.float32)
    p["expand_b"] = 0.01 * jax.random.normal(ks[base + 1], (d,), jnp.float32)
    p["deconv_w"] = 0.1 * jax.random.normal(ks[base + 2], (d, 3, 9, 9),
                                            jnp.float32)
    p["deconv_b"] = 0.01 * jax.random.normal(ks[base + 3], (3,), jnp.float32)
    p["alpha_extract"] = jnp.float32(0.25)
    p["alpha_shrink"] = jnp.float32(0.25)
    p["alpha_expand"] = jnp.float32(0.25)
    return p


def _prelu(x, a):
    return jnp.where(x > 0, x, a * x)


def fsrcnn_reference(params, x):
    dn = ("NCHW", "OIHW", "NCHW")

    def conv(x, w, b):
        y = lax.conv_general_dilated(x, w, (1, 1), "VALID",
                                     dimension_numbers=dn)
        return y + b[None, :, None, None]

    x = _prelu(conv(x, params["feat_w"], params["feat_b"]),
               params["alpha_extract"])
    x = _prelu(conv(x, params["shrink_w"], params["shrink_b"]),
               params["alpha_shrink"])
    for w, b, a in zip(params["map_w"], params["map_b"], params["map_alpha"]):
        x = _prelu(conv(x, w, b), a)
    x = _prelu(conv(x, params["expand_w"], params["expand_b"]),
               params["alpha_expand"])
    # ConvTranspose2d(stride=1, pad=0) == full correlation with flipped kernel
    k = params["deconv_w"].shape[2]
    w_conv = jnp.flip(jnp.transpose(params["deconv_w"], (1, 0, 2, 3)),
                      axis=(2, 3))
    x = jnp.pad(x, ((0, 0), (0, 0), (k - 1, k - 1), (k - 1, k - 1)))
    return conv(x, w_conv, params["deconv_b"])


if __name__ == "__main__":
    # Small FSRCNN config: d=16, s=8, m=2
    d, s, m = 16, 8, 2
    key = jax.random.PRNGKey(0)
    kx, kp = jax.random.split(key)

    x = jax.random.normal(kx, (2, 3, 16, 16), jnp.float32)
    params = init_fsrcnn_params(kp, d, s, m)

    fwd = jax.jit(fsrcnn_forward)
    out = jax.block_until_ready(fwd(params, x))

    # 16 -> 12 (5x5) -> 12 (1x1) -> 10 -> 8 (two 3x3) -> 8 (1x1) -> 16 (deconv)
    assert out.shape == (2, 3, 16, 16), out.shape

    # numerical check against a pure-JAX/XLA f32 reference (bf16 MXU path,
    # so compare relative to the output scale)
    ref = jax.block_until_ready(fsrcnn_reference(params, x))
    err = float(jnp.max(jnp.abs(out - ref)))
    scale = max(float(jnp.max(jnp.abs(ref))), 1.0)
    assert err <= 5e-2 * scale, f"max abs error {err} (scale {scale})"

    print("KERNEL_OK")
</pallas_src>

<mosaic_0001>
module attributes {stable_mosaic.version = 11 : i64} {
  func.func @_fsrcnn_kernel(%arg0: i32, %arg1: memref<5xf32, #tpu.memory_space<smem>>, %arg2: memref<1x8x384xbf16, #tpu.memory_space<vmem>>, %arg3: memref<1x256xf32, #tpu.memory_space<vmem>>, %arg4: memref<16x2176xbf16, #tpu.memory_space<vmem>>, %arg5: memref<16x128xf32, #tpu.memory_space<vmem>>, %arg6: memref<1x3x256xf32, #tpu.memory_space<vmem>>, %arg7: memref<16x384xbf16, #tpu.memory_space<vmem>>, %arg8: memref<16x512xbf16, #tpu.memory_space<vmem>>) attributes {dimension_semantics = [#tpu.dimension_semantics<parallel>], iteration_bounds = array<i64: 2>, scalar_prefetch = 0 : i64, scratch_operands = 2 : i64, tpu.core_type = #tpu.core_type<tc>, window_params = [{transform_indices = @transform_0, window_bounds = array<i64: 5>}, {transform_indices = @transform_1, window_bounds = array<i64: 1, 8, 384>}, {pipeline_mode = #tpu.pipeline_mode<synchronous>, transform_indices = @transform_2, window_bounds = array<i64: 1, 256>}, {pipeline_mode = #tpu.pipeline_mode<synchronous>, transform_indices = @transform_3, window_bounds = array<i64: 16, 2176>}, {pipeline_mode = #tpu.pipeline_mode<synchronous>, transform_indices = @transform_4, window_bounds = array<i64: 16, 128>}, {transform_indices = @transform_5, window_bounds = array<i64: 1, 3, 256>}]} {
    %cst = arith.constant 0.000000e+00 : bf16
    %0 = vector.broadcast %cst : bf16 to vector<16x128xbf16>
    %c0 = arith.constant 0 : index
    %c256 = arith.constant 256 : index
    %1 = vector.load %arg7[%c0, %c256] : memref<16x384xbf16, #tpu.memory_space<vmem>>, vector<16x128xbf16>
    tpu.vector_store %arg7[%c0, %c256], %0 {strides = array<i32>} : memref<16x384xbf16, #tpu.memory_space<vmem>>, vector<16x128xbf16>,
    %cst_0 = arith.constant 0.000000e+00 : bf16
    %2 = vector.broadcast %cst_0 : bf16 to vector<16x256xbf16>
    %c0_1 = arith.constant 0 : index
    %c0_2 = arith.constant 0 : index
    %3 = vector.load %arg8[%c0_1, %c0_2] : memref<16x512xbf16, #tpu.memory_space<vmem>>, vector<16x256xbf16>
    tpu.vector_store %arg8[%c0_1, %c0_2], %2 {strides = array<i32>} : memref<16x512xbf16, #tpu.memory_space<vmem>>, vector<16x256xbf16>,
    %c0_3 = arith.constant 0 : index
    %c0_4 = arith.constant 0 : index
    %c0_5 = arith.constant 0 : index
    %4 = vector.load %arg2[%c0_3, %c0_4, %c0_5] : memref<1x8x384xbf16, #tpu.memory_space<vmem>>, vector<1x8x256xbf16>
    %5 = vector.shape_cast %4 : vector<1x8x256xbf16> to vector<8x256xbf16>
    %c0_6 = arith.constant 0 : index
    %c0_7 = arith.constant 0 : index
    %c1 = arith.constant 1 : index
    %6 = vector.load %arg2[%c0_6, %c0_7, %c1] : memref<1x8x384xbf16, #tpu.memory_space<vmem>>, vector<1x8x256xbf16>
    %7 = vector.shape_cast %6 : vector<1x8x256xbf16> to vector<8x256xbf16>
    %c0_8 = arith.constant 0 : index
    %c0_9 = arith.constant 0 : index
    %c2 = arith.constant 2 : index
    %8 = vector.load %arg2[%c0_8, %c0_9, %c2] : memref<1x8x384xbf16, #tpu.memory_space<vmem>>, vector<1x8x256xbf16>
    %9 = vector.shape_cast %8 : vector<1x8x256xbf16> to vector<8x256xbf16>
    %c0_10 = arith.constant 0 : index
    %c0_11 = arith.constant 0 : index
    %c3 = arith.constant 3 : index
    %10 = vector.load %arg2[%c0_10, %c0_11, %c3] : memref<1x8x384xbf16, #tpu.memory_space<vmem>>, vector<1x8x256xbf16>
    %11 = vector.shape_cast %10 : vector<1x8x256xbf16> to vector<8x256xbf16>
    %c0_12 = arith.constant 0 : index
    %c0_13 = arith.constant 0 : index
    %c4 = arith.constant 4 : index
    %12 = vector.load %arg2[%c0_12, %c0_13, %c4] : memref<1x8x384xbf16, #tpu.memory_space<vmem>>, vector<1x8x256xbf16>
    %13 = vector.shape_cast %12 : vector<1x8x256xbf16> to vector<8x256xbf16>
    %c0_14 = arith.constant 0 : index
    %c0_15 = arith.constant 0 : index
    %c16 = arith.constant 16 : index
    %14 = vector.load %arg2[%c0_14, %c0_15, %c16] : memref<1x8x384xbf16, #tpu.memory_space<vmem>>, vector<1x8x256xbf16>
    %15 = vector.shape_cast %14 : vector<1x8x256xbf16> to vector<8x256xbf16>
    %c0_16 = arith.constant 0 : index
    %c0_17 = arith.constant 0 : index
    %c17 = arith.constant 17 : index
    %16 = vector.load %arg2[%c0_16, %c0_17, %c17] : memref<1x8x384xbf16, #tpu.memory_space<vmem>>, vector<1x8x256xbf16>
    %17 = vector.shape_cast %16 : vector<1x8x256xbf16> to vector<8x256xbf16>
    %c0_18 = arith.constant 0 : index
    %c0_19 = arith.constant 0 : index
    %c18 = arith.constant 18 : index
    %18 = vector.load %arg2[%c0_18, %c0_19, %c18] : memref<1x8x384xbf16, #tpu.memory_space<vmem>>, vector<1x8x256xbf16>
    %19 = vector.shape_cast %18 : vector<1x8x256xbf16> to vector<8x256xbf16>
    %c0_20 = arith.constant 0 : index
    %c0_21 = arith.constant 0 : index
    %c19 = arith.constant 19 : index
    %20 = vector.load %arg2[%c0_20, %c0_21, %c19] : memref<1x8x384xbf16, #tpu.memory_space<vmem>>, vector<1x8x256xbf16>
    %21 = vector.shape_cast %20 : vector<1x8x256xbf16> to vector<8x256xbf16>
    %c0_22 = arith.constant 0 : index
    %c0_23 = arith.constant 0 : index
    %c20 = arith.constant 20 : index
    %22 = vector.load %arg2[%c0_22, %c0_23, %c20] : memref<1x8x384xbf16, #tpu.memory_space<vmem>>, vector<1x8x256xbf16>
    %23 = vector.shape_cast %22 : vector<1x8x256xbf16> to vector<8x256xbf16>
    %c0_24 = arith.constant 0 : index
    %c0_25 = arith.constant 0 : index
    %c32 = arith.constant 32 : index
    %24 = vector.load %arg2[%c0_24, %c0_25, %c32] : memref<1x8x384xbf16, #tpu.memory_space<vmem>>, vector<1x8x256xbf16>
    %25 = vector.shape_cast %24 : vector<1x8x256xbf16> to vector<8x256xbf16>
    %c0_26 = arith.constant 0 : index
    %c0_27 = arith.constant 0 : index
    %c33 = arith.constant 33 : index
    %26 = vector.load %arg2[%c0_26, %c0_27, %c33] : memref<1x8x384xbf16, #tpu.memory_space<vmem>>, vector<1x8x256xbf16>
    %27 = vector.shape_cast %26 : vector<1x8x256xbf16> to vector<8x256xbf16>
    %c0_28 = arith.constant 0 : index
    %c0_29 = arith.constant 0 : index
    %c34 = arith.constant 34 : index
    %28 = vector.load %arg2[%c0_28, %c0_29, %c34] : memref<1x8x384xbf16, #tpu.memory_space<vmem>>, vector<1x8x256xbf16>
    %29 = vector.shape_cast %28 : vector<1x8x256xbf16> to vector<8x256xbf16>
    %c0_30 = arith.constant 0 : index
    %c0_31 = arith.constant 0 : index
    %c35 = arith.constant 35 : index
    %30 = vector.load %arg2[%c0_30, %c0_31, %c35] : memref<1x8x384xbf16, #tpu.memory_space<vmem>>, vector<1x8x256xbf16>
    %31 = vector.shape_cast %30 : vector<1x8x256xbf16> to vector<8x256xbf16>
    %c0_32 = arith.constant 0 : index
    %c0_33 = arith.constant 0 : index
    %c36 = arith.constant 36 : index
    %32 = vector.load %arg2[%c0_32, %c0_33, %c36] : memref<1x8x384xbf16, #tpu.memory_space<vmem>>, vector<1x8x256xbf16>
    %33 = vector.shape_cast %32 : vector<1x8x256xbf16> to vector<8x256xbf16>
    %c0_34 = arith.constant 0 : index
    %c0_35 = arith.constant 0 : index
    %c48 = arith.constant 48 : index
    %34 = vector.load %arg2[%c0_34, %c0_35, %c48] : memref<1x8x384xbf16, #tpu.memory_space<vmem>>, vector<1x8x256xbf16>
    %35 = vector.shape_cast %34 : vector<1x8x256xbf16> to vector<8x256xbf16>
    %c0_36 = arith.constant 0 : index
    %c0_37 = arith.constant 0 : index
    %c49 = arith.constant 49 : index
    %36 = vector.load %arg2[%c0_36, %c0_37, %c49] : memref<1x8x384xbf16, #tpu.memory_space<vmem>>, vector<1x8x256xbf16>
    %37 = vector.shape_cast %36 : vector<1x8x256xbf16> to vector<8x256xbf16>
    %c0_38 = arith.constant 0 : index
    %c0_39 = arith.constant 0 : index
    %c50 = arith.constant 50 : index
    %38 = vector.load %arg2[%c0_38, %c0_39, %c50] : memref<1x8x384xbf16, #tpu.memory_space<vmem>>, vector<1x8x256xbf16>
    %39 = vector.shape_cast %38 : vector<1x8x256xbf16> to vector<8x256xbf16>
    %c0_40 = arith.constant 0 : index
    %c0_41 = arith.constant 0 : index
    %c51 = arith.constant 51 : index
    %40 = vector.load %arg2[%c0_40, %c0_41, %c51] : memref<1x8x384xbf16, #tpu.memory_space<vmem>>, vector<1x8x256xbf16>
    %41 = vector.shape_cast %40 : vector<1x8x256xbf16> to vector<8x256xbf16>
    %c0_42 = arith.constant 0 : index
    %c0_43 = arith.constant 0 : index
    %c52 = arith.constant 52 : index
    %42 = vector.load %arg2[%c0_42, %c0_43, %c52] : memref<1x8x384xbf16, #tpu.memory_space<vmem>>, vector<1x8x256xbf16>
    %43 = vector.shape_cast %42 : vector<1x8x256xbf16> to vector<8x256xbf16>
    %c0_44 = arith.constant 0 : index
    %c0_45 = arith.constant 0 : index
    %c64 = arith.constant 64 : index
    %44 = vector.load %arg2[%c0_44, %c0_45, %c64] : memref<1x8x384xbf16, #tpu.memory_space<vmem>>, vector<1x8x256xbf16>
    %45 = vector.shape_cast %44 : vector<1x8x256xbf16> to vector<8x256xbf16>
    %c0_46 = arith.constant 0 : index
    %c0_47 = arith.constant 0 : index
    %c65 = arith.constant 65 : index
    %46 = vector.load %arg2[%c0_46, %c0_47, %c65] : memref<1x8x384xbf16, #tpu.memory_space<vmem>>, vector<1x8x256xbf16>
    %47 = vector.shape_cast %46 : vector<1x8x256xbf16> to vector<8x256xbf16>
    %c0_48 = arith.constant 0 : index
    %c0_49 = arith.constant 0 : index
    %c66 = arith.constant 66 : index
    %48 = vector.load %arg2[%c0_48, %c0_49, %c66] : memref<1x8x384xbf16, #tpu.memory_space<vmem>>, vector<1x8x256xbf16>
    %49 = vector.shape_cast %48 : vector<1x8x256xbf16> to vector<8x256xbf16>
    %c0_50 = arith.constant 0 : index
    %c0_51 = arith.constant 0 : index
    %c67 = arith.constant 67 : index
    %50 = vector.load %arg2[%c0_50, %c0_51, %c67] : memref<1x8x384xbf16, #tpu.memory_space<vmem>>, vector<1x8x256xbf16>
    %51 = vector.shape_cast %50 : vector<1x8x256xbf16> to vector<8x256xbf16>
    %c0_52 = arith.constant 0 : index
    %c0_53 = arith.constant 0 : index
    %c68 = arith.constant 68 : index
    %52 = vector.load %arg2[%c0_52, %c0_53, %c68] : memref<1x8x384xbf16, #tpu.memory_space<vmem>>, vector<1x8x256xbf16>
    %53 = vector.shape_cast %52 : vector<1x8x256xbf16> to vector<8x256xbf16>
    %54 = tpu.concatenate %5, %7, %9, %11, %13, %15, %17, %19, %21, %23, %25, %27, %29, %31, %33, %35 in 0 : vector<8x256xbf16>, vector<8x256xbf16>, vector<8x256xbf16>, vector<8x256xbf16>, vector<8x256xbf16>, vector<8x256xbf16>, vector<8x256xbf16>, vector<8x256xbf16>, vector<8x256xbf16>, vector<8x256xbf16>, vector<8x256xbf16>, vector<8x256xbf16>, vector<8x256xbf16>, vector<8x256xbf16>, vector<8x256xbf16>, vector<8x256xbf16> -> vector<128x256xbf16>
    %55 = tpu.concatenate %37, %39, %41, %43, %45, %47, %49, %51, %53 in 0 : vector<8x256xbf16>, vector<8x256xbf16>, vector<8x256xbf16>, vector<8x256xbf16>, vector<8x256xbf16>, vector<8x256xbf16>, vector<8x256xbf16>, vector<8x256xbf16>, vector<8x256xbf16> -> vector<72x256xbf16>
    %56 = tpu.concatenate %54, %55 in 0 : vector<128x256xbf16>, vector<72x256xbf16> -> vector<200x256xbf16>
    %c0_54 = arith.constant 0 : index
    %c0_55 = arith.constant 0 : index
    %57 = vector.load %arg4[%c0_54, %c0_55] : memref<16x2176xbf16, #tpu.memory_space<vmem>>, vector<16x200xbf16>
    %cst_56 = arith.constant dense<0.000000e+00> : vector<16x256xf32>
    %58 = tpu.matmul %57, %56, %cst_56 {dimension_numbers = #tpu.dot_dimension_numbers<[1], [0], [0], [1], [0, 0, 1, 1], [], []>} : vector<16x200xbf16>, vector<200x256xbf16>, vector<16x256xf32> -> vector<16x256xf32>
    %c0_57 = arith.constant 0 : index
    %c0_58 = arith.constant 0 : index
    %59 = vector.load %arg5[%c0_57, %c0_58] : memref<16x128xf32, #tpu.memory_space<vmem>>, vector<16x1xf32>
    %60 = vector.broadcast %59 : vector<16x1xf32> to vector<16x256xf32>
    %61 = arith.addf %58, %60 : vector<16x256xf32>
    %c0_59 = arith.constant 0 : index
    %62 = memref.load %arg1[%c0_59] : memref<5xf32, #tpu.memory_space<smem>>
    %cst_60 = arith.constant 0.000000e+00 : f32
    %63 = vector.broadcast %cst_60 : f32 to vector<16x256xf32>
    %64 = arith.cmpf ogt, %61, %63 : vector<16x256xf32>
    %65 = vector.broadcast %62 : f32 to vector<16x256xf32>
    %66 = arith.mulf %61, %65 : vector<16x256xf32>
    %67 = arith.select %64, %61, %66 : vector<16x256xi1>, vector<16x256xf32>
    %68 = arith.truncf %67 : vector<16x256xf32> to vector<16x256xbf16>
    %c0_61 = arith.constant 0 : index
    %c0_62 = arith.constant 0 : index
    %69 = vector.load %arg7[%c0_61, %c0_62] : memref<16x384xbf16, #tpu.memory_space<vmem>>, vector<16x256xbf16>
    tpu.vector_store %arg7[%c0_61, %c0_62], %68 {strides = array<i32>} : memref<16x384xbf16, #tpu.memory_space<vmem>>, vector<16x256xbf16>,
    %c0_63 = arith.constant 0 : index
    %c0_64 = arith.constant 0 : index
    %70 = vector.load %arg7[%c0_63, %c0_64] : memref<16x384xbf16, #tpu.memory_space<vmem>>, vector<16x256xbf16>
    %c0_65 = arith.constant 0 : index
    %c256_66 = arith.constant 256 : index
    %71 = vector.load %arg4[%c0_65, %c256_66] : memref<16x2176xbf16, #tpu.memory_space<vmem>>, vector<8x16xbf16>
    %cst_67 = arith.constant dense<0.000000e+00> : vector<8x256xf32>
    %72 = tpu.matmul %71, %70, %cst_67 {dimension_numbers = #tpu.dot_dimension_numbers<[1], [0], [0], [1], [0, 0, 1, 1], [], []>} : vector<8x16xbf16>, vector<16x256xbf16>, vector<8x256xf32> -> vector<8x256xf32>
    %c0_68 = arith.constant 0 : index
    %c1_69 = arith.constant 1 : index
    %73 = vector.load %arg5[%c0_68, %c1_69] : memref<16x128xf32, #tpu.memory_space<vmem>>, vector<8x1xf32>
    %74 = vector.broadcast %73 : vector<8x1xf32> to vector<8x256xf32>
    %75 = arith.addf %72, %74 : vector<8x256xf32>
    %c1_70 = arith.constant 1 : index
    %76 = memref.load %arg1[%c1_70] : memref<5xf32, #tpu.memory_space<smem>>
    %cst_71 = arith.constant 0.000000e+00 : f32
    %77 = vector.broadcast %cst_71 : f32 to vector<8x256xf32>
    %78 = arith.cmpf ogt, %75, %77 : vector<8x256xf32>
    %79 = vector.broadcast %76 : f32 to vector<8x256xf32>
    %80 = arith.mulf %75, %79 : vector<8x256xf32>
    %81 = arith.select %78, %75, %80 : vector<8x256xi1>, vector<8x256xf32>
    %82 = arith.truncf %81 : vector<8x256xf32> to vector<8x256xbf16>
    %c0_72 = arith.constant 0 : index
    %c0_73 = arith.constant 0 : index
    %83 = vector.load %arg7[%c0_72, %c0_73] : memref<16x384xbf16, #tpu.memory_space<vmem>>, vector<8x256xbf16>
    tpu.vector_store %arg7[%c0_72, %c0_73], %82 {strides = array<i32>} : memref<16x384xbf16, #tpu.memory_space<vmem>>, vector<8x256xbf16>,
    %c0_74 = arith.constant 0 : index
    %c0_75 = arith.constant 0 : index
    %84 = vector.load %arg7[%c0_74, %c0_75] : memref<16x384xbf16, #tpu.memory_space<vmem>>, vector<8x256xbf16>
    %c0_76 = arith.constant 0 : index
    %c1_77 = arith.constant 1 : index
    %85 = vector.load %arg7[%c0_76, %c1_77] : memref<16x384xbf16, #tpu.memory_space<vmem>>, vector<8x256xbf16>
    %c0_78 = arith.constant 0 : index
    %c2_79 = arith.constant 2 : index
    %86 = vector.load %arg7[%c0_78, %c2_79] : memref<16x384xbf16, #tpu.memory_space<vmem>>, vector<8x256xbf16>
    %c0_80 = arith.constant 0 : index
    %c16_81 = arith.constant 16 : index
    %87 = vector.load %arg7[%c0_80, %c16_81] : memref<16x384xbf16, #tpu.memory_space<vmem>>, vector<8x256xbf16>
    %c0_82 = arith.constant 0 : index
    %c17_83 = arith.constant 17 : index
    %88 = vector.load %arg7[%c0_82, %c17_83] : memref<16x384xbf16, #tpu.memory_space<vmem>>, vector<8x256xbf16>
    %c0_84 = arith.constant 0 : index
    %c18_85 = arith.constant 18 : index
    %89 = vector.load %arg7[%c0_84, %c18_85] : memref<16x384xbf16, #tpu.memory_space<vmem>>, vector<8x256xbf16>
    %c0_86 = arith.constant 0 : index
    %c32_87 = arith.constant 32 : index
    %90 = vector.load %arg7[%c0_86, %c32_87] : memref<16x384xbf16, #tpu.memory_space<vmem>>, vector<8x256xbf16>
    %c0_88 = arith.constant 0 : index
    %c33_89 = arith.constant 33 : index
    %91 = vector.load %arg7[%c0_88, %c33_89] : memref<16x384xbf16, #tpu.memory_space<vmem>>, vector<8x256xbf16>
    %c0_90 = arith.constant 0 : index
    %c34_91 = arith.constant 34 : index
    %92 = vector.load %arg7[%c0_90, %c34_91] : memref<16x384xbf16, #tpu.memory_space<vmem>>, vector<8x256xbf16>
    %93 = tpu.concatenate %84, %85, %86, %87, %88, %89, %90, %91, %92 in 0 : vector<8x256xbf16>, vector<8x256xbf16>, vector<8x256xbf16>, vector<8x256xbf16>, vector<8x256xbf16>, vector<8x256xbf16>, vector<8x256xbf16>, vector<8x256xbf16>, vector<8x256xbf16> -> vector<72x256xbf16>
    %c0_92 = arith.constant 0 : index
    %c384 = arith.constant 384 : index
    %94 = vector.load %arg4[%c0_92, %c384] : memref<16x2176xbf16, #tpu.memory_space<vmem>>, vector<8x72xbf16>
    %cst_93 = arith.constant dense<0.000000e+00> : vector<8x256xf32>
    %95 = tpu.matmul %94, %93, %cst_93 {dimension_numbers = #tpu.dot_dimension_numbers<[1], [0], [0], [1], [0, 0, 1, 1], [], []>} : vector<8x72xbf16>, vector<72x256xbf16>, vector<8x256xf32> -> vector<8x256xf32>
    %c0_94 = arith.constant 0 : index
    %c2_95 = arith.constant 2 : index
    %96 = vector.load %arg5[%c0_94, %c2_95] : memref<16x128xf32, #tpu.memory_space<vmem>>, vector<8x1xf32>
    %97 = vector.broadcast %96 : vector<8x1xf32> to vector<8x256xf32>
    %98 = arith.addf %95, %97 : vector<8x256xf32>
    %c2_96 = arith.constant 2 : index
    %99 = memref.load %arg1[%c2_96] : memref<5xf32, #tpu.memory_space<smem>>
    %cst_97 = arith.constant 0.000000e+00 : f32
    %100 = vector.broadcast %cst_97 : f32 to vector<8x256xf32>
    %101 = arith.cmpf ogt, %98, %100 : vector<8x256xf32>
    %102 = vector.broadcast %99 : f32 to vector<8x256xf32>
    %103 = arith.mulf %98, %102 : vector<8x256xf32>
    %104 = arith.select %101, %98, %103 : vector<8x256xi1>, vector<8x256xf32>
    %105 = arith.truncf %104 : vector<8x256xf32> to vector<8x256xbf16>
    %c0_98 = arith.constant 0 : index
    %c0_99 = arith.constant 0 : index
    %106 = vector.load %arg7[%c0_98, %c0_99] : memref<16x384xbf16, #tpu.memory_space<vmem>>, vector<8x256xbf16>
    tpu.vector_store %arg7[%c0_98, %c0_99], %105 {strides = array<i32>} : memref<16x384xbf16, #tpu.memory_space<vmem>>, vector<8x256xbf16>,
    %c0_100 = arith.constant 0 : index
    %c0_101 = arith.constant 0 : index
    %107 = vector.load %arg7[%c0_100, %c0_101] : memref<16x384xbf16, #tpu.memory_space<vmem>>, vector<8x256xbf16>
    %c0_102 = arith.constant 0 : index
    %c1_103 = arith.constant 1 : index
    %108 = vector.load %arg7[%c0_102, %c1_103] : memref<16x384xbf16, #tpu.memory_space<vmem>>, vector<8x256xbf16>
    %c0_104 = arith.constant 0 : index
    %c2_105 = arith.constant 2 : index
    %109 = vector.load %arg7[%c0_104, %c2_105] : memref<16x384xbf16, #tpu.memory_space<vmem>>, vector<8x256xbf16>
    %c0_106 = arith.constant 0 : index
    %c16_107 = arith.constant 16 : index
    %110 = vector.load %arg7[%c0_106, %c16_107] : memref<16x384xbf16, #tpu.memory_space<vmem>>, vector<8x256xbf16>
    %c0_108 = arith.constant 0 : index
    %c17_109 = arith.constant 17 : index
    %111 = vector.load %arg7[%c0_108, %c17_109] : memref<16x384xbf16, #tpu.memory_space<vmem>>, vector<8x256xbf16>
    %c0_110 = arith.constant 0 : index
    %c18_111 = arith.constant 18 : index
    %112 = vector.load %arg7[%c0_110, %c18_111] : memref<16x384xbf16, #tpu.memory_space<vmem>>, vector<8x256xbf16>
    %c0_112 = arith.constant 0 : index
    %c32_113 = arith.constant 32 : index
    %113 = vector.load %arg7[%c0_112, %c32_113] : memref<16x384xbf16, #tpu.memory_space<vmem>>, vector<8x256xbf16>
    %c0_114 = arith.constant 0 : index
    %c33_115 = arith.constant 33 : index
    %114 = vector.load %arg7[%c0_114, %c33_115] : memref<16x384xbf16, #tpu.memory_space<vmem>>, vector<8x256xbf16>
    %c0_116 = arith.constant 0 : index
    %c34_117 = arith.constant 34 : index
    %115 = vector.load %arg7[%c0_116, %c34_117] : memref<16x384xbf16, #tpu.memory_space<vmem>>, vector<8x256xbf16>
    %116 = tpu.concatenate %107, %108, %109, %110, %111, %112, %113, %114, %115 in 0 : vector<8x256xbf16>, vector<8x256xbf16>, vector<8x256xbf16>, vector<8x256xbf16>, vector<8x256xbf16>, vector<8x256xbf16>, vector<8x256xbf16>, vector<8x256xbf16>, vector<8x256xbf16> -> vector<72x256xbf16>
    %c0_118 = arith.constant 0 : index
    %c512 = arith.constant 512 : index
    %117 = vector.load %arg4[%c0_118, %c512] : memref<16x2176xbf16, #tpu.memory_space<vmem>>, vector<8x72xbf16>
    %cst_119 = arith.constant dense<0.000000e+00> : vector<8x256xf32>
    %118 = tpu.matmul %117, %116, %cst_119 {dimension_numbers = #tpu.dot_dimension_numbers<[1], [0], [0], [1], [0, 0, 1, 1], [], []>} : vector<8x72xbf16>, vector<72x256xbf16>, vector<8x256xf32> -> vector<8x256xf32>
    %c0_120 = arith.constant 0 : index
    %c3_121 = arith.constant 3 : index
    %119 = vector.load %arg5[%c0_120, %c3_121] : memref<16x128xf32, #tpu.memory_space<vmem>>, vector<8x1xf32>
    %120 = vector.broadcast %119 : vector<8x1xf32> to vector<8x256xf32>
    %121 = arith.addf %118, %120 : vector<8x256xf32>
    %c3_122 = arith.constant 3 : index
    %122 = memref.load %arg1[%c3_122] : memref<5xf32, #tpu.memory_space<smem>>
    %cst_123 = arith.constant 0.000000e+00 : f32
    %123 = vector.broadcast %cst_123 : f32 to vector<8x256xf32>
    %124 = arith.cmpf ogt, %121, %123 : vector<8x256xf32>
    %125 = vector.broadcast %122 : f32 to vector<8x256xf32>
    %126 = arith.mulf %121, %125 : vector<8x256xf32>
    %127 = arith.select %124, %121, %126 : vector<8x256xi1>, vector<8x256xf32>
    %128 = arith.truncf %127 : vector<8x256xf32> to vector<8x256xbf16>
    %c0_124 = arith.constant 0 : index
    %c0_125 = arith.constant 0 : index
    %129 = vector.load %arg7[%c0_124, %c0_125] : memref<16x384xbf16, #tpu.memory_space<vmem>>, vector<8x256xbf16>
    tpu.vector_store %arg7[%c0_124, %c0_125], %128 {strides = array<i32>} : memref<16x384xbf16, #tpu.memory_space<vmem>>, vector<8x256xbf16>,
    %c0_126 = arith.constant 0 : index
    %c0_127 = arith.constant 0 : index
    %130 = vector.load %arg7[%c0_126, %c0_127] : memref<16x384xbf16, #tpu.memory_space<vmem>>, vector<8x256xbf16>
    %c0_128 = arith.constant 0 : index
    %c640 = arith.constant 640 : index
    %131 = vector.load %arg4[%c0_128, %c640] : memref<16x2176xbf16, #tpu.memory_space<vmem>>, vector<16x8xbf16>
    %cst_129 = arith.constant dense<0.000000e+00> : vector<16x256xf32>
    %132 = tpu.matmul %131, %130, %cst_129 {dimension_numbers = #tpu.dot_dimension_numbers<[1], [0], [0], [1], [0, 0, 1, 1], [], []>} : vector<16x8xbf16>, vector<8x256xbf16>, vector<16x256xf32> -> vector<16x256xf32>
    %c0_130 = arith.constant 0 : index
    %c4_131 = arith.constant 4 : index
    %133 = vector.load %arg5[%c0_130, %c4_131] : memref<16x128xf32, #tpu.memory_space<vmem>>, vector<16x1xf32>
    %134 = vector.broadcast %133 : vector<16x1xf32> to vector<16x256xf32>
    %135 = arith.addf %132, %134 : vector<16x256xf32>
    %c4_132 = arith.constant 4 : index
    %136 = memref.load %arg1[%c4_132] : memref<5xf32, #tpu.memory_space<smem>>
    %cst_133 = arith.constant 0.000000e+00 : f32
    %137 = vector.broadcast %cst_133 : f32 to vector<16x256xf32>
    %138 = arith.cmpf ogt, %135, %137 : vector<16x256xf32>
    %139 = vector.broadcast %136 : f32 to vector<16x256xf32>
    %140 = arith.mulf %135, %139 : vector<16x256xf32>
    %141 = arith.select %138, %135, %140 : vector<16x256xi1>, vector<16x256xf32>
    %142 = arith.truncf %141 : vector<16x256xf32> to vector<16x256xbf16>
    %c0_134 = arith.constant 0 : index
    %c0_135 = arith.constant 0 : index
    %143 = vector.load %arg3[%c0_134, %c0_135] : memref<1x256xf32, #tpu.memory_space<vmem>>, vector<1x256xf32>
    %cst_136 = arith.constant 0.000000e+00 : f32
    %144 = vector.broadcast %cst_136 : f32 to vector<1x256xf32>
    %145 = arith.cmpf ogt, %143, %144 : vector<1x256xf32>
    %cst_137 = arith.constant 0.000000e+00 : bf16
    %146 = vector.broadcast %cst_137 : bf16 to vector<16x256xbf16>
    %147 = vector.shape_cast %145 : vector<1x256xi1> to vector<1x256xi1>
    %148 = vector.broadcast %147 : vector<1x256xi1> to vector<16x256xi1>
    %149 = arith.select %148, %142, %146 : vector<16x256xi1>, vector<16x256xbf16>
    %c0_138 = arith.constant 0 : index
    %c256_139 = arith.constant 256 : index
    %150 = vector.load %arg8[%c0_138, %c256_139] : memref<16x512xbf16, #tpu.memory_space<vmem>>, vector<16x256xbf16>
    tpu.vector_store %arg8[%c0_138, %c256_139], %149 {strides = array<i32>} : memref<16x512xbf16, #tpu.memory_space<vmem>>, vector<16x256xbf16>,
    %c0_140 = arith.constant 0 : index
    %c256_141 = arith.constant 256 : index
    %151 = vector.load %arg8[%c0_140, %c256_141] : memref<16x512xbf16, #tpu.memory_space<vmem>>, vector<16x256xbf16>
    %c0_142 = arith.constant 0 : index
    %c255 = arith.constant 255 : index
    %152 = vector.load %arg8[%c0_142, %c255] : memref<16x512xbf16, #tpu.memory_space<vmem>>, vector<16x256xbf16>
    %c0_143 = arith.constant 0 : index
    %c254 = arith.constant 254 : index
    %153 = vector.load %arg8[%c0_143, %c254] : memref<16x512xbf16, #tpu.memory_space<vmem>>, vector<16x256xbf16>
    %c0_144 = arith.constant 0 : index
    %c253 = arith.constant 253 : index
    %154 = vector.load %arg8[%c0_144, %c253] : memref<16x512xbf16, #tpu.memory_space<vmem>>, vector<16x256xbf16>
    %c0_145 = arith.constant 0 : index
    %c252 = arith.constant 252 : index
    %155 = vector.load %arg8[%c0_145, %c252] : memref<16x512xbf16, #tpu.memory_space<vmem>>, vector<16x256xbf16>
    %c0_146 = arith.constant 0 : index
    %c251 = arith.constant 251 : index
    %156 = vector.load %arg8[%c0_146, %c251] : memref<16x512xbf16, #tpu.memory_space<vmem>>, vector<16x256xbf16>
    %c0_147 = arith.constant 0 : index
    %c250 = arith.constant 250 : index
    %157 = vector.load %arg8[%c0_147, %c250] : memref<16x512xbf16, #tpu.memory_space<vmem>>, vector<16x256xbf16>
    %c0_148 = arith.constant 0 : index
    %c249 = arith.constant 249 : index
    %158 = vector.load %arg8[%c0_148, %c249] : memref<16x512xbf16, #tpu.memory_space<vmem>>, vector<16x256xbf16>
    %c0_149 = arith.constant 0 : index
    %c248 = arith.constant 248 : index
    %159 = vector.load %arg8[%c0_149, %c248] : memref<16x512xbf16, #tpu.memory_space<vmem>>, vector<16x256xbf16>
    %c0_150 = arith.constant 0 : index
    %c240 = arith.constant 240 : index
    %160 = vector.load %arg8[%c0_150, %c240] : memref<16x512xbf16, #tpu.memory_space<vmem>>, vector<16x256xbf16>
    %c0_151 = arith.constant 0 : index
    %c239 = arith.constant 239 : index
    %161 = vector.load %arg8[%c0_151, %c239] : memref<16x512xbf16, #tpu.memory_space<vmem>>, vector<16x256xbf16>
    %c0_152 = arith.constant 0 : index
    %c238 = arith.constant 238 : index
    %162 = vector.load %arg8[%c0_152, %c238] : memref<16x512xbf16, #tpu.memory_space<vmem>>, vector<16x256xbf16>
    %c0_153 = arith.constant 0 : index
    %c237 = arith.constant 237 : index
    %163 = vector.load %arg8[%c0_153, %c237] : memref<16x512xbf16, #tpu.memory_space<vmem>>, vector<16x256xbf16>
    %c0_154 = arith.constant 0 : index
    %c236 = arith.constant 236 : index
    %164 = vector.load %arg8[%c0_154, %c236] : memref<16x512xbf16, #tpu.memory_space<vmem>>, vector<16x256xbf16>
    %c0_155 = arith.constant 0 : index
    %c235 = arith.constant 235 : index
    %165 = vector.load %arg8[%c0_155, %c235] : memref<16x512xbf16, #tpu.memory_space<vmem>>, vector<16x256xbf16>
    %c0_156 = arith.constant 0 : index
    %c234 = arith.constant 234 : index
    %166 = vector.load %arg8[%c0_156, %c234] : memref<16x512xbf16, #tpu.memory_space<vmem>>, vector<16x256xbf16>
    %167 = tpu.concatenate %151, %152, %153, %154, %155, %156, %157, %158, %159, %160, %161, %162, %163, %164, %165, %166 in 0 : vector<16x256xbf16>, vector<16x256xbf16>, vector<16x256xbf16>, vector<16x256xbf16>, vector<16x256xbf16>, vector<16x256xbf16>, vector<16x256xbf16>, vector<16x256xbf16>, vector<16x256xbf16>, vector<16x256xbf16>, vector<16x256xbf16>, vector<16x256xbf16>, vector<16x256xbf16>, vector<16x256xbf16>, vector<16x256xbf16>, vector<16x256xbf16> -> vector<256x256xbf16>
    %c0_157 = arith.constant 0 : index
    %c768 = arith.constant 768 : index
    %168 = vector.load %arg4[%c0_157, %c768] : memref<16x2176xbf16, #tpu.memory_space<vmem>>, vector<3x256xbf16>
    %cst_158 = arith.constant dense<0.000000e+00> : vector<3x256xf32>
    %169 = tpu.matmul %168, %167, %cst_158 {dimension_numbers = #tpu.dot_dimension_numbers<[1], [0], [0], [1], [0, 0, 1, 1], [], []>} : vector<3x256xbf16>, vector<256x256xbf16>, vector<3x256xf32> -> vector<3x256xf32>
    %c0_159 = arith.constant 0 : index
    %c233 = arith.constant 233 : index
    %170 = vector.load %arg8[%c0_159, %c233] : memref<16x512xbf16, #tpu.memory_space<vmem>>, vector<16x256xbf16>
    %c0_160 = arith.constant 0 : index
    %c232 = arith.constant 232 : index
    %171 = vector.load %arg8[%c0_160, %c232] : memref<16x512xbf16, #tpu.memory_space<vmem>>, vector<16x256xbf16>
    %c0_161 = arith.constant 0 : index
    %c224 = arith.constant 224 : index
    %172 = vector.load %arg8[%c0_161, %c224] : memref<16x512xbf16, #tpu.memory_space<vmem>>, vector<16x256xbf16>
    %c0_162 = arith.constant 0 : index
    %c223 = arith.constant 223 : index
    %173 = vector.load %arg8[%c0_162, %c223] : memref<16x512xbf16, #tpu.memory_space<vmem>>, vector<16x256xbf16>
    %c0_163 = arith.constant 0 : index
    %c222 = arith.constant 222 : index
    %174 = vector.load %arg8[%c0_163, %c222] : memref<16x512xbf16, #tpu.memory_space<vmem>>, vector<16x256xbf16>
    %c0_164 = arith.constant 0 : index
    %c221 = arith.constant 221 : index
    %175 = vector.load %arg8[%c0_164, %c221] : memref<16x512xbf16, #tpu.memory_space<vmem>>, vector<16x256xbf16>
    %c0_165 = arith.constant 0 : index
    %c220 = arith.constant 220 : index
    %176 = vector.load %arg8[%c0_165, %c220] : memref<16x512xbf16, #tpu.memory_space<vmem>>, vector<16x256xbf16>
    %c0_166 = arith.constant 0 : index
    %c219 = arith.constant 219 : index
    %177 = vector.load %arg8[%c0_166, %c219] : memref<16x512xbf16, #tpu.memory_space<vmem>>, vector<16x256xbf16>
    %c0_167 = arith.constant 0 : index
    %c218 = arith.constant 218 : index
    %178 = vector.load %arg8[%c0_167, %c218] : memref<16x512xbf16, #tpu.memory_space<vmem>>, vector<16x256xbf16>
    %c0_168 = arith.constant 0 : index
    %c217 = arith.constant 217 : index
    %179 = vector.load %arg8[%c0_168, %c217] : memref<16x512xbf16, #tpu.memory_space<vmem>>, vector<16x256xbf16>
    %c0_169 = arith.constant 0 : index
    %c216 = arith.constant 216 : index
    %180 = vector.load %arg8[%c0_169, %c216] : memref<16x512xbf16, #tpu.memory_space<vmem>>, vector<16x256xbf16>
    %c0_170 = arith.constant 0 : index
    %c208 = arith.constant 208 : index
    %181 = vector.load %arg8[%c0_170, %c208] : memref<16x512xbf16, #tpu.memory_space<vmem>>, vector<16x256xbf16>
    %c0_171 = arith.constant 0 : index
    %c207 = arith.constant 207 : index
    %182 = vector.load %arg8[%c0_171, %c207] : memref<16x512xbf16, #tpu.memory_space<vmem>>, vector<16x256xbf16>
    %c0_172 = arith.constant 0 : index
    %c206 = arith.constant 206 : index
    %183 = vector.load %arg8[%c0_172, %c206] : memref<16x512xbf16, #tpu.memory_space<vmem>>, vector<16x256xbf16>
    %c0_173 = arith.constant 0 : index
    %c205 = arith.constant 205 : index
    %184 = vector.load %arg8[%c0_173, %c205] : memref<16x512xbf16, #tpu.memory_space<vmem>>, vector<16x256xbf16>
    %c0_174 = arith.constant 0 : index
    %c204 = arith.constant 204 : index
    %185 = vector.load %arg8[%c0_174, %c204] : memref<16x512xbf16, #tpu.memory_space<vmem>>, vector<16x256xbf16>
    %186 = tpu.concatenate %170, %171, %172, %173, %174, %175, %176, %177, %178, %179, %180, %181, %182, %183, %184, %185 in 0 : vector<16x256xbf16>, vector<16x256xbf16>, vector<16x256xbf16>, vector<16x256xbf16>, vector<16x256xbf16>, vector<16x256xbf16>, vector<16x256xbf16>, vector<16x256xbf16>, vector<16x256xbf16>, vector<16x256xbf16>, vector<16x256xbf16>, vector<16x256xbf16>, vector<16x256xbf16>, vector<16x256xbf16>, vector<16x256xbf16>, vector<16x256xbf16> -> vector<256x256xbf16>
    %c0_175 = arith.constant 0 : index
    %c1024 = arith.constant 1024 : index
    %187 = vector.load %arg4[%c0_175, %c1024] : memref<16x2176xbf16, #tpu.memory_space<vmem>>, vector<3x256xbf16>
    %cst_176 = arith.constant dense<0.000000e+00> : vector<3x256xf32>
    %188 = tpu.matmul %187, %186, %cst_176 {dimension_numbers = #tpu.dot_dimension_numbers<[1], [0], [0], [1], [0, 0, 1, 1], [], []>} : vector<3x256xbf16>, vector<256x256xbf16>, vector<3x256xf32> -> vector<3x256xf32>
    %189 = arith.addf %169, %188 : vector<3x256xf32>
    %c0_177 = arith.constant 0 : index
    %c203 = arith.constant 203 : index
    %190 = vector.load %arg8[%c0_177, %c203] : memref<16x512xbf16, #tpu.memory_space<vmem>>, vector<16x256xbf16>
    %c0_178 = arith.constant 0 : index
    %c202 = arith.constant 202 : index
    %191 = vector.load %arg8[%c0_178, %c202] : memref<16x512xbf16, #tpu.memory_space<vmem>>, vector<16x256xbf16>
    %c0_179 = arith.constant 0 : index
    %c201 = arith.constant 201 : index
    %192 = vector.load %arg8[%c0_179, %c201] : memref<16x512xbf16, #tpu.memory_space<vmem>>, vector<16x256xbf16>
    %c0_180 = arith.constant 0 : index
    %c200 = arith.constant 200 : index
    %193 = vector.load %arg8[%c0_180, %c200] : memref<16x512xbf16, #tpu.memory_space<vmem>>, vector<16x256xbf16>
    %c0_181 = arith.constant 0 : index
    %c192 = arith.constant 192 : index
    %194 = vector.load %arg8[%c0_181, %c192] : memref<16x512xbf16, #tpu.memory_space<vmem>>, vector<16x256xbf16>
    %c0_182 = arith.constant 0 : index
    %c191 = arith.constant 191 : index
    %195 = vector.load %arg8[%c0_182, %c191] : memref<16x512xbf16, #tpu.memory_space<vmem>>, vector<16x256xbf16>
    %c0_183 = arith.constant 0 : index
    %c190 = arith.constant 190 : index
    %196 = vector.load %arg8[%c0_183, %c190] : memref<16x512xbf16, #tpu.memory_space<vmem>>, vector<16x256xbf16>
    %c0_184 = arith.constant 0 : index
    %c189 = arith.constant 189 : index
    %197 = vector.load %arg8[%c0_184, %c189] : memref<16x512xbf16, #tpu.memory_space<vmem>>, vector<16x256xbf16>
    %c0_185 = arith.constant 0 : index
    %c188 = arith.constant 188 : index
    %198 = vector.load %arg8[%c0_185, %c188] : memref<16x512xbf16, #tpu.memory_space<vmem>>, vector<16x256xbf16>
    %c0_186 = arith.constant 0 : index
    %c187 = arith.constant 187 : index
    %199 = vector.load %arg8[%c0_186, %c187] : memref<16x512xbf16, #tpu.memory_space<vmem>>, vector<16x256xbf16>
    %c0_187 = arith.constant 0 : index
    %c186 = arith.constant 186 : index
    %200 = vector.load %arg8[%c0_187, %c186] : memref<16x512xbf16, #tpu.memory_space<vmem>>, vector<16x256xbf16>
    %c0_188 = arith.constant 0 : index
    %c185 = arith.constant 185 : index
    %201 = vector.load %arg8[%c0_188, %c185] : memref<16x512xbf16, #tpu.memory_space<vmem>>, vector<16x256xbf16>
    %c0_189 = arith.constant 0 : index
    %c184 = arith.constant 184 : index
    %202 = vector.load %arg8[%c0_189, %c184] : memref<16x512xbf16, #tpu.memory_space<vmem>>, vector<16x256xbf16>
    %c0_190 = arith.constant 0 : index
    %c176 = arith.constant 176 : index
    %203 = vector.load %arg8[%c0_190, %c176] : memref<16x512xbf16, #tpu.memory_space<vmem>>, vector<16x256xbf16>
    %c0_191 = arith.constant 0 : index
    %c175 = arith.constant 175 : index
    %204 = vector.load %arg8[%c0_191, %c175] : memref<16x512xbf16, #tpu.memory_space<vmem>>, vector<16x256xbf16>
    %c0_192 = arith.constant 0 : index
    %c174 = arith.constant 174 : index
    %205 = vector.load %arg8[%c0_192, %c174] : memref<16x512xbf16, #tpu.memory_space<vmem>>, vector<16x256xbf16>
    %206 = tpu.concatenate %190, %191, %192, %193, %194, %195, %196, %197, %198, %199, %200, %201, %202, %203, %204, %205 in 0 : vector<16x256xbf16>, vector<16x256xbf16>, vector<16x256xbf16>, vector<16x256xbf16>, vector<16x256xbf16>, vector<16x256xbf16>, vector<16x256xbf16>, vector<16x256xbf16>, vector<16x256xbf16>, vector<16x256xbf16>, vector<16x256xbf16>, vector<16x256xbf16>, vector<16x256xbf16>, vector<16x256xbf16>, vector<16x256xbf16>, vector<16x256xbf16> -> vector<256x256xbf16>
    %c0_193 = arith.constant 0 : index
    %c1280 = arith.constant 1280 : index
    %207 = vector.load %arg4[%c0_193, %c1280] : memref<16x2176xbf16, #tpu.memory_space<vmem>>, vector<3x256xbf16>
    %cst_194 = arith.constant dense<0.000000e+00> : vector<3x256xf32>
    %208 = tpu.matmul %207, %206, %cst_194 {dimension_numbers = #tpu.dot_dimension_numbers<[1], [0], [0], [1], [0, 0, 1, 1], [], []>} : vector<3x256xbf16>, vector<256x256xbf16>, vector<3x256xf32> -> vector<3x256xf32>
    %209 = arith.addf %189, %208 : vector<3x256xf32>
    %c0_195 = arith.constant 0 : index
    %c173 = arith.constant 173 : index
    %210 = vector.load %arg8[%c0_195, %c173] : memref<16x512xbf16, #tpu.memory_space<vmem>>, vector<16x256xbf16>
    %c0_196 = arith.constant 0 : index
    %c172 = arith.constant 172 : index
    %211 = vector.load %arg8[%c0_196, %c172] : memref<16x512xbf16, #tpu.memory_space<vmem>>, vector<16x256xbf16>
    %c0_197 = arith.constant 0 : index
    %c171 = arith.constant 171 : index
    %212 = vector.load %arg8[%c0_197, %c171] : memref<16x512xbf16, #tpu.memory_space<vmem>>, vector<16x256xbf16>
    %c0_198 = arith.constant 0 : index
    %c170 = arith.constant 170 : index
    %213 = vector.load %arg8[%c0_198, %c170] : memref<16x512xbf16, #tpu.memory_space<vmem>>, vector<16x256xbf16>
    %c0_199 = arith.constant 0 : index
    %c169 = arith.constant 169 : index
    %214 = vector.load %arg8[%c0_199, %c169] : memref<16x512xbf16, #tpu.memory_space<vmem>>, vector<16x256xbf16>
    %c0_200 = arith.constant 0 : index
    %c168 = arith.constant 168 : index
    %215 = vector.load %arg8[%c0_200, %c168] : memref<16x512xbf16, #tpu.memory_space<vmem>>, vector<16x256xbf16>
    %c0_201 = arith.constant 0 : index
    %c160 = arith.constant 160 : index
    %216 = vector.load %arg8[%c0_201, %c160] : memref<16x512xbf16, #tpu.memory_space<vmem>>, vector<16x256xbf16>
    %c0_202 = arith.constant 0 : index
    %c159 = arith.constant 159 : index
    %217 = vector.load %arg8[%c0_202, %c159] : memref<16x512xbf16, #tpu.memory_space<vmem>>, vector<16x256xbf16>
    %c0_203 = arith.constant 0 : index
    %c158 = arith.constant 158 : index
    %218 = vector.load %arg8[%c0_203, %c158] : memref<16x512xbf16, #tpu.memory_space<vmem>>, vector<16x256xbf16>
    %c0_204 = arith.constant 0 : index
    %c157 = arith.constant 157 : index
    %219 = vector.load %arg8[%c0_204, %c157] : memref<16x512xbf16, #tpu.memory_space<vmem>>, vector<16x256xbf16>
    %c0_205 = arith.constant 0 : index
    %c156 = arith.constant 156 : index
    %220 = vector.load %arg8[%c0_205, %c156] : memref<16x512xbf16, #tpu.memory_space<vmem>>, vector<16x256xbf16>
    %c0_206 = arith.constant 0 : index
    %c155 = arith.constant 155 : index
    %221 = vector.load %arg8[%c0_206, %c155] : memref<16x512xbf16, #tpu.memory_space<vmem>>, vector<16x256xbf16>
    %c0_207 = arith.constant 0 : index
    %c154 = arith.constant 154 : index
    %222 = vector.load %arg8[%c0_207, %c154] : memref<16x512xbf16, #tpu.memory_space<vmem>>, vector<16x256xbf16>
    %c0_208 = arith.constant 0 : index
    %c153 = arith.constant 153 : index
    %223 = vector.load %arg8[%c0_208, %c153] : memref<16x512xbf16, #tpu.memory_space<vmem>>, vector<16x256xbf16>
    %c0_209 = arith.constant 0 : index
    %c152 = arith.constant 152 : index
    %224 = vector.load %arg8[%c0_209, %c152] : memref<16x512xbf16, #tpu.memory_space<vmem>>, vector<16x256xbf16>
    %c0_210 = arith.constant 0 : index
    %c144 = arith.constant 144 : index
    %225 = vector.load %arg8[%c0_210, %c144] : memref<16x512xbf16, #tpu.memory_space<vmem>>, vector<16x256xbf16>
    %226 = tpu.concatenate %210, %211, %212, %213, %214, %215, %216, %217, %218, %219, %220, %221, %222, %223, %224, %225 in 0 : vector<16x256xbf16>, vector<16x256xbf16>, vector<16x256xbf16>, vector<16x256xbf16>, vector<16x256xbf16>, vector<16x256xbf16>, vector<16x256xbf16>, vector<16x256xbf16>, vector<16x256xbf16>, vector<16x256xbf16>, vector<16x256xbf16>, vector<16x256xbf16>, vector<16x256xbf16>, vector<16x256xbf16>, vector<16x256xbf16>, vector<16x256xbf16> -> vector<256x256xbf16>
    %c0_211 = arith.constant 0 : index
    %c1536 = arith.constant 1536 : index
    %227 = vector.load %arg4[%c0_211, %c1536] : memref<16x2176xbf16, #tpu.memory_space<vmem>>, vector<3x256xbf16>
    %cst_212 = arith.constant dense<0.000000e+00> : vector<3x256xf32>
    %228 = tpu.matmul %227, %226, %cst_212 {dimension_numbers = #tpu.dot_dimension_numbers<[1], [0], [0], [1], [0, 0, 1, 1], [], []>} : vector<3x256xbf16>, vector<256x256xbf16>, vector<3x256xf32> -> vector<3x256xf32>
    %229 = arith.addf %209, %228 : vector<3x256xf32>
    %c0_213 = arith.constant 0 : index
    %c143 = arith.constant 143 : index
    %230 = vector.load %arg8[%c0_213, %c143] : memref<16x512xbf16, #tpu.memory_space<vmem>>, vector<16x256xbf16>
    %c0_214 = arith.constant 0 : index
    %c142 = arith.constant 142 : index
    %231 = vector.load %arg8[%c0_214, %c142] : memref<16x512xbf16, #tpu.memory_space<vmem>>, vector<16x256xbf16>
    %c0_215 = arith.constant 0 : index
    %c141 = arith.constant 141 : index
    %232 = vector.load %arg8[%c0_215, %c141] : memref<16x512xbf16, #tpu.memory_space<vmem>>, vector<16x256xbf16>
    %c0_216 = arith.constant 0 : index
    %c140 = arith.constant 140 : index
    %233 = vector.load %arg8[%c0_216, %c140] : memref<16x512xbf16, #tpu.memory_space<vmem>>, vector<16x256xbf16>
    %c0_217 = arith.constant 0 : index
    %c139 = arith.constant 139 : index
    %234 = vector.load %arg8[%c0_217, %c139] : memref<16x512xbf16, #tpu.memory_space<vmem>>, vector<16x256xbf16>
    %c0_218 = arith.constant 0 : index
    %c138 = arith.constant 138 : index
    %235 = vector.load %arg8[%c0_218, %c138] : memref<16x512xbf16, #tpu.memory_space<vmem>>, vector<16x256xbf16>
    %c0_219 = arith.constant 0 : index
    %c137 = arith.constant 137 : index
    %236 = vector.load %arg8[%c0_219, %c137] : memref<16x512xbf16, #tpu.memory_space<vmem>>, vector<16x256xbf16>
    %c0_220 = arith.constant 0 : index
    %c136 = arith.constant 136 : index
    %237 = vector.load %arg8[%c0_220, %c136] : memref<16x512xbf16, #tpu.memory_space<vmem>>, vector<16x256xbf16>
    %c0_221 = arith.constant 0 : index
    %c128 = arith.constant 128 : index
    %238 = vector.load %arg8[%c0_221, %c128] : memref<16x512xbf16, #tpu.memory_space<vmem>>, vector<16x256xbf16>
    %c0_222 = arith.constant 0 : index
    %c127 = arith.constant 127 : index
    %239 = vector.load %arg8[%c0_222, %c127] : memref<16x512xbf16, #tpu.memory_space<vmem>>, vector<16x256xbf16>
    %c0_223 = arith.constant 0 : index
    %c126 = arith.constant 126 : index
    %240 = vector.load %arg8[%c0_223, %c126] : memref<16x512xbf16, #tpu.memory_space<vmem>>, vector<16x256xbf16>
    %c0_224 = arith.constant 0 : index
    %c125 = arith.constant 125 : index
    %241 = vector.load %arg8[%c0_224, %c125] : memref<16x512xbf16, #tpu.memory_space<vmem>>, vector<16x256xbf16>
    %c0_225 = arith.constant 0 : index
    %c124 = arith.constant 124 : index
    %242 = vector.load %arg8[%c0_225, %c124] : memref<16x512xbf16, #tpu.memory_space<vmem>>, vector<16x256xbf16>
    %c0_226 = arith.constant 0 : index
    %c123 = arith.constant 123 : index
    %243 = vector.load %arg8[%c0_226, %c123] : memref<16x512xbf16, #tpu.memory_space<vmem>>, vector<16x256xbf16>
    %c0_227 = arith.constant 0 : index
    %c122 = arith.constant 122 : index
    %244 = vector.load %arg8[%c0_227, %c122] : memref<16x512xbf16, #tpu.memory_space<vmem>>, vector<16x256xbf16>
    %c0_228 = arith.constant 0 : index
    %c121 = arith.constant 121 : index
    %245 = vector.load %arg8[%c0_228, %c121] : memref<16x512xbf16, #tpu.memory_space<vmem>>, vector<16x256xbf16>
    %246 = tpu.concatenate %230, %231, %232, %233, %234, %235, %236, %237, %238, %239, %240, %241, %242, %243, %244, %245 in 0 : vector<16x256xbf16>, vector<16x256xbf16>, vector<16x256xbf16>, vector<16x256xbf16>, vector<16x256xbf16>, vector<16x256xbf16>, vector<16x256xbf16>, vector<16x256xbf16>, vector<16x256xbf16>, vector<16x256xbf16>, vector<16x256xbf16>, vector<16x256xbf16>, vector<16x256xbf16>, vector<16x256xbf16>, vector<16x256xbf16>, vector<16x256xbf16> -> vector<256x256xbf16>
    %c0_229 = arith.constant 0 : index
    %c1792 = arith.constant 1792 : index
    %247 = vector.load %arg4[%c0_229, %c1792] : memref<16x2176xbf16, #tpu.memory_space<vmem>>, vector<3x256xbf16>
    %cst_230 = arith.constant dense<0.000000e+00> : vector<3x256xf32>
    %248 = tpu.matmul %247, %246, %cst_230 {dimension_numbers = #tpu.dot_dimension_numbers<[1], [0], [0], [1], [0, 0, 1, 1], [], []>} : vector<3x256xbf16>, vector<256x256xbf16>, vector<3x256xf32> -> vector<3x256xf32>
    %249 = arith.addf %229, %248 : vector<3x256xf32>
    %c0_231 = arith.constant 0 : index
    %c120 = arith.constant 120 : index
    %250 = vector.load %arg8[%c0_231, %c120] : memref<16x512xbf16, #tpu.memory_space<vmem>>, vector<16x256xbf16>
    %c0_232 = arith.constant 0 : index
    %c2048 = arith.constant 2048 : index
    %251 = vector.load %arg4[%c0_232, %c2048] : memref<16x2176xbf16, #tpu.memory_space<vmem>>, vector<3x16xbf16>
    %cst_233 = arith.constant dense<0.000000e+00> : vector<3x256xf32>
    %252 = tpu.matmul %251, %250, %cst_233 {dimension_numbers = #tpu.dot_dimension_numbers<[1], [0], [0], [1], [0, 0, 1, 1], [], []>} : vector<3x16xbf16>, vector<16x256xbf16>, vector<3x256xf32> -> vector<3x256xf32>
    %253 = arith.addf %249, %252 : vector<3x256xf32>
    %c0_234 = arith.constant 0 : index
    %c5 = arith.constant 5 : index
    %254 = vector.load %arg5[%c0_234, %c5] : memref<16x128xf32, #tpu.memory_space<vmem>>, vector<3x1xf32>
    %255 = vector.broadcast %254 : vector<3x1xf32> to vector<3x256xf32>
    %256 = arith.addf %253, %255 : vector<3x256xf32>
    %c0_235 = arith.constant 0 : index
    %c0_236 = arith.constant 0 : index
    %c0_237 = arith.constant 0 : index
    %257 = vector.load %arg6[%c0_235, %c0_236, %c0_237] : memref<1x3x256xf32, #tpu.memory_space<vmem>>, vector<1x3x256xf32>
    %258 = vector.shape_cast %257 : vector<1x3x256xf32> to vector<3x256xf32>
    %259 = vector.shape_cast %256 : vector<3x256xf32> to vector<1x3x256xf32>
    tpu.vector_store %arg6[%c0_235, %c0_236, %c0_237], %259 {strides = array<i32>} : memref<1x3x256xf32, #tpu.memory_space<vmem>>, vector<1x3x256xf32>,
    return
  }
  func.func @transform_0(%arg0: i32) -> i32 {
    %c0_i32 = arith.constant 0 : i32
    %c0_i32_0 = arith.constant 0 : i32
    return %c0_i32 : i32
  }
  func.func @transform_1(%arg0: i32) -> (i32, i32, i32) {
    %c0_i32 = arith.constant 0 : i32
    %c0_i32_0 = arith.constant 0 : i32
    %c0_i32_1 = arith.constant 0 : i32
    return %arg0, %c0_i32, %c0_i32_0 : i32, i32, i32
  }
  func.func @transform_2(%arg0: i32) -> (i32, i32) {
    %c0_i32 = arith.constant 0 : i32
    %c0_i32_0 = arith.constant 0 : i32
    %c0_i32_1 = arith.constant 0 : i32
    return %c0_i32, %c0_i32_0 : i32, i32
  }
  func.func @transform_3(%arg0: i32) -> (i32, i32) {
    %c0_i32 = arith.constant 0 : i32
    %c0_i32_0 = arith.constant 0 : i32
    %c0_i32_1 = arith.constant 0 : i32
    return %c0_i32, %c0_i32_0 : i32, i32
  }
  func.func @transform_4(%arg0: i32) -> (i32, i32) {
    %c0_i32 = arith.constant 0 : i32
    %c0_i32_0 = arith.constant 0 : i32
    %c0_i32_1 = arith.constant 0 : i32
    return %c0_i32, %c0_i32_0 : i32, i32
  }
  func.func @transform_5(%arg0: i32) -> (i32, i32, i32) {
    %c0_i32 = arith.constant 0 : i32
    %c0_i32_0 = arith.constant 0 : i32
    %c0_i32_1 = arith.constant 0 : i32
    return %arg0, %c0_i32, %c0_i32_0 : i32, i32, i32
  }
}

</mosaic_0001>

<llo_original>
// kernel: fsrcnn_forward.1
$region0: #{fsrcnn_forward.1}
  #allocation0 [shape = 'u32[]', space=smem, size = 0x4, offset = 0x4, fixed_abs, tag = 'smem constant byte address 0x4 - core index']
  #allocation1 [shape = 'u32[144,128]{1,0:T(1,128)}', space=vmem, size = 0x12000, scoped, tag = 'internal scratch']
  #allocation2 [shape = 'bf16[16,384]{1,0:T(16,128)(2,1)}', space=vmem, size = 0x3000, scoped, tag = 'scratch operand']
  #allocation3 [shape = 'bf16[16,512]{1,0:T(16,128)(2,1)}', space=vmem, size = 0x4000, scoped, tag = 'scratch operand']
  %s0 = inlined_call_operand.hbm [shape: f32[5], index: 0, kind: input, shape index: {}]
  %s1 = inlined_call_operand.hbm [shape: bf16[2,8,384], index: 1, kind: input, shape index: {}]
  %s2 = inlined_call_operand.hbm [shape: f32[1,256], index: 2, kind: input, shape index: {}]
  %s3 = inlined_call_operand.hbm [shape: bf16[16,2176], index: 3, kind: input, shape index: {}]
  %s4 = inlined_call_operand.hbm [shape: f32[16,128], index: 4, kind: input, shape index: {}]
  %s5 = inlined_call_operand.hbm [shape: f32[2,3,256], index: 5, kind: output, shape index: {}]
  %s6 = sld [smem:[#allocation0]]
  $region73: #{fsrcnn_forward.1} parent=0
    _
  %s8 = ssub.s32 1, %s6
  %s9 = scalar_select 0, %s8, %s6
  $region1: #{fsrcnn_forward.1} parent=0
    #allocation4 [shape = 'u8[512]{0}', space=smem, size = 0x200, scoped, tag = 'input window, operand 0, single buffered']
    #allocation5 [shape = 's32[2]{0}', space=sflag, size = 0x8, scoped, tag = 'scoped memory for fsrcnn_forward.1']
    #allocation6 [shape = 's32[2]{0}', space=sflag, size = 0x8, scoped, tag = 'scoped memory for fsrcnn_forward.1']
    #allocation7 [shape = 's32[2]{0}', space=sflag, size = 0x8, scoped, tag = 'scoped memory for fsrcnn_forward.1']
    #allocation8 [shape = 'u8[12288]{0}', space=vmem, size = 0x3000, scoped, tag = 'input window, operand 1']
    #allocation9 [shape = 'u8[1024]{0}', space=vmem, size = 0x400, scoped, tag = 'input window, operand 2, single buffered']
    #allocation10 [shape = 's32[1]{0}', space=sflag, size = 0x4, scoped, tag = 'scoped memory for fsrcnn_forward.1']
    #allocation11 [shape = 'u8[69632]{0}', space=vmem, size = 0x11000, scoped, tag = 'input window, operand 3, single buffered']
    #allocation12 [shape = 'u8[8192]{0}', space=vmem, size = 0x2000, scoped, tag = 'input window, operand 4, single buffered']
    #allocation13 [shape = 's32[1]{0}', space=sflag, size = 0x4, scoped, tag = 'scoped memory for fsrcnn_forward.1']
    #allocation14 [shape = 'u8[8192]{0}', space=vmem, size = 0x2000, scoped, tag = 'output window, operand 0']
    %10 = vsyncpa [#allocation7], 0
    %11 = vsyncpa [#allocation5], 0
    %s12 = scalar_lea.sflag [#allocation5], 1
    %13 = vsyncpa %s12, 0
    %14 = vsyncpa [#allocation10], 0
    %15 = vsyncpa [#allocation13], 0
    %16 = vsyncpa [#allocation6], 0
    %s17 = scalar_lea.sflag [#allocation6], 1
    %18 = vsyncpa %s17, 0
    loop: start=0, step=1, limit=4
    $region2: #{fsrcnn_forward.1} parent=1 // loop_pre_header
      _
    $region3: #{fsrcnn_forward.1} parent=1 // loop_header
      %s20 = sphi 0, %s24
      %p21 = scmp.ge.s32.totalorder %s20, 4
      %s28 = sphi 0, %s28
      %s30 = sphi 0, %s28
      %s31 = sphi 0, %s30
      %s45 = sphi 0, %s31
      %s51 = sphi 0, %s53
      %s54 = sphi 0, %s51
      %s55 = sphi 0, %s54
      %s71 = sphi 0, %s55
      %s75 = sphi 0, %s75
      %s77 = sphi 0, %s75
      %s78 = sphi 0, %s77
      %s92 = sphi 0, %s78
      %s96 = sphi 0, %s96
      %s98 = sphi 0, %s96
      %s99 = sphi 0, %s98
      %s113 = sphi 0, %s99
      %s117 = sphi 0, %s117
      %s119 = sphi 0, %s117
      %s120 = sphi 0, %s119
      %s134 = sphi 0, %s120
      %s140 = sphi 0, %s142
      %s143 = sphi 0, %s140
      %s144 = sphi 0, %s143
      %s160 = sphi 0, %s144
    $region4: #{fsrcnn_forward.1} parent=1 // loop_header_branch
      %23 = sbr.rel (%p21) target = $region8
    $region5: #{fsrcnn_forward.1} parent=1 // loop_body
      %s25 = ssub.s32 %s20, 1
      %s26 = ssub.s32 %s20, 2
      %s27 = sadd.s32 %s20, 1
      %s29 = sadd.s32 %s28, 1
      %p32 = scmp.eq.s32.totalorder %s20, 1
      %p33 = scmp.ne.s32.totalorder %s28, %s30
      %p34 = scmp.eq.s32.totalorder %s20, 0
      %p35 = por %p33, %p34
      %p36 = scmp.ne.s32.totalorder %s28, %s30
      %p37 = scmp.eq.s32.totalorder %s25, 1
      %p38 = por %p36, %p37
      %p39 = scmp.ne.s32.totalorder %s30, %s31
      %p40 = scmp.eq.s32.totalorder %s25, 0
      %p41 = por %p39, %p40
      %p42 = scmp.ne.s32.totalorder %s30, %s31
      %p43 = scmp.eq.s32.totalorder %s26, 1
      %p44 = por %p42, %p43
      %p46 = scmp.ne.s32.totalorder %s31, %s45
      %p47 = scmp.eq.s32.totalorder %s26, 0
      %p48 = por %p46, %p47
      %s49 = ssub.s32 %s20, %s27
      %p50 = scmp.eq.s32.totalorder %s49, 0
      %s52 = sadd.s32 %s51, 1
      %s53 = scalar_select %p50, %s51, %s52
      %p56 = pneg %p50
      %p57 = scmp.eq.s32.totalorder %s20, 1
      %p58 = por %p56, %p57
      %p59 = scmp.ne.s32.totalorder %s51, %s54
      %p60 = scmp.eq.s32.totalorder %s20, 0
      %p61 = por %p59, %p60
      %p62 = scmp.ne.s32.totalorder %s51, %s54
      %p63 = scmp.eq.s32.totalorder %s25, 1
      %p64 = por %p62, %p63
      %p65 = scmp.ne.s32.totalorder %s54, %s55
      %p66 = scmp.eq.s32.totalorder %s25, 0
      %p67 = por %p65, %p66
      %p68 = scmp.ne.s32.totalorder %s54, %s55
      %p69 = scmp.eq.s32.totalorder %s26, 1
      %p70 = por %p68, %p69
      %p72 = scmp.ne.s32.totalorder %s55, %s71
      %p73 = scmp.eq.s32.totalorder %s26, 0
      %p74 = por %p72, %p73
      %s76 = sadd.s32 %s75, 1
      %p79 = scmp.eq.s32.totalorder %s20, 1
      %p80 = scmp.ne.s32.totalorder %s75, %s77
      %p81 = scmp.eq.s32.totalorder %s20, 0
      %p82 = por %p80, %p81
      %p83 = scmp.ne.s32.totalorder %s75, %s77
      %p84 = scmp.eq.s32.totalorder %s25, 1
      %p85 = por %p83, %p84
      %p86 = scmp.ne.s32.totalorder %s77, %s78
      %p87 = scmp.eq.s32.totalorder %s25, 0
      %p88 = por %p86, %p87
      %p89 = scmp.ne.s32.totalorder %s77, %s78
      %p90 = scmp.eq.s32.totalorder %s26, 1
      %p91 = por %p89, %p90
      %p93 = scmp.ne.s32.totalorder %s78, %s92
      %p94 = scmp.eq.s32.totalorder %s26, 0
      %p95 = por %p93, %p94
      %s97 = sadd.s32 %s96, 1
      %p100 = scmp.eq.s32.totalorder %s20, 1
      %p101 = scmp.ne.s32.totalorder %s96, %s98
      %p102 = scmp.eq.s32.totalorder %s20, 0
      %p103 = por %p101, %p102
      %p104 = scmp.ne.s32.totalorder %s96, %s98
      %p105 = scmp.eq.s32.totalorder %s25, 1
      %p106 = por %p104, %p105
      %p107 = scmp.ne.s32.totalorder %s98, %s99
      %p108 = scmp.eq.s32.totalorder %s25, 0
      %p109 = por %p107, %p108
      %p110 = scmp.ne.s32.totalorder %s98, %s99
      %p111 = scmp.eq.s32.totalorder %s26, 1
      %p112 = por %p110, %p111
      %p114 = scmp.ne.s32.totalorder %s99, %s113
      %p115 = scmp.eq.s32.totalorder %s26, 0
      %p116 = por %p114, %p115
      %s118 = sadd.s32 %s117, 1
      %p121 = scmp.eq.s32.totalorder %s20, 1
      %p122 = scmp.ne.s32.totalorder %s117, %s119
      %p123 = scmp.eq.s32.totalorder %s20, 0
      %p124 = por %p122, %p123
      %p125 = scmp.ne.s32.totalorder %s117, %s119
      %p126 = scmp.eq.s32.totalorder %s25, 1
      %p127 = por %p125, %p126
      %p128 = scmp.ne.s32.totalorder %s119, %s120
      %p129 = scmp.eq.s32.totalorder %s25, 0
      %p130 = por %p128, %p129
      %p131 = scmp.ne.s32.totalorder %s119, %s120
      %p132 = scmp.eq.s32.totalorder %s26, 1
      %p133 = por %p131, %p132
      %p135 = scmp.ne.s32.totalorder %s120, %s134
      %p136 = scmp.eq.s32.totalorder %s26, 0
      %p137 = por %p135, %p136
      %s138 = ssub.s32 %s20, %s27
      %p139 = scmp.eq.s32.totalorder %s138, 0
      %s141 = sadd.s32 %s140, 1
      %s142 = scalar_select %p139, %s140, %s141
      %p145 = pneg %p139
      %p146 = scmp.eq.s32.totalorder %s20, 1
      %p147 = por %p145, %p146
      %p148 = scmp.ne.s32.totalorder %s140, %s143
      %p149 = scmp.eq.s32.totalorder %s20, 0
      %p150 = por %p148, %p149
      %p151 = scmp.ne.s32.totalorder %s140, %s143
      %p152 = scmp.eq.s32.totalorder %s25, 1
      %p153 = por %p151, %p152
      %p154 = scmp.ne.s32.totalorder %s143, %s144
      %p155 = scmp.eq.s32.totalorder %s25, 0
      %p156 = por %p154, %p155
      %p157 = scmp.ne.s32.totalorder %s143, %s144
      %p158 = scmp.eq.s32.totalorder %s26, 1
      %p159 = por %p157, %p158
      %p161 = scmp.ne.s32.totalorder %s144, %s160
      %p162 = scmp.eq.s32.totalorder %s26, 0
      %p163 = por %p161, %p162
      %p164 = scmp.le.s32.totalorder 1, %s20
      %p165 = scmp.lt.s32.totalorder %s20, 3
      %p166 = pnand %p164, %p165
      %p167 = pneg %p166
      // Predicated region
      $region9: #{fsrcnn_forward.1} parent=5 // pred_check
        _
      $region10: #{fsrcnn_forward.1} parent=5 // pred_check_branch
        %169 = sbr.rel (%p166) target = $region12
      $region11: #{fsrcnn_forward.1} parent=5 // pred_region
        %s170 = ssub.s32 %s20, 1
        // Predicated region
        $region13: #{fsrcnn_forward.1} parent=11 // pred_check
          %p171 = pneg %p41
        $region14: #{fsrcnn_forward.1} parent=11 // pred_check_branch
          %173 = sbr.rel (%p171) target = $region16
        $region15: #{fsrcnn_forward.1} parent=11 // pred_region
          %s175 = ssub.s32 16, 16
          %176 = vsyncadd [#allocation7], %s175
          %179 = dma.hbm_to_smem %s0, 16, [#allocation4], [#allocation7]
        $region16: #{fsrcnn_forward.1} parent=11 // pred_fallthru
          _
        // Predicated region
        $region17: #{fsrcnn_forward.1} parent=11 // pred_check
          %p180 = pneg %p88
        $region18: #{fsrcnn_forward.1} parent=11 // pred_check_branch
          %182 = sbr.rel (%p180) target = $region20
        $region19: #{fsrcnn_forward.1} parent=11 // pred_region
          %s184 = ssub.s32 32, 32
          %185 = vsyncadd [#allocation10], %s184
          %s187 = sshll.u32 [#allocation9], 4
          %s188 = int_to_ptr.vmem [resolvable:$true] %s187
          %190 = dma.hbm_to_vmem [thread:$0]  %s2, 32, %s188, [#allocation10]
        $region20: #{fsrcnn_forward.1} parent=11 // pred_fallthru
          _
        // Predicated region
        $region21: #{fsrcnn_forward.1} parent=11 // pred_check
          %p191 = pneg %p109
        $region22: #{fsrcnn_forward.1} parent=11 // pred_check_branch
          %193 = sbr.rel (%p191) target = $region24
        $region23: #{fsrcnn_forward.1} parent=11 // pred_region
          %s195 = ssub.s32 2176, 2176
          %196 = vsyncadd [#allocation10], %s195
          %s197 = sshll.u32 [#allocation11], 4
          %s198 = int_to_ptr.vmem [resolvable:$true] %s197
          %203 = dma.hbm_to_vmem [thread:$0]  %s3, 2176, %s198, [#allocation10], 1088, 1088, 68
        $region24: #{fsrcnn_forward.1} parent=11 // pred_fallthru
          _
        // Predicated region
        $region25: #{fsrcnn_forward.1} parent=11 // pred_check
          %p204 = pneg %p130
        $region26: #{fsrcnn_forward.1} parent=11 // pred_check_branch
          %206 = sbr.rel (%p204) target = $region28
        $region27: #{fsrcnn_forward.1} parent=11 // pred_region
          %s208 = ssub.s32 256, 256
          %209 = vsyncadd [#allocation13], %s208
          %s210 = sshll.u32 [#allocation12], 4
          %s211 = int_to_ptr.vmem [resolvable:$true] %s210
          %216 = dma.hbm_to_vmem [thread:$0]  %s4, 256, %s211, [#allocation13], 128, 128, 8
        $region28: #{fsrcnn_forward.1} parent=11 // pred_fallthru
          _
      $region12: #{fsrcnn_forward.1} parent=5 // pred_fallthru
        _
      %p217 = scmp.lt.s32.totalorder %s20, 2
      // Predicated region
      $region29: #{fsrcnn_forward.1} parent=5 // pred_check
        %p218 = pneg %p217
      $region30: #{fsrcnn_forward.1} parent=5 // pred_check_branch
        %220 = sbr.rel (%p218) target = $region32
      $region31: #{fsrcnn_forward.1} parent=5 // pred_region
        // Predicated region
        $region33: #{fsrcnn_forward.1} parent=31 // pred_check
          %p221 = pneg %p61
        $region34: #{fsrcnn_forward.1} parent=31 // pred_check_branch
          %223 = sbr.rel (%p221) target = $region36
        $region35: #{fsrcnn_forward.1} parent=31 // pred_region
          %s224 = sand.u32 %s51, 1
          %s225 = scalar_lea.sflag [#allocation5], %s224
          %s226 = sand.u32 %s51, 1
          %s227 = smul.addr %s226, 12
          %s228 = scalar_lea.vmem [#allocation8], %s227
          %s230 = ssub.s32 192, 192
          %231 = vsyncadd %s225, %s230
          %s232 = smul.addr %s20, 3
          %s233 = smul.addr %s232, 64
          %s234 = scalar_lea.hbm %s1, %s233
          %s236 = sshll.u32 %s228, 4
          %s237 = int_to_ptr.vmem [resolvable:$true] %s236
          %239 = dma.hbm_to_vmem [thread:$0]  %s234, 192, %s237, %s225
        $region36: #{fsrcnn_forward.1} parent=31 // pred_fallthru
          _
      $region32: #{fsrcnn_forward.1} parent=5 // pred_fallthru
        _
      %p240 = scmp.le.s32.totalorder 1, %s20
      %p241 = scmp.lt.s32.totalorder %s20, 3
      %p242 = pnand %p240, %p241
      %p243 = pneg %p242
      // Predicated region
      $region37: #{fsrcnn_forward.1} parent=5 // pred_check
        _
      $region38: #{fsrcnn_forward.1} parent=5 // pred_check_branch
        %245 = sbr.rel (%p242) target = $region40
      $region39: #{fsrcnn_forward.1} parent=5 // pred_region
        %s246 = ssub.s32 %s20, 1
        // Predicated region
        $region41: #{fsrcnn_forward.1} parent=39 // pred_check
          %p247 = pneg %p41
        $region42: #{fsrcnn_forward.1} parent=39 // pred_check_branch
          %249 = sbr.rel (%p247) target = $region44
        $region43: #{fsrcnn_forward.1} parent=39 // pred_region
          %250 = dma.done [#allocation7], 16
        $region44: #{fsrcnn_forward.1} parent=39 // pred_fallthru
          _
        %s251 = sand.u32 %s54, 1
        %s252 = scalar_lea.sflag [#allocation5], %s251
        %s253 = sand.u32 %s54, 1
        %s254 = smul.addr %s253, 12
        %s255 = scalar_lea.vmem [#allocation8], %s254
        // Predicated region
        $region45: #{fsrcnn_forward.1} parent=39 // pred_check
          %p256 = pneg %p67
        $region46: #{fsrcnn_forward.1} parent=39 // pred_check_branch
          %258 = sbr.rel (%p256) target = $region48
        $region47: #{fsrcnn_forward.1} parent=39 // pred_region
          %259 = dma.done %s252, 192
        $region48: #{fsrcnn_forward.1} parent=39 // pred_fallthru
          _
        // Predicated region
        $region49: #{fsrcnn_forward.1} parent=39 // pred_check
          %p260 = pneg %p88
        $region50: #{fsrcnn_forward.1} parent=39 // pred_check_branch
          %262 = sbr.rel (%p260) target = $region52
        $region51: #{fsrcnn_forward.1} parent=39 // pred_region
          %263 = dma.done [#allocation10], 32
        $region52: #{fsrcnn_forward.1} parent=39 // pred_fallthru
          _
        // Predicated region
        $region53: #{fsrcnn_forward.1} parent=39 // pred_check
          %p264 = pneg %p109
        $region54: #{fsrcnn_forward.1} parent=39 // pred_check_branch
          %266 = sbr.rel (%p264) target = $region56
        $region55: #{fsrcnn_forward.1} parent=39 // pred_region
          %267 = dma.done [#allocation10], 2176
        $region56: #{fsrcnn_forward.1} parent=39 // pred_fallthru
          _
        // Predicated region
        $region57: #{fsrcnn_forward.1} parent=39 // pred_check
          %p268 = pneg %p130
        $region58: #{fsrcnn_forward.1} parent=39 // pred_check_branch
          %270 = sbr.rel (%p268) target = $region60
        $region59: #{fsrcnn_forward.1} parent=39 // pred_region
          %271 = dma.done [#allocation13], 256
        $region60: #{fsrcnn_forward.1} parent=39 // pred_fallthru
          _
        %272 = sfence
        %p273 = pneg %p41
        %p274 = pneg %p38
        %s275 = sand.u32 %s54, 1
        %s276 = scalar_lea.sflag [#allocation5], %s275
        %s277 = sand.u32 %s54, 1
        %s278 = smul.addr %s277, 12
        %s279 = scalar_lea.vmem [#allocation8], %s278
        %p280 = pneg %p67
        %p281 = pneg %p64
        %p282 = pneg %p88
        %p283 = pneg %p85
        %p284 = pneg %p109
        %p285 = pneg %p106
        %p286 = pneg %p130
        %p287 = pneg %p127
        %p288 = pneg %p156
        %p289 = pneg %p153
        %s290 = sand.u32 %s143, 1
        %s291 = scalar_lea.sflag [#allocation6], %s290
        %s292 = sand.u32 %s143, 1
        %s293 = smul.addr %s292, 8
        %s294 = scalar_lea.vmem [#allocation14], %s293
        %298 = vst [vmem:[#allocation2 + $0x10] sm:$0xff] 0
        %299 = vst [vmem:[#allocation3] sm:$0xff] 0
        %300 = vst [vmem:[#allocation3 + $0x8] sm:$0xff] 0
        %v301 = vld [vmem:[%s255] sm:$0xff]
        %v302 = vld [vmem:[%s255] sm:$0xff]
        %v303 = vld [vmem:[%s255 + $0x8] sm:$0xf]
        %v305 = vunpack.c.l.b16 %v301
        %v306 = vunpack.c.h.b16 %v301
        %v307 = vpack.c.b16 %v305, %v305
        %v308 = vpack.c.b16 %v306, %v306
        %v311 = vunpack.c.l.b16 %v302
        %v312 = vunpack.c.h.b16 %v302
        %v313 = vunpack.c.l.b16 %v303
        %v314 = vpack.c.b16 %v311, %v311
        %v315 = vpack.c.b16 %v312, %v312
        %v316 = vpack.c.b16 %v313, %v313
        %317 = vrot.lane.b32.xlu0 %v314, 127
        %v318 = vpop.permute.xlu0 %317
        %319 = vrot.lane.b32.xlu0 %v315, 127
        %v320 = vpop.permute.xlu0 %319
        %321 = vrot.lane.b32.xlu0 %v316, 127
        %v322 = vpop.permute.xlu0 %321
        %vm323 = vcmask 1039360
        %v324 = vsel %vm323, %v318, %v320
        %v325 = vsel %vm323, %v320, %v322
        %326 = vrot.lane.b32.xlu0 %v314, 126
        %v327 = vpop.permute.xlu0 %326
        %328 = vrot.lane.b32.xlu0 %v315, 126
        %v329 = vpop.permute.xlu0 %328
        %330 = vrot.lane.b32.xlu0 %v316, 126
        %v331 = vpop.permute.xlu0 %330
        %vm332 = vcmask 1031168
        %v333 = vsel %vm332, %v327, %v329
        %v334 = vsel %vm332, %v329, %v331
        %335 = vrot.lane.b32.xlu0 %v314, 125
        %v336 = vpop.permute.xlu0 %335
        %337 = vrot.lane.b32.xlu0 %v315, 125
        %v338 = vpop.permute.xlu0 %337
        %339 = vrot.lane.b32.xlu0 %v316, 125
        %v340 = vpop.permute.xlu0 %339
        %vm341 = vcmask 1022976
        %v342 = vsel %vm341, %v336, %v338
        %v343 = vsel %vm341, %v338, %v340
        %344 = vrot.lane.b32.xlu0 %v314, 124
        %v345 = vpop.permute.xlu0 %344
        %346 = vrot.lane.b32.xlu0 %v315, 124
        %v347 = vpop.permute.xlu0 %346
        %348 = vrot.lane.b32.xlu0 %v316, 124
        %v349 = vpop.permute.xlu0 %348
        %vm350 = vcmask 1014784
        %v351 = vsel %vm350, %v345, %v347
        %v352 = vsel %vm350, %v347, %v349
        %353 = vrot.lane.b32.xlu0 %v314, 112
        %v354 = vpop.permute.xlu0 %353
        %355 = vrot.lane.b32.xlu0 %v315, 112
        %v356 = vpop.permute.xlu0 %355
        %357 = vrot.lane.b32.xlu0 %v316, 112
        %v358 = vpop.permute.xlu0 %357
        %vm359 = vcmask 916480
        %v360 = vsel %vm359, %v354, %v356
        %v361 = vsel %vm359, %v356, %v358
        %362 = vrot.lane.b32.xlu0 %v314, 111
        %v363 = vpop.permute.xlu0 %362
        %364 = vrot.lane.b32.xlu0 %v315, 111
        %v365 = vpop.permute.xlu0 %364
        %366 = vrot.lane.b32.xlu0 %v316, 111
        %v367 = vpop.permute.xlu0 %366
        %vm368 = vcmask 908288
        %v369 = vsel %vm368, %v363, %v365
        %v370 = vsel %vm368, %v365, %v367
        %371 = vrot.lane.b32.xlu0 %v314, 110
        %v372 = vpop.permute.xlu0 %371
        %373 = vrot.lane.b32.xlu0 %v315, 110
        %v374 = vpop.permute.xlu0 %373
        %375 = vrot.lane.b32.xlu0 %v316, 110
        %v376 = vpop.permute.xlu0 %375
        %vm377 = vcmask 900096
        %v378 = vsel %vm377, %v372, %v374
        %v379 = vsel %vm377, %v374, %v376
        %380 = vrot.lane.b32.xlu0 %v314, 109
        %v381 = vpop.permute.xlu0 %380
        %382 = vrot.lane.b32.xlu0 %v315, 109
        %v383 = vpop.permute.xlu0 %382
        %384 = vrot.lane.b32.xlu0 %v316, 109
        %v385 = vpop.permute.xlu0 %384
        %vm386 = vcmask 891904
        %v387 = vsel %vm386, %v381, %v383
        %v388 = vsel %vm386, %v383, %v385
        %389 = vrot.lane.b32.xlu0 %v314, 108
        %v390 = vpop.permute.xlu0 %389
        %391 = vrot.lane.b32.xlu0 %v315, 108
        %v392 = vpop.permute.xlu0 %391
        %393 = vrot.lane.b32.xlu0 %v316, 108
        %v394 = vpop.permute.xlu0 %393
        %vm395 = vcmask 883712
        %v396 = vsel %vm395, %v390, %v392
        %v397 = vsel %vm395, %v392, %v394
        %398 = vrot.lane.b32.xlu0 %v314, 96
        %v399 = vpop.permute.xlu0 %398
        %400 = vrot.lane.b32.xlu0 %v315, 96
        %v401 = vpop.permute.xlu0 %400
        %402 = vrot.lane.b32.xlu0 %v316, 96
        %v403 = vpop.permute.xlu0 %402
        %vm404 = vcmask 785408
        %v405 = vsel %vm404, %v399, %v401
        %v406 = vsel %vm404, %v401, %v403
        %407 = vrot.lane.b32.xlu0 %v314, 95
        %v408 = vpop.permute.xlu0 %407
        %409 = vrot.lane.b32.xlu0 %v315, 95
        %v410 = vpop.permute.xlu0 %409
        %411 = vrot.lane.b32.xlu0 %v316, 95
        %v412 = vpop.permute.xlu0 %411
        %vm413 = vcmask 777216
        %v414 = vsel %vm413, %v408, %v410
        %v415 = vsel %vm413, %v410, %v412
        %416 = vrot.lane.b32.xlu0 %v314, 94
        %v417 = vpop.permute.xlu0 %416
        %418 = vrot.lane.b32.xlu0 %v315, 94
        %v419 = vpop.permute.xlu0 %418
        %420 = vrot.lane.b32.xlu0 %v316, 94
        %v421 = vpop.permute.xlu0 %420
        %vm422 = vcmask 769024
        %v423 = vsel %vm422, %v417, %v419
        %v424 = vsel %vm422, %v419, %v421
        %425 = vrot.lane.b32.xlu0 %v314, 93
        %v426 = vpop.permute.xlu0 %425
        %427 = vrot.lane.b32.xlu0 %v315, 93
        %v428 = vpop.permute.xlu0 %427
        %429 = vrot.lane.b32.xlu0 %v316, 93
        %v430 = vpop.permute.xlu0 %429
        %vm431 = vcmask 760832
        %v432 = vsel %vm431, %v426, %v428
        %v433 = vsel %vm431, %v428, %v430
        %434 = vrot.lane.b32.xlu0 %v314, 92
        %v435 = vpop.permute.xlu0 %434
        %436 = vrot.lane.b32.xlu0 %v315, 92
        %v437 = vpop.permute.xlu0 %436
        %438 = vrot.lane.b32.xlu0 %v316, 92
        %v439 = vpop.permute.xlu0 %438
        %vm440 = vcmask 752640
        %v441 = vsel %vm440, %v435, %v437
        %v442 = vsel %vm440, %v437, %v439
        %443 = vrot.lane.b32.xlu0 %v314, 80
        %v444 = vpop.permute.xlu0 %443
        %445 = vrot.lane.b32.xlu0 %v315, 80
        %v446 = vpop.permute.xlu0 %445
        %447 = vrot.lane.b32.xlu0 %v316, 80
        %v448 = vpop.permute.xlu0 %447
        %vm449 = vcmask 654336
        %v450 = vsel %vm449, %v444, %v446
        %v451 = vsel %vm449, %v446, %v448
        %vm452 = vcmask 1043456
        %v455 = vsel %vm452, %v307, %v324
        %v459 = vsel %vm452, %v308, %v325
        %v463 = vsel %vm452, %v333, %v342
        %v467 = vsel %vm452, %v334, %v343
        %v471 = vsel %vm452, %v351, %v360
        %v475 = vsel %vm452, %v352, %v361
        %v479 = vsel %vm452, %v369, %v378
        %v483 = vsel %vm452, %v370, %v379
        %v487 = vsel %vm452, %v387, %v396
        %v491 = vsel %vm452, %v388, %v397
        %v495 = vsel %vm452, %v405, %v414
        %v499 = vsel %vm452, %v406, %v415
        %v503 = vsel %vm452, %v423, %v432
        %v507 = vsel %vm452, %v424, %v433
        %v511 = vsel %vm452, %v441, %v450
        %v515 = vsel %vm452, %v442, %v451
        %517 = vrot.lane.b32.xlu0 %v314, 113
        %v518 = vpop.permute.xlu0 %517
        %519 = vrot.lane.b32.xlu0 %v315, 113
        %v520 = vpop.permute.xlu0 %519
        %521 = vrot.lane.b32.xlu0 %v316, 113
        %v522 = vpop.permute.xlu0 %521
        %vm523 = vcmask 924672
        %v524 = vsel %vm523, %v518, %v520
        %v525 = vsel %vm523, %v520, %v522
        %v527 = vsel %vm452, %v314, %v324
        %v529 = vsel %vm452, %v315, %v325
        %v532 = vsel %vm452, %v316, %v322
        %v535 = vsel %vm452, %v331, %v340
        %v537 = vsel %vm452, %v524, %v360
        %v539 = vsel %vm452, %v525, %v361
        %v542 = vsel %vm452, %v522, %v358
        %v545 = vsel %vm452, %v367, %v376
        %558 = vrot.lane.b32.xlu0 %v527, 79
        %v559 = vpop.permute.xlu0 %558
        %560 = vrot.lane.b32.xlu0 %v529, 79
        %v561 = vpop.permute.xlu0 %560
        %562 = vrot.lane.b32.xlu0 %v532, 79
        %v563 = vpop.permute.xlu0 %562
        %564 = vrot.lane.b32.xlu0 %v463, 79
        %v565 = vpop.permute.xlu0 %564
        %566 = vrot.lane.b32.xlu0 %v467, 79
        %v567 = vpop.permute.xlu0 %566
        %568 = vrot.lane.b32.xlu0 %v535, 79
        %v569 = vpop.permute.xlu0 %568
        %570 = vrot.lane.b32.xlu0 %v537, 79
        %v571 = vpop.permute.xlu0 %570
        %572 = vrot.lane.b32.xlu0 %v539, 79
        %v573 = vpop.permute.xlu0 %572
        %574 = vrot.lane.b32.xlu0 %v542, 79
        %v575 = vpop.permute.xlu0 %574
        %576 = vrot.lane.b32.xlu0 %v479, 79
        %v577 = vpop.permute.xlu0 %576
        %578 = vrot.lane.b32.xlu0 %v483, 79
        %v579 = vpop.permute.xlu0 %578
        %580 = vrot.lane.b32.xlu0 %v545, 79
        %v581 = vpop.permute.xlu0 %580
        %582 = vrot.lane.b32.xlu0 %v387, 79
        %v583 = vpop.permute.xlu0 %582
        %584 = vrot.lane.b32.xlu0 %v388, 79
        %v585 = vpop.permute.xlu0 %584
        %586 = vrot.lane.b32.xlu0 %v385, 79
        %v587 = vpop.permute.xlu0 %586
        %vm588 = vcmask 646144
        %v589 = vsel %vm588, %v559, %v561
        %v590 = vsel %vm588, %v561, %v563
        %v591 = vsel %vm588, %v565, %v567
        %v592 = vsel %vm588, %v567, %v569
        %v593 = vsel %vm588, %v571, %v573
        %v594 = vsel %vm588, %v573, %v575
        %v595 = vsel %vm588, %v577, %v579
        %v596 = vsel %vm588, %v579, %v581
        %v597 = vsel %vm588, %v583, %v585
        %v598 = vsel %vm588, %v585, %v587
        %v607 = vld [vmem:[#allocation11] sm:$0xff]
        %v608 = vld [vmem:[#allocation11 + $0x44] sm:$0xff]
        %v609 = vld [vmem:[#allocation12] sm:$0xff]
        %v610 = vld [vmem:[#allocation12 + $0x8] sm:$0xff]
        %612 = vset.pattern.permute.xlu0 0
        %613 = vperm.xlu0 %612, %v609
        %v614 = vpop.permute.xlu0 %613
        %617 = vset.pattern.permute.xlu0 0
        %618 = vperm.xlu0 %617, %v610
        %v619 = vpop.permute.xlu0 %618
        %v623 = vunpack.c.l.b16 %v607
        %v624 = vunpack.c.h.b16 %v607
        %v625 = vunpack.c.l.b16 %v608
        %v626 = vunpack.c.h.b16 %v608
        %v627 = vpack.c.b16 %v625, %v623
        %v628 = vpack.c.b16 %v626, %v624
        %vm630 = vcmask 588800
        %v632 = vsel %vm630, %v628, 0
        %v635 = vsel %vm452, %v597, 0
        %v638 = vsel %vm452, %v598, 0
        %640 = vmatprep.subr.bf16.mxu0 %v459
        %641 = vmatpush1.bf16.msra.mxu0 %v455
        %642 = vmatprep.subr.bf16.mxu0 %v467
        %643 = vmatpush1.bf16.msra.mxu0 %v463
        %644 = vmatprep.subr.bf16.mxu0 %v475
        %645 = vmatpush1.bf16.msra.mxu0 %v471
        %646 = vmatprep.subr.bf16.mxu0 %v483
        %647 = vmatpush1.bf16.msra.mxu0 %v479
        %648 = vmatprep.subr.bf16.mxu0 %v491
        %649 = vmatpush1.bf16.msra.mxu0 %v487
        %650 = vmatprep.subr.bf16.mxu0 %v499
        %651 = vmatpush1.bf16.msra.mxu0 %v495
        %652 = vmatprep.subr.bf16.mxu0 %v507
        %653 = vmatpush1.bf16.msra.mxu0 %v503
        %654 = vmatprep.subr.bf16.mxu0 %v515
        %655 = vmatpush1.bf16.msra.mxu0 %v511
        %656 = vmatprep.subr.bf16.mxu0 %v590
        %657 = vmatpush1.bf16.msra.mxu0 %v589
        %658 = vmatprep.subr.bf16.mxu0 %v592
        %659 = vmatpush1.bf16.msra.mxu0 %v591
        %660 = vmatprep.subr.bf16.mxu0 %v594
        %661 = vmatpush1.bf16.msra.mxu0 %v593
        %662 = vmatprep.subr.bf16.mxu0 %v596
        %663 = vmatpush1.bf16.msra.mxu0 %v595
        %664 = vmatprep.subr.bf16.mxu0 %v638
        %665 = vmatpush1.bf16.msra.mxu0 %v635
        %666 = vmatprep.subr.bf16.mxu0 0
        %667 = vmatpush1.bf16.msra.mxu0 0
        %668 = vmatprep.subr.bf16.mxu0 0
        %669 = vmatpush1.bf16.msra.mxu0 0
        %670 = vmatprep.subr.bf16.mxu0 0
        %671 = vmatpush1.bf16.msra.mxu0 0
        %672 = vmatprep.mubr.bf16.mxu0 %v632
        %673 = vmatmul.mubr.bf16.gmra.mrb[0].mxu0 %v627
        %v674 = vpop.f32.mrb[0].mxu0
        %v675 = vadd.f32 %v614, %v674
        %v676 = vpop.f32.mrb[0].mxu0
        %v677 = vadd.f32 %v614, %v676
        %v678 = vpop.f32.mrb[0].mxu0
        %v679 = vadd.f32 %v619, %v678
        %v680 = vpop.f32.mrb[0].mxu0
        %v681 = vadd.f32 %v619, %v680
        %682 = vdwg.mxu0
        %s683 = sld [smem:[#allocation4]]
        %vm684 = vcmp.gt.f32.partialorder %v675, 0.0
        %vm685 = vcmp.gt.f32.partialorder %v677, 0.0
        %vm686 = vcmp.gt.f32.partialorder %v679, 0.0
        %vm687 = vcmp.gt.f32.partialorder %v681, 0.0
        %v688 = vstv %s683
        %v689 = vmul.f32 %v675, %v688
        %v690 = vmul.f32 %v677, %v688
        %v691 = vmul.f32 %v679, %v688
        %v692 = vmul.f32 %v681, %v688
        %v693 = vsel %vm684, %v675, %v689
        %v694 = vsel %vm685, %v677, %v690
        %v695 = vsel %vm686, %v679, %v691
        %v696 = vsel %vm687, %v681, %v692
        %v697 = vpack.c.bf16 %v695, %v693
        %v698 = vpack.c.bf16 %v696, %v694
        %699 = vst [vmem:[#allocation2] sm:$0xff] %v697
        %700 = vst [vmem:[#allocation2 + $0x8] sm:$0xff] %v698
        %v701 = vld [vmem:[#allocation2] sm:$0xff]
        %v702 = vld [vmem:[#allocation2 + $0x8] sm:$0xff]
        %v703 = vld [vmem:[#allocation11 + $0x8] sm:$0xf]
        %v704 = vld [vmem:[#allocation12] sm:$0xff]
        %706 = vset.pattern.permute.xlu0 1
        %707 = vperm.xlu0 %706, %v704
        %v708 = vpop.permute.xlu0 %707
        %vm710 = vcmask 130048
        %v712 = vsel %vm710, %v703, 0
        %714 = vmatprep.subr.bf16.mxu0 %v702
        %715 = vmatpush1.bf16.msra.mxu0 %v701
        %716 = vmatprep.subr.bf16.mxu0 0
        %717 = vmatpush1.bf16.msra.mxu0 0
        %718 = vmatprep.subr.bf16.mxu0 0
        %719 = vmatpush1.bf16.msra.mxu0 0
        %720 = vmatprep.subr.bf16.mxu0 0
        %721 = vmatpush1.bf16.msra.mxu0 0
        %722 = vmatprep.subr.bf16.mxu0 0
        %723 = vmatpush1.bf16.msra.mxu0 0
        %724 = vmatprep.subr.bf16.mxu0 0
        %725 = vmatpush1.bf16.msra.mxu0 0
        %726 = vmatprep.subr.bf16.mxu0 0
        %727 = vmatpush1.bf16.msra.mxu0 0
        %728 = vmatprep.subr.bf16.mxu0 0
        %729 = vmatpush1.bf16.msra.mxu0 0
        %730 = vmatprep.subr.bf16.mxu0 0
        %731 = vmatpush1.bf16.msra.mxu0 0
        %732 = vmatprep.subr.bf16.mxu0 0
        %733 = vmatpush1.bf16.msra.mxu0 0
        %734 = vmatprep.subr.bf16.mxu0 0
        %735 = vmatpush1.bf16.msra.mxu0 0
        %736 = vmatprep.subr.bf16.mxu0 0
        %737 = vmatpush1.bf16.msra.mxu0 0
        %738 = vmatprep.subr.bf16.mxu0 0
        %739 = vmatpush1.bf16.msra.mxu0 0
        %740 = vmatprep.subr.bf16.mxu0 0
        %741 = vmatpush1.bf16.msra.mxu0 0
        %742 = vmatprep.subr.bf16.mxu0 0
        %743 = vmatpush1.bf16.msra.mxu0 0
        %744 = vmatprep.subr.bf16.mxu0 0
        %745 = vmatpush1.bf16.msra.mxu0 0
        %746 = vmatprep.mubr.bf16.mxu0 0
        %747 = vmatmul.mubr.bf16.gmra.mrb[0].mxu0 %v712
        %v748 = vpop.f32.mrb[0].mxu0
        %v749 = vadd.f32 %v708, %v748
        %v750 = vpop.f32.mrb[0].mxu0
        %v751 = vadd.f32 %v708, %v750
        %v752 = vpop.f32.mrb[0].mxu0
        %v753 = vpop.f32.mrb[0].mxu0
        %754 = vdwg.mxu0
        %s755 = sld [smem:[#allocation4 + $0x1]]
        %vm756 = vcmp.gt.f32.partialorder %v749, 0.0
        %vm757 = vcmp.gt.f32.partialorder %v751, 0.0
        %v758 = vstv %s755
        %v759 = vmul.f32 %v749, %v758
        %v760 = vmul.f32 %v751, %v758
        %v761 = vsel %vm756, %v749, %v759
        %v762 = vsel %vm757, %v751, %v760
        %v763 = vpack.c.bf16 %v761, %v761
        %v764 = vpack.c.bf16 %v762, %v762
        %765 = vst [vmem:[#allocation2] sm:$0xf] %v763
        %766 = vst [vmem:[#allocation2 + $0x8] sm:$0xf] %v764
        %v767 = vld [vmem:[#allocation2] sm:$0xf]
        %v768 = vld [vmem:[#allocation2 + $0x8] sm:$0xf]
        %v769 = vld [vmem:[#allocation2] sm:$0xf]
        %v770 = vld [vmem:[#allocation2 + $0x8] sm:$0xf]
        %v771 = vld [vmem:[#allocation2 + $0x10] sm:$0xf]
        %v775 = vrot.slane %v769, 4
        %v776 = vrot.slane %v770, 4
        %v777 = vrot.slane %v771, 4
        %778 = vrot.lane.b32.xlu0 %v775, 127
        %v779 = vpop.permute.xlu0 %778
        %780 = vrot.lane.b32.xlu0 %v776, 127
        %v781 = vpop.permute.xlu0 %780
        %782 = vrot.lane.b32.xlu0 %v777, 127
        %v783 = vpop.permute.xlu0 %782
        %v784 = vsel %vm323, %v779, %v781
        %v785 = vsel %vm323, %v781, %v783
        %786 = vrot.lane.b32.xlu0 %v769, 126
        %v787 = vpop.permute.xlu0 %786
        %788 = vrot.lane.b32.xlu0 %v770, 126
        %v789 = vpop.permute.xlu0 %788
        %790 = vrot.lane.b32.xlu0 %v771, 126
        %v791 = vpop.permute.xlu0 %790
        %v792 = vsel %vm332, %v787, %v789
        %v793 = vsel %vm332, %v789, %v791
        %794 = vrot.lane.b32.xlu0 %v775, 112
        %v795 = vpop.permute.xlu0 %794
        %796 = vrot.lane.b32.xlu0 %v776, 112
        %v797 = vpop.permute.xlu0 %796
        %798 = vrot.lane.b32.xlu0 %v777, 112
        %v799 = vpop.permute.xlu0 %798
        %v800 = vsel %vm359, %v795, %v797
        %v801 = vsel %vm359, %v797, %v799
        %802 = vrot.lane.b32.xlu0 %v769, 111
        %v803 = vpop.permute.xlu0 %802
        %804 = vrot.lane.b32.xlu0 %v770, 111
        %v805 = vpop.permute.xlu0 %804
        %806 = vrot.lane.b32.xlu0 %v771, 111
        %v807 = vpop.permute.xlu0 %806
        %v808 = vsel %vm368, %v803, %v805
        %v809 = vsel %vm368, %v805, %v807
        %810 = vrot.lane.b32.xlu0 %v775, 110
        %v811 = vpop.permute.xlu0 %810
        %812 = vrot.lane.b32.xlu0 %v776, 110
        %v813 = vpop.permute.xlu0 %812
        %814 = vrot.lane.b32.xlu0 %v777, 110
        %v815 = vpop.permute.xlu0 %814
        %v816 = vsel %vm377, %v811, %v813
        %v817 = vsel %vm377, %v813, %v815
        %818 = vrot.lane.b32.xlu0 %v769, 96
        %v819 = vpop.permute.xlu0 %818
        %820 = vrot.lane.b32.xlu0 %v770, 96
        %v821 = vpop.permute.xlu0 %820
        %822 = vrot.lane.b32.xlu0 %v771, 96
        %v823 = vpop.permute.xlu0 %822
        %v824 = vsel %vm404, %v819, %v821
        %v825 = vsel %vm404, %v821, %v823
        %826 = vrot.lane.b32.xlu0 %v775, 95
        %v827 = vpop.permute.xlu0 %826
        %828 = vrot.lane.b32.xlu0 %v776, 95
        %v829 = vpop.permute.xlu0 %828
        %830 = vrot.lane.b32.xlu0 %v777, 95
        %v831 = vpop.permute.xlu0 %830
        %v832 = vsel %vm413, %v827, %v829
        %v833 = vsel %vm413, %v829, %v831
        %834 = vrot.lane.b32.xlu0 %v769, 94
        %v835 = vpop.permute.xlu0 %834
        %836 = vrot.lane.b32.xlu0 %v770, 94
        %v837 = vpop.permute.xlu0 %836
        %838 = vrot.lane.b32.xlu0 %v771, 94
        %v839 = vpop.permute.xlu0 %838
        %v840 = vsel %vm422, %v835, %v837
        %v841 = vsel %vm422, %v837, %v839
        %v844 = vsel %vm452, %v767, %v784
        %v848 = vsel %vm452, %v768, %v785
        %v852 = vsel %vm452, %v792, %v800
        %v856 = vsel %vm452, %v793, %v801
        %v860 = vsel %vm452, %v808, %v816
        %v864 = vsel %vm452, %v809, %v817
        %v868 = vsel %vm452, %v824, %v832
        %v872 = vsel %vm452, %v825, %v833
        %v874 = vld [vmem:[#allocation11 + $0xc] sm:$0xf]
        %v875 = vld [vmem:[#allocation12] sm:$0xff]
        %877 = vset.pattern.permute.xlu0 2
        %878 = vperm.xlu0 %877, %v875
        %v879 = vpop.permute.xlu0 %878
        %v882 = vsel %vm630, %v874, 0
        %v885 = vsel %vm452, %v840, 0
        %v888 = vsel %vm452, %v841, 0
        %890 = vmatprep.subr.bf16.mxu0 %v848
        %891 = vmatpush1.bf16.msra.mxu0 %v844
        %892 = vmatprep.subr.bf16.mxu0 %v856
        %893 = vmatpush1.bf16.msra.mxu0 %v852
        %894 = vmatprep.subr.bf16.mxu0 %v864
        %895 = vmatpush1.bf16.msra.mxu0 %v860
        %896 = vmatprep.subr.bf16.mxu0 %v872
        %897 = vmatpush1.bf16.msra.mxu0 %v868
        %898 = vmatprep.subr.bf16.mxu0 %v888
        %899 = vmatpush1.bf16.msra.mxu0 %v885
        %900 = vmatprep.subr.bf16.mxu0 0
        %901 = vmatpush1.bf16.msra.mxu0 0
        %902 = vmatprep.subr.bf16.mxu0 0
        %903 = vmatpush1.bf16.msra.mxu0 0
        %904 = vmatprep.subr.bf16.mxu0 0
        %905 = vmatpush1.bf16.msra.mxu0 0
        %906 = vmatprep.subr.bf16.mxu0 0
        %907 = vmatpush1.bf16.msra.mxu0 0
        %908 = vmatprep.subr.bf16.mxu0 0
        %909 = vmatpush1.bf16.msra.mxu0 0
        %910 = vmatprep.subr.bf16.mxu0 0
        %911 = vmatpush1.bf16.msra.mxu0 0
        %912 = vmatprep.subr.bf16.mxu0 0
        %913 = vmatpush1.bf16.msra.mxu0 0
        %914 = vmatprep.subr.bf16.mxu0 0
        %915 = vmatpush1.bf16.msra.mxu0 0
        %916 = vmatprep.subr.bf16.mxu0 0
        %917 = vmatpush1.bf16.msra.mxu0 0
        %918 = vmatprep.subr.bf16.mxu0 0
        %919 = vmatpush1.bf16.msra.mxu0 0
        %920 = vmatprep.subr.bf16.mxu0 0
        %921 = vmatpush1.bf16.msra.mxu0 0
        %922 = vmatprep.mubr.bf16.mxu0 0
        %923 = vmatmul.mubr.bf16.gmra.mrb[0].mxu0 %v882
        %v924 = vpop.f32.mrb[0].mxu0
        %v925 = vadd.f32 %v879, %v924
        %v926 = vpop.f32.mrb[0].mxu0
        %v927 = vadd.f32 %v879, %v926
        %v928 = vpop.f32.mrb[0].mxu0
        %v929 = vpop.f32.mrb[0].mxu0
        %930 = vdwg.mxu0
        %s931 = sld [smem:[#allocation4 + $0x2]]
        %vm932 = vcmp.gt.f32.partialorder %v925, 0.0
        %vm933 = vcmp.gt.f32.partialorder %v927, 0.0
        %v934 = vstv %s931
        %v935 = vmul.f32 %v925, %v934
        %v936 = vmul.f32 %v927, %v934
        %v937 = vsel %vm932, %v925, %v935
        %v938 = vsel %vm933, %v927, %v936
        %v939 = vpack.c.bf16 %v937, %v937
        %v940 = vpack.c.bf16 %v938, %v938
        %941 = vst [vmem:[#allocation2] sm:$0xf] %v939
        %942 = vst [vmem:[#allocation2 + $0x8] sm:$0xf] %v940
        %v943 = vld [vmem:[#allocation2] sm:$0xf]
        %v944 = vld [vmem:[#allocation2 + $0x8] sm:$0xf]
        %v945 = vld [vmem:[#allocation2] sm:$0xf]
        %v946 = vld [vmem:[#allocation2 + $0x8] sm:$0xf]
        %v947 = vld [vmem:[#allocation2 + $0x10] sm:$0xf]
        %v951 = vrot.slane %v945, 4
        %v952 = vrot.slane %v946, 4
        %v953 = vrot.slane %v947, 4
        %954 = vrot.lane.b32.xlu0 %v951, 127
        %v955 = vpop.permute.xlu0 %954
        %956 = vrot.lane.b32.xlu0 %v952, 127
        %v957 = vpop.permute.xlu0 %956
        %958 = vrot.lane.b32.xlu0 %v953, 127
        %v959 = vpop.permute.xlu0 %958
        %v960 = vsel %vm323, %v955, %v957
        %v961 = vsel %vm323, %v957, %v959
        %962 = vrot.lane.b32.xlu0 %v945, 126
        %v963 = vpop.permute.xlu0 %962
        %964 = vrot.lane.b32.xlu0 %v946, 126
        %v965 = vpop.permute.xlu0 %964
        %966 = vrot.lane.b32.xlu0 %v947, 126
        %v967 = vpop.permute.xlu0 %966
        %v968 = vsel %vm332, %v963, %v965
        %v969 = vsel %vm332, %v965, %v967
        %970 = vrot.lane.b32.xlu0 %v951, 112
        %v971 = vpop.permute.xlu0 %970
        %972 = vrot.lane.b32.xlu0 %v952, 112
        %v973 = vpop.permute.xlu0 %972
        %974 = vrot.lane.b32.xlu0 %v953, 112
        %v975 = vpop.permute.xlu0 %974
        %v976 = vsel %vm359, %v971, %v973
        %v977 = vsel %vm359, %v973, %v975
        %978 = vrot.lane.b32.xlu0 %v945, 111
        %v979 = vpop.permute.xlu0 %978
        %980 = vrot.lane.b32.xlu0 %v946, 111
        %v981 = vpop.permute.xlu0 %980
        %982 = vrot.lane.b32.xlu0 %v947, 111
        %v983 = vpop.permute.xlu0 %982
        %v984 = vsel %vm368, %v979, %v981
        %v985 = vsel %vm368, %v981, %v983
        %986 = vrot.lane.b32.xlu0 %v951, 110
        %v987 = vpop.permute.xlu0 %986
        %988 = vrot.lane.b32.xlu0 %v952, 110
        %v989 = vpop.permute.xlu0 %988
        %990 = vrot.lane.b32.xlu0 %v953, 110
        %v991 = vpop.permute.xlu0 %990
        %v992 = vsel %vm377, %v987, %v989
        %v993 = vsel %vm377, %v989, %v991
        %994 = vrot.lane.b32.xlu0 %v945, 96
        %v995 = vpop.permute.xlu0 %994
        %996 = vrot.lane.b32.xlu0 %v946, 96
        %v997 = vpop.permute.xlu0 %996
        %998 = vrot.lane.b32.xlu0 %v947, 96
        %v999 = vpop.permute.xlu0 %998
        %v1000 = vsel %vm404, %v995, %v997
        %v1001 = vsel %vm404, %v997, %v999
        %1002 = vrot.lane.b32.xlu0 %v951, 95
        %v1003 = vpop.permute.xlu0 %1002
        %1004 = vrot.lane.b32.xlu0 %v952, 95
        %v1005 = vpop.permute.xlu0 %1004
        %1006 = vrot.lane.b32.xlu0 %v953, 95
        %v1007 = vpop.permute.xlu0 %1006
        %v1008 = vsel %vm413, %v1003, %v1005
        %v1009 = vsel %vm413, %v1005, %v1007
        %1010 = vrot.lane.b32.xlu0 %v945, 94
        %v1011 = vpop.permute.xlu0 %1010
        %1012 = vrot.lane.b32.xlu0 %v946, 94
        %v1013 = vpop.permute.xlu0 %1012
        %1014 = vrot.lane.b32.xlu0 %v947, 94
        %v1015 = vpop.permute.xlu0 %1014
        %v1016 = vsel %vm422, %v1011, %v1013
        %v1017 = vsel %vm422, %v1013, %v1015
        %v1020 = vsel %vm452, %v943, %v960
        %v1024 = vsel %vm452, %v944, %v961
        %v1028 = vsel %vm452, %v968, %v976
        %v1032 = vsel %vm452, %v969, %v977
        %v1036 = vsel %vm452, %v984, %v992
        %v1040 = vsel %vm452, %v985, %v993
        %v1044 = vsel %vm452, %v1000, %v1008
        %v1048 = vsel %vm452, %v1001, %v1009
        %v1050 = vld [vmem:[#allocation11 + $0x10] sm:$0xf]
        %v1051 = vld [vmem:[#allocation12] sm:$0xff]
        %1053 = vset.pattern.permute.xlu0 3
        %1054 = vperm.xlu0 %1053, %v1051
        %v1055 = vpop.permute.xlu0 %1054
        %v1058 = vsel %vm630, %v1050, 0
        %v1061 = vsel %vm452, %v1016, 0
        %v1064 = vsel %vm452, %v1017, 0
        %1066 = vmatprep.subr.bf16.mxu0 %v1024
        %1067 = vmatpush1.bf16.msra.mxu0 %v1020
        %1068 = vmatprep.subr.bf16.mxu0 %v1032
        %1069 = vmatpush1.bf16.msra.mxu0 %v1028
        %1070 = vmatprep.subr.bf16.mxu0 %v1040
        %1071 = vmatpush1.bf16.msra.mxu0 %v1036
        %1072 = vmatprep.subr.bf16.mxu0 %v1048
        %1073 = vmatpush1.bf16.msra.mxu0 %v1044
        %1074 = vmatprep.subr.bf16.mxu0 %v1064
        %1075 = vmatpush1.bf16.msra.mxu0 %v1061
        %1076 = vmatprep.subr.bf16.mxu0 0
        %1077 = vmatpush1.bf16.msra.mxu0 0
        %1078 = vmatprep.subr.bf16.mxu0 0
        %1079 = vmatpush1.bf16.msra.mxu0 0
        %1080 = vmatprep.subr.bf16.mxu0 0
        %1081 = vmatpush1.bf16.msra.mxu0 0
        %1082 = vmatprep.subr.bf16.mxu0 0
        %1083 = vmatpush1.bf16.msra.mxu0 0
        %1084 = vmatprep.subr.bf16.mxu0 0
        %1085 = vmatpush1.bf16.msra.mxu0 0
        %1086 = vmatprep.subr.bf16.mxu0 0
        %1087 = vmatpush1.bf16.msra.mxu0 0
        %1088 = vmatprep.subr.bf16.mxu0 0
        %1089 = vmatpush1.bf16.msra.mxu0 0
        %1090 = vmatprep.subr.bf16.mxu0 0
        %1091 = vmatpush1.bf16.msra.mxu0 0
        %1092 = vmatprep.subr.bf16.mxu0 0
        %1093 = vmatpush1.bf16.msra.mxu0 0
        %1094 = vmatprep.subr.bf16.mxu0 0
        %1095 = vmatpush1.bf16.msra.mxu0 0
        %1096 = vmatprep.subr.bf16.mxu0 0
        %1097 = vmatpush1.bf16.msra.mxu0 0
        %1098 = vmatprep.mubr.bf16.mxu0 0
        %1099 = vmatmul.mubr.bf16.gmra.mrb[0].mxu0 %v1058
        %v1100 = vpop.f32.mrb[0].mxu0
        %v1101 = vadd.f32 %v1055, %v1100
        %v1102 = vpop.f32.mrb[0].mxu0
        %v1103 = vadd.f32 %v1055, %v1102
        %v1104 = vpop.f32.mrb[0].mxu0
        %v1105 = vpop.f32.mrb[0].mxu0
        %1106 = vdwg.mxu0
        %s1107 = sld [smem:[#allocation4 + $0x3]]
        %vm1108 = vcmp.gt.f32.partialorder %v1101, 0.0
        %vm1109 = vcmp.gt.f32.partialorder %v1103, 0.0
        %v1110 = vstv %s1107
        %v1111 = vmul.f32 %v1101, %v1110
        %v1112 = vmul.f32 %v1103, %v1110
        %v1113 = vsel %vm1108, %v1101, %v1111
        %v1114 = vsel %vm1109, %v1103, %v1112
        %v1115 = vpack.c.bf16 %v1113, %v1113
        %v1116 = vpack.c.bf16 %v1114, %v1114
        %1117 = vst [vmem:[#allocation2] sm:$0xf] %v1115
        %1118 = vst [vmem:[#allocation2 + $0x8] sm:$0xf] %v1116
        %v1119 = vld [vmem:[#allocation2] sm:$0xf]
        %v1120 = vld [vmem:[#allocation2 + $0x8] sm:$0xf]
        %v1121 = vld [vmem:[#allocation11 + $0x14] sm:$0xf]
        %v1122 = vld [vmem:[#allocation11 + $0x58] sm:$0xf]
        %v1123 = vld [vmem:[#allocation12] sm:$0xff]
        %v1124 = vld [vmem:[#allocation12 + $0x8] sm:$0xff]
        %1126 = vset.pattern.permute.xlu0 4
        %1127 = vperm.xlu0 %1126, %v1123
        %v1128 = vpop.permute.xlu0 %1127
        %1131 = vset.pattern.permute.xlu0 4
        %1132 = vperm.xlu0 %1131, %v1124
        %v1133 = vpop.permute.xlu0 %1132
        %v1137 = vunpack.c.l.b16 %v1121
        %v1138 = vunpack.c.l.b16 %v1122
        %v1139 = vpack.c.b16 %v1138, %v1137
        %vm1140 = vcmask 64512
        %v1142 = vsel %vm1140, %v1139, 0
        %v1145 = vsel %vm452, %v1119, 0
        %v1148 = vsel %vm452, %v1120, 0
        %1150 = vmatprep.subr.bf16.mxu0 %v1148
        %1151 = vmatpush1.bf16.msra.mxu0 %v1145
        %1152 = vmatprep.subr.bf16.mxu0 0
        %1153 = vmatpush1.bf16.msra.mxu0 0
        %1154 = vmatprep.subr.bf16.mxu0 0
        %1155 = vmatpush1.bf16.msra.mxu0 0
        %1156 = vmatprep.subr.bf16.mxu0 0
        %1157 = vmatpush1.bf16.msra.mxu0 0
        %1158 = vmatprep.subr.bf16.mxu0 0
        %1159 = vmatpush1.bf16.msra.mxu0 0
        %1160 = vmatprep.subr.bf16.mxu0 0
        %1161 = vmatpush1.bf16.msra.mxu0 0
        %1162 = vmatprep.subr.bf16.mxu0 0
        %1163 = vmatpush1.bf16.msra.mxu0 0
        %1164 = vmatprep.subr.bf16.mxu0 0
        %1165 = vmatpush1.bf16.msra.mxu0 0
        %1166 = vmatprep.subr.bf16.mxu0 0
        %1167 = vmatpush1.bf16.msra.mxu0 0
        %1168 = vmatprep.subr.bf16.mxu0 0
        %1169 = vmatpush1.bf16.msra.mxu0 0
        %1170 = vmatprep.subr.bf16.mxu0 0
        %1171 = vmatpush1.bf16.msra.mxu0 0
        %1172 = vmatprep.subr.bf16.mxu0 0
        %1173 = vmatpush1.bf16.msra.mxu0 0
        %1174 = vmatprep.subr.bf16.mxu0 0
        %1175 = vmatpush1.bf16.msra.mxu0 0
        %1176 = vmatprep.subr.bf16.mxu0 0
        %1177 = vmatpush1.bf16.msra.mxu0 0
        %1178 = vmatprep.subr.bf16.mxu0 0
        %1179 = vmatpush1.bf16.msra.mxu0 0
        %1180 = vmatprep.subr.bf16.mxu0 0
        %1181 = vmatpush1.bf16.msra.mxu0 0
        %1182 = vmatprep.mubr.bf16.mxu0 0
        %1183 = vmatmul.mubr.bf16.gmra.mrb[0].mxu0 %v1142
        %v1184 = vpop.f32.mrb[0].mxu0
        %v1185 = vadd.f32 %v1128, %v1184
        %v1186 = vpop.f32.mrb[0].mxu0
        %v1187 = vadd.f32 %v1128, %v1186
        %v1188 = vpop.f32.mrb[0].mxu0
        %v1189 = vadd.f32 %v1133, %v1188
        %v1190 = vpop.f32.mrb[0].mxu0
        %v1191 = vadd.f32 %v1133, %v1190
        %1192 = vdwg.mxu0
        %s1193 = sld [smem:[#allocation4 + $0x4]]
        %vm1194 = vcmp.gt.f32.partialorder %v1185, 0.0
        %vm1195 = vcmp.gt.f32.partialorder %v1187, 0.0
        %vm1196 = vcmp.gt.f32.partialorder %v1189, 0.0
        %vm1197 = vcmp.gt.f32.partialorder %v1191, 0.0
        %v1198 = vstv %s1193
        %v1199 = vmul.f32 %v1185, %v1198
        %v1200 = vmul.f32 %v1187, %v1198
        %v1201 = vmul.f32 %v1189, %v1198
        %v1202 = vmul.f32 %v1191, %v1198
        %v1203 = vsel %vm1194, %v1185, %v1199
        %v1204 = vsel %vm1195, %v1187, %v1200
        %v1205 = vsel %vm1196, %v1189, %v1201
        %v1206 = vsel %vm1197, %v1191, %v1202
        %v1207 = vpack.c.bf16 %v1205, %v1203
        %v1208 = vpack.c.bf16 %v1206, %v1204
        %v1209 = vld [vmem:[#allocation9] sm:$0x3]
        %vm1210 = vcmp.gt.f32.partialorder %v1209, 0.0
        %v1211 = vsel %vm1210, 1, 0
        %v1212 = vlaneseq
        %v1213 = vshrl.u32 %v1212, 7
        %v1214 = vsub.s32 0, %v1213
        %v1215 = vrot.slane %v1211, %v1214
        %v1216 = vlaneseq
        %v1217 = vshrl.u32 %v1216, 7
        %v1218 = vsub.s32 1, %v1217
        %v1219 = vrot.slane %v1211, %v1218
        %vm1220 = vcmp.eq.s32.totalorder %v1215, 1
        %vm1221 = vcmp.eq.s32.totalorder %v1219, 1
        %vm1222 = vmpackc.low %vm1221, %vm1220
        %v1223 = vsel %vm1222, 65537, 0
        %v1224 = vlaneseq
        %v1225 = vshrl.u32 %v1224, 7
        %v1226 = vsub.s32 0, %v1225
        %v1227 = vrot.slane %v1223, %v1226
        %v1228 = vlaneseq
        %v1229 = vshrl.u32 %v1228, 7
        %v1230 = vsub.s32 4, %v1229
        %v1231 = vrot.slane %v1223, %v1230
        %vm1232 = vcmp.ne.s16.totalorder %v1227, 0
        %vm1233 = vcmp.ne.s16.totalorder %v1231, 0
        %v1234 = vsel %vm1232, %v1207, 0
        %v1235 = vsel %vm1233, %v1208, 0
        %1236 = vst [vmem:[#allocation3 + $0x10] sm:$0xff] %v1234
        %1237 = vst [vmem:[#allocation3 + $0x18] sm:$0xff] %v1235
        %v1238 = vld [vmem:[#allocation3 + $0x10] sm:$0xff]
        %v1239 = vld [vmem:[#allocation3 + $0x18] sm:$0xff]
        %v1240 = vld [vmem:[#allocation3 + $0x8] sm:$0xff]
        %1244 = vrot.lane.b32.xlu0 %v1240, 1
        %v1245 = vpop.permute.xlu0 %1244
        %1246 = vrot.lane.b32.xlu0 %v1238, 1
        %v1247 = vpop.permute.xlu0 %1246
        %1248 = vrot.lane.b32.xlu0 %v1239, 1
        %v1249 = vpop.permute.xlu0 %1248
        %vm1250 = vcmask 7168
        %v1251 = vsel %vm1250, %v1245, %v1247
        %v1252 = vsel %vm1250, %v1247, %v1249
        %1255 = vrot.lane.b32.xlu0 %v1240, 2
        %v1256 = vpop.permute.xlu0 %1255
        %1257 = vrot.lane.b32.xlu0 %v1238, 2
        %v1258 = vpop.permute.xlu0 %1257
        %1259 = vrot.lane.b32.xlu0 %v1239, 2
        %v1260 = vpop.permute.xlu0 %1259
        %vm1261 = vcmask 15360
        %v1262 = vsel %vm1261, %v1256, %v1258
        %v1263 = vsel %vm1261, %v1258, %v1260
        %1266 = vrot.lane.b32.xlu0 %v1240, 3
        %v1267 = vpop.permute.xlu0 %1266
        %1268 = vrot.lane.b32.xlu0 %v1238, 3
        %v1269 = vpop.permute.xlu0 %1268
        %1270 = vrot.lane.b32.xlu0 %v1239, 3
        %v1271 = vpop.permute.xlu0 %1270
        %vm1272 = vcmask 23552
        %v1273 = vsel %vm1272, %v1267, %v1269
        %v1274 = vsel %vm1272, %v1269, %v1271
        %1277 = vrot.lane.b32.xlu0 %v1240, 4
        %v1278 = vpop.permute.xlu0 %1277
        %1279 = vrot.lane.b32.xlu0 %v1238, 4
        %v1280 = vpop.permute.xlu0 %1279
        %1281 = vrot.lane.b32.xlu0 %v1239, 4
        %v1282 = vpop.permute.xlu0 %1281
        %vm1283 = vcmask 31744
        %v1284 = vsel %vm1283, %v1278, %v1280
        %v1285 = vsel %vm1283, %v1280, %v1282
        %1288 = vrot.lane.b32.xlu0 %v1240, 5
        %v1289 = vpop.permute.xlu0 %1288
        %1290 = vrot.lane.b32.xlu0 %v1238, 5
        %v1291 = vpop.permute.xlu0 %1290
        %1292 = vrot.lane.b32.xlu0 %v1239, 5
        %v1293 = vpop.permute.xlu0 %1292
        %vm1294 = vcmask 39936
        %v1295 = vsel %vm1294, %v1289, %v1291
        %v1296 = vsel %vm1294, %v1291, %v1293
        %1299 = vrot.lane.b32.xlu0 %v1240, 6
        %v1300 = vpop.permute.xlu0 %1299
        %1301 = vrot.lane.b32.xlu0 %v1238, 6
        %v1302 = vpop.permute.xlu0 %1301
        %1303 = vrot.lane.b32.xlu0 %v1239, 6
        %v1304 = vpop.permute.xlu0 %1303
        %vm1305 = vcmask 48128
        %v1306 = vsel %vm1305, %v1300, %v1302
        %v1307 = vsel %vm1305, %v1302, %v1304
        %1310 = vrot.lane.b32.xlu0 %v1240, 7
        %v1311 = vpop.permute.xlu0 %1310
        %1312 = vrot.lane.b32.xlu0 %v1238, 7
        %v1313 = vpop.permute.xlu0 %1312
        %1314 = vrot.lane.b32.xlu0 %v1239, 7
        %v1315 = vpop.permute.xlu0 %1314
        %vm1316 = vcmask 56320
        %v1317 = vsel %vm1316, %v1311, %v1313
        %v1318 = vsel %vm1316, %v1313, %v1315
        %1321 = vrot.lane.b32.xlu0 %v1240, 8
        %v1322 = vpop.permute.xlu0 %1321
        %1323 = vrot.lane.b32.xlu0 %v1238, 8
        %v1324 = vpop.permute.xlu0 %1323
        %1325 = vrot.lane.b32.xlu0 %v1239, 8
        %v1326 = vpop.permute.xlu0 %1325
        %vm1327 = vcmask 64512
        %v1328 = vsel %vm1327, %v1322, %v1324
        %v1329 = vsel %vm1327, %v1324, %v1326
        %1332 = vrot.lane.b32.xlu0 %v1240, 16
        %v1333 = vpop.permute.xlu0 %1332
        %1334 = vrot.lane.b32.xlu0 %v1238, 16
        %v1335 = vpop.permute.xlu0 %1334
        %1336 = vrot.lane.b32.xlu0 %v1239, 16
        %v1337 = vpop.permute.xlu0 %1336
        %vm1338 = vcmask 130048
        %v1339 = vsel %vm1338, %v1333, %v1335
        %v1340 = vsel %vm1338, %v1335, %v1337
        %1343 = vrot.lane.b32.xlu0 %v1240, 17
        %v1344 = vpop.permute.xlu0 %1343
        %1345 = vrot.lane.b32.xlu0 %v1238, 17
        %v1346 = vpop.permute.xlu0 %1345
        %1347 = vrot.lane.b32.xlu0 %v1239, 17
        %v1348 = vpop.permute.xlu0 %1347
        %vm1349 = vcmask 138240
        %v1350 = vsel %vm1349, %v1344, %v1346
        %v1351 = vsel %vm1349, %v1346, %v1348
        %1354 = vrot.lane.b32.xlu0 %v1240, 18
        %v1355 = vpop.permute.xlu0 %1354
        %1356 = vrot.lane.b32.xlu0 %v1238, 18
        %v1357 = vpop.permute.xlu0 %1356
        %1358 = vrot.lane.b32.xlu0 %v1239, 18
        %v1359 = vpop.permute.xlu0 %1358
        %vm1360 = vcmask 146432
        %v1361 = vsel %vm1360, %v1355, %v1357
        %v1362 = vsel %vm1360, %v1357, %v1359
        %1365 = vrot.lane.b32.xlu0 %v1240, 19
        %v1366 = vpop.permute.xlu0 %1365
        %1367 = vrot.lane.b32.xlu0 %v1238, 19
        %v1368 = vpop.permute.xlu0 %1367
        %1369 = vrot.lane.b32.xlu0 %v1239, 19
        %v1370 = vpop.permute.xlu0 %1369
        %vm1371 = vcmask 154624
        %v1372 = vsel %vm1371, %v1366, %v1368
        %v1373 = vsel %vm1371, %v1368, %v1370
        %1376 = vrot.lane.b32.xlu0 %v1240, 20
        %v1377 = vpop.permute.xlu0 %1376
        %1378 = vrot.lane.b32.xlu0 %v1238, 20
        %v1379 = vpop.permute.xlu0 %1378
        %1380 = vrot.lane.b32.xlu0 %v1239, 20
        %v1381 = vpop.permute.xlu0 %1380
        %vm1382 = vcmask 162816
        %v1383 = vsel %vm1382, %v1377, %v1379
        %v1384 = vsel %vm1382, %v1379, %v1381
        %1387 = vrot.lane.b32.xlu0 %v1240, 21
        %v1388 = vpop.permute.xlu0 %1387
        %1389 = vrot.lane.b32.xlu0 %v1238, 21
        %v1390 = vpop.permute.xlu0 %1389
        %1391 = vrot.lane.b32.xlu0 %v1239, 21
        %v1392 = vpop.permute.xlu0 %1391
        %vm1393 = vcmask 171008
        %v1394 = vsel %vm1393, %v1388, %v1390
        %v1395 = vsel %vm1393, %v1390, %v1392
        %1398 = vrot.lane.b32.xlu0 %v1240, 22
        %v1399 = vpop.permute.xlu0 %1398
        %1400 = vrot.lane.b32.xlu0 %v1238, 22
        %v1401 = vpop.permute.xlu0 %1400
        %1402 = vrot.lane.b32.xlu0 %v1239, 22
        %v1403 = vpop.permute.xlu0 %1402
        %vm1404 = vcmask 179200
        %v1405 = vsel %vm1404, %v1399, %v1401
        %v1406 = vsel %vm1404, %v1401, %v1403
        %v1409 = vld [vmem:[#allocation11 + $0x18] sm:$0x33]
        %1410 = vrot.lane.b32.xlu0 %v1240, 9
        %v1411 = vpop.permute.xlu0 %1410
        %1412 = vrot.lane.b32.xlu0 %v1238, 9
        %v1413 = vpop.permute.xlu0 %1412
        %1414 = vrot.lane.b32.xlu0 %v1239, 9
        %v1415 = vpop.permute.xlu0 %1414
        %vm1416 = vcmask 72704
        %v1417 = vsel %vm1416, %v1411, %v1413
        %v1418 = vsel %vm1416, %v1413, %v1415
        %1419 = vrot.lane.b32.xlu0 %v1240, 10
        %v1420 = vpop.permute.xlu0 %1419
        %1421 = vrot.lane.b32.xlu0 %v1238, 10
        %v1422 = vpop.permute.xlu0 %1421
        %1423 = vrot.lane.b32.xlu0 %v1239, 10
        %v1424 = vpop.permute.xlu0 %1423
        %vm1425 = vcmask 80896
        %v1426 = vsel %vm1425, %v1420, %v1422
        %v1427 = vsel %vm1425, %v1422, %v1424
        %1428 = vrot.lane.b32.xlu0 %v1240, 11
        %v1429 = vpop.permute.xlu0 %1428
        %1430 = vrot.lane.b32.xlu0 %v1238, 11
        %v1431 = vpop.permute.xlu0 %1430
        %1432 = vrot.lane.b32.xlu0 %v1239, 11
        %v1433 = vpop.permute.xlu0 %1432
        %vm1434 = vcmask 89088
        %v1435 = vsel %vm1434, %v1429, %v1431
        %v1436 = vsel %vm1434, %v1431, %v1433
        %1437 = vrot.lane.b32.xlu0 %v1240, 12
        %v1438 = vpop.permute.xlu0 %1437
        %1439 = vrot.lane.b32.xlu0 %v1238, 12
        %v1440 = vpop.permute.xlu0 %1439
        %1441 = vrot.lane.b32.xlu0 %v1239, 12
        %v1442 = vpop.permute.xlu0 %1441
        %vm1443 = vcmask 97280
        %v1444 = vsel %vm1443, %v1438, %v1440
        %v1445 = vsel %vm1443, %v1440, %v1442
        %1446 = vrot.lane.b32.xlu0 %v1240, 13
        %v1447 = vpop.permute.xlu0 %1446
        %1448 = vrot.lane.b32.xlu0 %v1238, 13
        %v1449 = vpop.permute.xlu0 %1448
        %1450 = vrot.lane.b32.xlu0 %v1239, 13
        %v1451 = vpop.permute.xlu0 %1450
        %vm1452 = vcmask 105472
        %v1453 = vsel %vm1452, %v1447, %v1449
        %v1454 = vsel %vm1452, %v1449, %v1451
        %1455 = vrot.lane.b32.xlu0 %v1240, 14
        %v1456 = vpop.permute.xlu0 %1455
        %1457 = vrot.lane.b32.xlu0 %v1238, 14
        %v1458 = vpop.permute.xlu0 %1457
        %1459 = vrot.lane.b32.xlu0 %v1239, 14
        %v1460 = vpop.permute.xlu0 %1459
        %vm1461 = vcmask 113664
        %v1462 = vsel %vm1461, %v1456, %v1458
        %v1463 = vsel %vm1461, %v1458, %v1460
        %1464 = vrot.lane.b32.xlu0 %v1240, 15
        %v1465 = vpop.permute.xlu0 %1464
        %1466 = vrot.lane.b32.xlu0 %v1238, 15
        %v1467 = vpop.permute.xlu0 %1466
        %1468 = vrot.lane.b32.xlu0 %v1239, 15
        %v1469 = vpop.permute.xlu0 %1468
        %vm1470 = vcmask 121856
        %v1471 = vsel %vm1470, %v1465, %v1467
        %v1472 = vsel %vm1470, %v1467, %v1469
        %1473 = vrot.lane.b32.xlu0 %v1240, 25
        %v1474 = vpop.permute.xlu0 %1473
        %1475 = vrot.lane.b32.xlu0 %v1238, 25
        %v1476 = vpop.permute.xlu0 %1475
        %1477 = vrot.lane.b32.xlu0 %v1239, 25
        %v1478 = vpop.permute.xlu0 %1477
        %vm1479 = vcmask 203776
        %v1480 = vsel %vm1479, %v1474, %v1476
        %v1481 = vsel %vm1479, %v1476, %v1478
        %1482 = vrot.lane.b32.xlu0 %v1240, 26
        %v1483 = vpop.permute.xlu0 %1482
        %1484 = vrot.lane.b32.xlu0 %v1238, 26
        %v1485 = vpop.permute.xlu0 %1484
        %1486 = vrot.lane.b32.xlu0 %v1239, 26
        %v1487 = vpop.permute.xlu0 %1486
        %vm1488 = vcmask 211968
        %v1489 = vsel %vm1488, %v1483, %v1485
        %v1490 = vsel %vm1488, %v1485, %v1487
        %1491 = vrot.lane.b32.xlu0 %v1240, 27
        %v1492 = vpop.permute.xlu0 %1491
        %1493 = vrot.lane.b32.xlu0 %v1238, 27
        %v1494 = vpop.permute.xlu0 %1493
        %1495 = vrot.lane.b32.xlu0 %v1239, 27
        %v1496 = vpop.permute.xlu0 %1495
        %vm1497 = vcmask 220160
        %v1498 = vsel %vm1497, %v1492, %v1494
        %v1499 = vsel %vm1497, %v1494, %v1496
        %1500 = vrot.lane.b32.xlu0 %v1240, 28
        %v1501 = vpop.permute.xlu0 %1500
        %1502 = vrot.lane.b32.xlu0 %v1238, 28
        %v1503 = vpop.permute.xlu0 %1502
        %1504 = vrot.lane.b32.xlu0 %v1239, 28
        %v1505 = vpop.permute.xlu0 %1504
        %vm1506 = vcmask 228352
        %v1507 = vsel %vm1506, %v1501, %v1503
        %v1508 = vsel %vm1506, %v1503, %v1505
        %1509 = vrot.lane.b32.xlu0 %v1240, 29
        %v1510 = vpop.permute.xlu0 %1509
        %1511 = vrot.lane.b32.xlu0 %v1238, 29
        %v1512 = vpop.permute.xlu0 %1511
        %1513 = vrot.lane.b32.xlu0 %v1239, 29
        %v1514 = vpop.permute.xlu0 %1513
        %vm1515 = vcmask 236544
        %v1516 = vsel %vm1515, %v1510, %v1512
        %v1517 = vsel %vm1515, %v1512, %v1514
        %v1518 = vld [vmem:[#allocation11 + $0x20] sm:$0x33]
        %v1520 = vunpack.c.l.b16 %v1518
        %v1521 = vunpack.c.h.b16 %v1518
        %v1522 = vpack.c.b16 %v1520, %v1520
        %v1523 = vpack.c.b16 %v1521, %v1521
        %1526 = vrot.lane.b32.xlu0 %v1240, 23
        %v1527 = vpop.permute.xlu0 %1526
        %1528 = vrot.lane.b32.xlu0 %v1238, 23
        %v1529 = vpop.permute.xlu0 %1528
        %1530 = vrot.lane.b32.xlu0 %v1239, 23
        %v1531 = vpop.permute.xlu0 %1530
        %1532 = vrot.lane.b32.xlu0 %v1245, 23
        %v1533 = vpop.permute.xlu0 %1532
        %1534 = vrot.lane.b32.xlu0 %v1251, 23
        %v1535 = vpop.permute.xlu0 %1534
        %1536 = vrot.lane.b32.xlu0 %v1252, 23
        %v1537 = vpop.permute.xlu0 %1536
        %1538 = vrot.lane.b32.xlu0 %v1411, 23
        %v1539 = vpop.permute.xlu0 %1538
        %1540 = vrot.lane.b32.xlu0 %v1417, 23
        %v1541 = vpop.permute.xlu0 %1540
        %1542 = vrot.lane.b32.xlu0 %v1418, 23
        %v1543 = vpop.permute.xlu0 %1542
        %1544 = vrot.lane.b32.xlu0 %v1420, 23
        %v1545 = vpop.permute.xlu0 %1544
        %1546 = vrot.lane.b32.xlu0 %v1426, 23
        %v1547 = vpop.permute.xlu0 %1546
        %1548 = vrot.lane.b32.xlu0 %v1427, 23
        %v1549 = vpop.permute.xlu0 %1548
        %1550 = vrot.lane.b32.xlu0 %v1429, 23
        %v1551 = vpop.permute.xlu0 %1550
        %1552 = vrot.lane.b32.xlu0 %v1435, 23
        %v1553 = vpop.permute.xlu0 %1552
        %1554 = vrot.lane.b32.xlu0 %v1436, 23
        %v1555 = vpop.permute.xlu0 %1554
        %1556 = vrot.lane.b32.xlu0 %v1438, 23
        %v1557 = vpop.permute.xlu0 %1556
        %1558 = vrot.lane.b32.xlu0 %v1444, 23
        %v1559 = vpop.permute.xlu0 %1558
        %1560 = vrot.lane.b32.xlu0 %v1445, 23
        %v1561 = vpop.permute.xlu0 %1560
        %1562 = vrot.lane.b32.xlu0 %v1447, 23
        %v1563 = vpop.permute.xlu0 %1562
        %1564 = vrot.lane.b32.xlu0 %v1453, 23
        %v1565 = vpop.permute.xlu0 %1564
        %1566 = vrot.lane.b32.xlu0 %v1454, 23
        %v1567 = vpop.permute.xlu0 %1566
        %1568 = vrot.lane.b32.xlu0 %v1456, 23
        %v1569 = vpop.permute.xlu0 %1568
        %1570 = vrot.lane.b32.xlu0 %v1462, 23
        %v1571 = vpop.permute.xlu0 %1570
        %1572 = vrot.lane.b32.xlu0 %v1463, 23
        %v1573 = vpop.permute.xlu0 %1572
        %1574 = vrot.lane.b32.xlu0 %v1465, 23
        %v1575 = vpop.permute.xlu0 %1574
        %1576 = vrot.lane.b32.xlu0 %v1471, 23
        %v1577 = vpop.permute.xlu0 %1576
        %1578 = vrot.lane.b32.xlu0 %v1472, 23
        %v1579 = vpop.permute.xlu0 %1578
        %1580 = vrot.lane.b32.xlu0 %v1333, 23
        %v1581 = vpop.permute.xlu0 %1580
        %1582 = vrot.lane.b32.xlu0 %v1339, 23
        %v1583 = vpop.permute.xlu0 %1582
        %1584 = vrot.lane.b32.xlu0 %v1340, 23
        %v1585 = vpop.permute.xlu0 %1584
        %1586 = vrot.lane.b32.xlu0 %v1344, 23
        %v1587 = vpop.permute.xlu0 %1586
        %1588 = vrot.lane.b32.xlu0 %v1350, 23
        %v1589 = vpop.permute.xlu0 %1588
        %1590 = vrot.lane.b32.xlu0 %v1351, 23
        %v1591 = vpop.permute.xlu0 %1590
        %1592 = vrot.lane.b32.xlu0 %v1474, 23
        %v1593 = vpop.permute.xlu0 %1592
        %1594 = vrot.lane.b32.xlu0 %v1480, 23
        %v1595 = vpop.permute.xlu0 %1594
        %1596 = vrot.lane.b32.xlu0 %v1481, 23
        %v1597 = vpop.permute.xlu0 %1596
        %1598 = vrot.lane.b32.xlu0 %v1483, 23
        %v1599 = vpop.permute.xlu0 %1598
        %1600 = vrot.lane.b32.xlu0 %v1489, 23
        %v1601 = vpop.permute.xlu0 %1600
        %1602 = vrot.lane.b32.xlu0 %v1490, 23
        %v1603 = vpop.permute.xlu0 %1602
        %1604 = vrot.lane.b32.xlu0 %v1492, 23
        %v1605 = vpop.permute.xlu0 %1604
        %1606 = vrot.lane.b32.xlu0 %v1498, 23
        %v1607 = vpop.permute.xlu0 %1606
        %1608 = vrot.lane.b32.xlu0 %v1499, 23
        %v1609 = vpop.permute.xlu0 %1608
        %1610 = vrot.lane.b32.xlu0 %v1501, 23
        %v1611 = vpop.permute.xlu0 %1610
        %1612 = vrot.lane.b32.xlu0 %v1507, 23
        %v1613 = vpop.permute.xlu0 %1612
        %1614 = vrot.lane.b32.xlu0 %v1508, 23
        %v1615 = vpop.permute.xlu0 %1614
        %1616 = vrot.lane.b32.xlu0 %v1510, 23
        %v1617 = vpop.permute.xlu0 %1616
        %1618 = vrot.lane.b32.xlu0 %v1516, 23
        %v1619 = vpop.permute.xlu0 %1618
        %1620 = vrot.lane.b32.xlu0 %v1517, 23
        %v1621 = vpop.permute.xlu0 %1620
        %vm1622 = vcmask 187392
        %v1623 = vsel %vm1622, %v1527, %v1529
        %v1624 = vsel %vm1622, %v1529, %v1531
        %v1625 = vsel %vm1622, %v1533, %v1535
        %v1626 = vsel %vm1622, %v1535, %v1537
        %v1627 = vsel %vm1622, %v1539, %v1541
        %v1628 = vsel %vm1622, %v1541, %v1543
        %v1629 = vsel %vm1622, %v1545, %v1547
        %v1630 = vsel %vm1622, %v1547, %v1549
        %v1631 = vsel %vm1622, %v1551, %v1553
        %v1632 = vsel %vm1622, %v1553, %v1555
        %v1633 = vsel %vm1622, %v1557, %v1559
        %v1634 = vsel %vm1622, %v1559, %v1561
        %v1635 = vsel %vm1622, %v1563, %v1565
        %v1636 = vsel %vm1622, %v1565, %v1567
        %v1637 = vsel %vm1622, %v1569, %v1571
        %v1638 = vsel %vm1622, %v1571, %v1573
        %v1639 = vsel %vm1622, %v1575, %v1577
        %v1640 = vsel %vm1622, %v1577, %v1579
        %v1641 = vsel %vm1622, %v1581, %v1583
        %v1642 = vsel %vm1622, %v1583, %v1585
        %v1643 = vsel %vm1622, %v1587, %v1589
        %v1644 = vsel %vm1622, %v1589, %v1591
        %v1645 = vsel %vm1622, %v1593, %v1595
        %v1646 = vsel %vm1622, %v1595, %v1597
        %v1647 = vsel %vm1622, %v1599, %v1601
        %v1648 = vsel %vm1622, %v1601, %v1603
        %v1649 = vsel %vm1622, %v1605, %v1607
        %v1650 = vsel %vm1622, %v1607, %v1609
        %v1651 = vsel %vm1622, %v1611, %v1613
        %v1652 = vsel %vm1622, %v1613, %v1615
        %v1653 = vsel %vm1622, %v1617, %v1619
        %v1654 = vsel %vm1622, %v1619, %v1621
        %1687 = vmatprep.subr.bf16.mxu0 %v1624
        %1688 = vmatpush1.bf16.msra.mxu0 %v1623
        %1689 = vmatprep.subr.bf16.mxu0 %v1626
        %1690 = vmatpush1.bf16.msra.mxu0 %v1625
        %1691 = vmatprep.subr.bf16.mxu0 %v1628
        %1692 = vmatpush1.bf16.msra.mxu0 %v1627
        %1693 = vmatprep.subr.bf16.mxu0 %v1630
        %1694 = vmatpush1.bf16.msra.mxu0 %v1629
        %1695 = vmatprep.subr.bf16.mxu0 %v1632
        %1696 = vmatpush1.bf16.msra.mxu0 %v1631
        %1697 = vmatprep.subr.bf16.mxu0 %v1634
        %1698 = vmatpush1.bf16.msra.mxu0 %v1633
        %1699 = vmatprep.subr.bf16.mxu0 %v1636
        %1700 = vmatpush1.bf16.msra.mxu0 %v1635
        %1701 = vmatprep.subr.bf16.mxu0 %v1638
        %1702 = vmatpush1.bf16.msra.mxu0 %v1637
        %1703 = vmatprep.subr.bf16.mxu0 %v1640
        %1704 = vmatpush1.bf16.msra.mxu0 %v1639
        %1705 = vmatprep.subr.bf16.mxu0 %v1642
        %1706 = vmatpush1.bf16.msra.mxu0 %v1641
        %1707 = vmatprep.subr.bf16.mxu0 %v1644
        %1708 = vmatpush1.bf16.msra.mxu0 %v1643
        %1709 = vmatprep.subr.bf16.mxu0 %v1646
        %1710 = vmatpush1.bf16.msra.mxu0 %v1645
        %1711 = vmatprep.subr.bf16.mxu0 %v1648
        %1712 = vmatpush1.bf16.msra.mxu0 %v1647
        %1713 = vmatprep.subr.bf16.mxu0 %v1650
        %1714 = vmatpush1.bf16.msra.mxu0 %v1649
        %1715 = vmatprep.subr.bf16.mxu0 %v1652
        %1716 = vmatpush1.bf16.msra.mxu0 %v1651
        %1717 = vmatprep.subr.bf16.mxu0 %v1654
        %1718 = vmatpush1.bf16.msra.mxu0 %v1653
        %1719 = vmatprep.mubr.bf16.mxu0 %v1523
        %1720 = vmatmul.mubr.bf16.gmra.mrb[0].mxu0 %v1522
        %v1721 = vpop.f32.mrb[0].mxu0
        %v1722 = vadd.f32 0.0, %v1721
        %v1723 = vpop.f32.mrb[0].mxu0
        %v1724 = vadd.f32 0.0, %v1723
        %v1725 = vpop.f32.mrb[0].mxu0
        %v1726 = vpop.f32.mrb[0].mxu0
        %1727 = vdwg.mxu0
        %v1729 = vunpack.c.l.b16 %v1409
        %v1730 = vunpack.c.h.b16 %v1409
        %v1731 = vpack.c.b16 %v1729, %v1729
        %v1732 = vpack.c.b16 %v1730, %v1730
        %1735 = vmatprep.subr.bf16.mxu0 %v1239
        %1736 = vmatpush1.bf16.msra.mxu0 %v1238
        %1737 = vmatprep.subr.bf16.mxu0 %v1252
        %1738 = vmatpush1.bf16.msra.mxu0 %v1251
        %1739 = vmatprep.subr.bf16.mxu0 %v1263
        %1740 = vmatpush1.bf16.msra.mxu0 %v1262
        %1741 = vmatprep.subr.bf16.mxu0 %v1274
        %1742 = vmatpush1.bf16.msra.mxu0 %v1273
        %1743 = vmatprep.subr.bf16.mxu0 %v1285
        %1744 = vmatpush1.bf16.msra.mxu0 %v1284
        %1745 = vmatprep.subr.bf16.mxu0 %v1296
        %1746 = vmatpush1.bf16.msra.mxu0 %v1295
        %1747 = vmatprep.subr.bf16.mxu0 %v1307
        %1748 = vmatpush1.bf16.msra.mxu0 %v1306
        %1749 = vmatprep.subr.bf16.mxu0 %v1318
        %1750 = vmatpush1.bf16.msra.mxu0 %v1317
        %1751 = vmatprep.subr.bf16.mxu0 %v1329
        %1752 = vmatpush1.bf16.msra.mxu0 %v1328
        %1753 = vmatprep.subr.bf16.mxu0 %v1340
        %1754 = vmatpush1.bf16.msra.mxu0 %v1339
        %1755 = vmatprep.subr.bf16.mxu0 %v1351
        %1756 = vmatpush1.bf16.msra.mxu0 %v1350
        %1757 = vmatprep.subr.bf16.mxu0 %v1362
        %1758 = vmatpush1.bf16.msra.mxu0 %v1361
        %1759 = vmatprep.subr.bf16.mxu0 %v1373
        %1760 = vmatpush1.bf16.msra.mxu0 %v1372
        %1761 = vmatprep.subr.bf16.mxu0 %v1384
        %1762 = vmatpush1.bf16.msra.mxu0 %v1383
        %1763 = vmatprep.subr.bf16.mxu0 %v1395
        %1764 = vmatpush1.bf16.msra.mxu0 %v1394
        %1765 = vmatprep.subr.bf16.mxu0 %v1406
        %1766 = vmatpush1.bf16.msra.mxu0 %v1405
        %1767 = vmatprep.mubr.bf16.mxu0 %v1732
        %1768 = vmatmul.mubr.bf16.gmra.mrb[0].mxu0 %v1731
        %v1769 = vpop.f32.mrb[0].mxu0
        %v1770 = vadd.f32 %v1722, %v1769
        %v1771 = vpop.f32.mrb[0].mxu0
        %v1772 = vadd.f32 %v1724, %v1771
        %v1773 = vpop.f32.mrb[0].mxu0
        %v1774 = vpop.f32.mrb[0].mxu0
        %1775 = vdwg.mxu0
        %v1776 = vld [vmem:[#allocation11 + $0x28] sm:$0x33]
        %v1778 = vunpack.c.l.b16 %v1776
        %v1779 = vunpack.c.h.b16 %v1776
        %v1780 = vpack.c.b16 %v1778, %v1778
        %v1781 = vpack.c.b16 %v1779, %v1779
        %1784 = vrot.lane.b32.xlu0 %v1240, 53
        %v1785 = vpop.permute.xlu0 %1784
        %1786 = vrot.lane.b32.xlu0 %v1238, 53
        %v1787 = vpop.permute.xlu0 %1786
        %1788 = vrot.lane.b32.xlu0 %v1239, 53
        %v1789 = vpop.permute.xlu0 %1788
        %1790 = vrot.lane.b32.xlu0 %v1245, 53
        %v1791 = vpop.permute.xlu0 %1790
        %1792 = vrot.lane.b32.xlu0 %v1251, 53
        %v1793 = vpop.permute.xlu0 %1792
        %1794 = vrot.lane.b32.xlu0 %v1252, 53
        %v1795 = vpop.permute.xlu0 %1794
        %1796 = vrot.lane.b32.xlu0 %v1256, 53
        %v1797 = vpop.permute.xlu0 %1796
        %1798 = vrot.lane.b32.xlu0 %v1262, 53
        %v1799 = vpop.permute.xlu0 %1798
        %1800 = vrot.lane.b32.xlu0 %v1263, 53
        %v1801 = vpop.permute.xlu0 %1800
        %1802 = vrot.lane.b32.xlu0 %v1267, 53
        %v1803 = vpop.permute.xlu0 %1802
        %1804 = vrot.lane.b32.xlu0 %v1273, 53
        %v1805 = vpop.permute.xlu0 %1804
        %1806 = vrot.lane.b32.xlu0 %v1274, 53
        %v1807 = vpop.permute.xlu0 %1806
        %1808 = vrot.lane.b32.xlu0 %v1429, 53
        %v1809 = vpop.permute.xlu0 %1808
        %1810 = vrot.lane.b32.xlu0 %v1435, 53
        %v1811 = vpop.permute.xlu0 %1810
        %1812 = vrot.lane.b32.xlu0 %v1436, 53
        %v1813 = vpop.permute.xlu0 %1812
        %1814 = vrot.lane.b32.xlu0 %v1438, 53
        %v1815 = vpop.permute.xlu0 %1814
        %1816 = vrot.lane.b32.xlu0 %v1444, 53
        %v1817 = vpop.permute.xlu0 %1816
        %1818 = vrot.lane.b32.xlu0 %v1445, 53
        %v1819 = vpop.permute.xlu0 %1818
        %1820 = vrot.lane.b32.xlu0 %v1447, 53
        %v1821 = vpop.permute.xlu0 %1820
        %1822 = vrot.lane.b32.xlu0 %v1453, 53
        %v1823 = vpop.permute.xlu0 %1822
        %1824 = vrot.lane.b32.xlu0 %v1454, 53
        %v1825 = vpop.permute.xlu0 %1824
        %1826 = vrot.lane.b32.xlu0 %v1456, 53
        %v1827 = vpop.permute.xlu0 %1826
        %1828 = vrot.lane.b32.xlu0 %v1462, 53
        %v1829 = vpop.permute.xlu0 %1828
        %1830 = vrot.lane.b32.xlu0 %v1463, 53
        %v1831 = vpop.permute.xlu0 %1830
        %1832 = vrot.lane.b32.xlu0 %v1465, 53
        %v1833 = vpop.permute.xlu0 %1832
        %1834 = vrot.lane.b32.xlu0 %v1471, 53
        %v1835 = vpop.permute.xlu0 %1834
        %1836 = vrot.lane.b32.xlu0 %v1472, 53
        %v1837 = vpop.permute.xlu0 %1836
        %1838 = vrot.lane.b32.xlu0 %v1333, 53
        %v1839 = vpop.permute.xlu0 %1838
        %1840 = vrot.lane.b32.xlu0 %v1339, 53
        %v1841 = vpop.permute.xlu0 %1840
        %1842 = vrot.lane.b32.xlu0 %v1340, 53
        %v1843 = vpop.permute.xlu0 %1842
        %1844 = vrot.lane.b32.xlu0 %v1344, 53
        %v1845 = vpop.permute.xlu0 %1844
        %1846 = vrot.lane.b32.xlu0 %v1350, 53
        %v1847 = vpop.permute.xlu0 %1846
        %1848 = vrot.lane.b32.xlu0 %v1351, 53
        %v1849 = vpop.permute.xlu0 %1848
        %1850 = vrot.lane.b32.xlu0 %v1355, 53
        %v1851 = vpop.permute.xlu0 %1850
        %1852 = vrot.lane.b32.xlu0 %v1361, 53
        %v1853 = vpop.permute.xlu0 %1852
        %1854 = vrot.lane.b32.xlu0 %v1362, 53
        %v1855 = vpop.permute.xlu0 %1854
        %1856 = vrot.lane.b32.xlu0 %v1366, 53
        %v1857 = vpop.permute.xlu0 %1856
        %1858 = vrot.lane.b32.xlu0 %v1372, 53
        %v1859 = vpop.permute.xlu0 %1858
        %1860 = vrot.lane.b32.xlu0 %v1373, 53
        %v1861 = vpop.permute.xlu0 %1860
        %1862 = vrot.lane.b32.xlu0 %v1492, 53
        %v1863 = vpop.permute.xlu0 %1862
        %1864 = vrot.lane.b32.xlu0 %v1498, 53
        %v1865 = vpop.permute.xlu0 %1864
        %1866 = vrot.lane.b32.xlu0 %v1499, 53
        %v1867 = vpop.permute.xlu0 %1866
        %1868 = vrot.lane.b32.xlu0 %v1501, 53
        %v1869 = vpop.permute.xlu0 %1868
        %1870 = vrot.lane.b32.xlu0 %v1507, 53
        %v1871 = vpop.permute.xlu0 %1870
        %1872 = vrot.lane.b32.xlu0 %v1508, 53
        %v1873 = vpop.permute.xlu0 %1872
        %1874 = vrot.lane.b32.xlu0 %v1510, 53
        %v1875 = vpop.permute.xlu0 %1874
        %1876 = vrot.lane.b32.xlu0 %v1516, 53
        %v1877 = vpop.permute.xlu0 %1876
        %1878 = vrot.lane.b32.xlu0 %v1517, 53
        %v1879 = vpop.permute.xlu0 %1878
        %vm1880 = vcmask 433152
        %v1881 = vsel %vm1880, %v1785, %v1787
        %v1882 = vsel %vm1880, %v1787, %v1789
        %v1883 = vsel %vm1880, %v1791, %v1793
        %v1884 = vsel %vm1880, %v1793, %v1795
        %v1885 = vsel %vm1880, %v1797, %v1799
        %v1886 = vsel %vm1880, %v1799, %v1801
        %v1887 = vsel %vm1880, %v1803, %v1805
        %v1888 = vsel %vm1880, %v1805, %v1807
        %v1889 = vsel %vm1880, %v1809, %v1811
        %v1890 = vsel %vm1880, %v1811, %v1813
        %v1891 = vsel %vm1880, %v1815, %v1817
        %v1892 = vsel %vm1880, %v1817, %v1819
        %v1893 = vsel %vm1880, %v1821, %v1823
        %v1894 = vsel %vm1880, %v1823, %v1825
        %v1895 = vsel %vm1880, %v1827, %v1829
        %v1896 = vsel %vm1880, %v1829, %v1831
        %v1897 = vsel %vm1880, %v1833, %v1835
        %v1898 = vsel %vm1880, %v1835, %v1837
        %v1899 = vsel %vm1880, %v1839, %v1841
        %v1900 = vsel %vm1880, %v1841, %v1843
        %v1901 = vsel %vm1880, %v1845, %v1847
        %v1902 = vsel %vm1880, %v1847, %v1849
        %v1903 = vsel %vm1880, %v1851, %v1853
        %v1904 = vsel %vm1880, %v1853, %v1855
        %v1905 = vsel %vm1880, %v1857, %v1859
        %v1906 = vsel %vm1880, %v1859, %v1861
        %v1907 = vsel %vm1880, %v1863, %v1865
        %v1908 = vsel %vm1880, %v1865, %v1867
        %v1909 = vsel %vm1880, %v1869, %v1871
        %v1910 = vsel %vm1880, %v1871, %v1873
        %v1911 = vsel %vm1880, %v1875, %v1877
        %v1912 = vsel %vm1880, %v1877, %v1879
        %1945 = vmatprep.subr.bf16.mxu0 %v1882
        %1946 = vmatpush1.bf16.msra.mxu0 %v1881
        %1947 = vmatprep.subr.bf16.mxu0 %v1884
        %1948 = vmatpush1.bf16.msra.mxu0 %v1883
        %1949 = vmatprep.subr.bf16.mxu0 %v1886
        %1950 = vmatpush1.bf16.msra.mxu0 %v1885
        %1951 = vmatprep.subr.bf16.mxu0 %v1888
        %1952 = vmatpush1.bf16.msra.mxu0 %v1887
        %1953 = vmatprep.subr.bf16.mxu0 %v1890
        %1954 = vmatpush1.bf16.msra.mxu0 %v1889
        %1955 = vmatprep.subr.bf16.mxu0 %v1892
        %1956 = vmatpush1.bf16.msra.mxu0 %v1891
        %1957 = vmatprep.subr.bf16.mxu0 %v1894
        %1958 = vmatpush1.bf16.msra.mxu0 %v1893
        %1959 = vmatprep.subr.bf16.mxu0 %v1896
        %1960 = vmatpush1.bf16.msra.mxu0 %v1895
        %1961 = vmatprep.subr.bf16.mxu0 %v1898
        %1962 = vmatpush1.bf16.msra.mxu0 %v1897
        %1963 = vmatprep.subr.bf16.mxu0 %v1900
        %1964 = vmatpush1.bf16.msra.mxu0 %v1899
        %1965 = vmatprep.subr.bf16.mxu0 %v1902
        %1966 = vmatpush1.bf16.msra.mxu0 %v1901
        %1967 = vmatprep.subr.bf16.mxu0 %v1904
        %1968 = vmatpush1.bf16.msra.mxu0 %v1903
        %1969 = vmatprep.subr.bf16.mxu0 %v1906
        %1970 = vmatpush1.bf16.msra.mxu0 %v1905
        %1971 = vmatprep.subr.bf16.mxu0 %v1908
        %1972 = vmatpush1.bf16.msra.mxu0 %v1907
        %1973 = vmatprep.subr.bf16.mxu0 %v1910
        %1974 = vmatpush1.bf16.msra.mxu0 %v1909
        %1975 = vmatprep.subr.bf16.mxu0 %v1912
        %1976 = vmatpush1.bf16.msra.mxu0 %v1911
        %1977 = vmatprep.mubr.bf16.mxu0 %v1781
        %1978 = vmatmul.mubr.bf16.gmra.mrb[0].mxu0 %v1780
        %v1979 = vpop.f32.mrb[0].mxu0
        %v1980 = vadd.f32 0.0, %v1979
        %v1981 = vpop.f32.mrb[0].mxu0
        %v1982 = vadd.f32 0.0, %v1981
        %v1983 = vpop.f32.mrb[0].mxu0
        %v1984 = vpop.f32.mrb[0].mxu0
        %1985 = vdwg.mxu0
        %v1986 = vadd.f32 %v1770, %v1980
        %v1987 = vadd.f32 %v1772, %v1982
        %v1988 = vld [vmem:[#allocation11 + $0x30] sm:$0x33]
        %v1990 = vunpack.c.l.b16 %v1988
        %v1991 = vunpack.c.h.b16 %v1988
        %v1992 = vpack.c.b16 %v1990, %v1990
        %v1993 = vpack.c.b16 %v1991, %v1991
        %1996 = vrot.lane.b32.xlu0 %v1240, 83
        %v1997 = vpop.permute.xlu0 %1996
        %1998 = vrot.lane.b32.xlu0 %v1238, 83
        %v1999 = vpop.permute.xlu0 %1998
        %2000 = vrot.lane.b32.xlu0 %v1239, 83
        %v2001 = vpop.permute.xlu0 %2000
        %2002 = vrot.lane.b32.xlu0 %v1245, 83
        %v2003 = vpop.permute.xlu0 %2002
        %2004 = vrot.lane.b32.xlu0 %v1251, 83
        %v2005 = vpop.permute.xlu0 %2004
        %2006 = vrot.lane.b32.xlu0 %v1252, 83
        %v2007 = vpop.permute.xlu0 %2006
        %2008 = vrot.lane.b32.xlu0 %v1256, 83
        %v2009 = vpop.permute.xlu0 %2008
        %2010 = vrot.lane.b32.xlu0 %v1262, 83
        %v2011 = vpop.permute.xlu0 %2010
        %2012 = vrot.lane.b32.xlu0 %v1263, 83
        %v2013 = vpop.permute.xlu0 %2012
        %2014 = vrot.lane.b32.xlu0 %v1267, 83
        %v2015 = vpop.permute.xlu0 %2014
        %2016 = vrot.lane.b32.xlu0 %v1273, 83
        %v2017 = vpop.permute.xlu0 %2016
        %2018 = vrot.lane.b32.xlu0 %v1274, 83
        %v2019 = vpop.permute.xlu0 %2018
        %2020 = vrot.lane.b32.xlu0 %v1278, 83
        %v2021 = vpop.permute.xlu0 %2020
        %2022 = vrot.lane.b32.xlu0 %v1284, 83
        %v2023 = vpop.permute.xlu0 %2022
        %2024 = vrot.lane.b32.xlu0 %v1285, 83
        %v2025 = vpop.permute.xlu0 %2024
        %2026 = vrot.lane.b32.xlu0 %v1289, 83
        %v2027 = vpop.permute.xlu0 %2026
        %2028 = vrot.lane.b32.xlu0 %v1295, 83
        %v2029 = vpop.permute.xlu0 %2028
        %2030 = vrot.lane.b32.xlu0 %v1296, 83
        %v2031 = vpop.permute.xlu0 %2030
        %2032 = vrot.lane.b32.xlu0 %v1447, 83
        %v2033 = vpop.permute.xlu0 %2032
        %2034 = vrot.lane.b32.xlu0 %v1453, 83
        %v2035 = vpop.permute.xlu0 %2034
        %2036 = vrot.lane.b32.xlu0 %v1454, 83
        %v2037 = vpop.permute.xlu0 %2036
        %2038 = vrot.lane.b32.xlu0 %v1456, 83
        %v2039 = vpop.permute.xlu0 %2038
        %2040 = vrot.lane.b32.xlu0 %v1462, 83
        %v2041 = vpop.permute.xlu0 %2040
        %2042 = vrot.lane.b32.xlu0 %v1463, 83
        %v2043 = vpop.permute.xlu0 %2042
        %2044 = vrot.lane.b32.xlu0 %v1465, 83
        %v2045 = vpop.permute.xlu0 %2044
        %2046 = vrot.lane.b32.xlu0 %v1471, 83
        %v2047 = vpop.permute.xlu0 %2046
        %2048 = vrot.lane.b32.xlu0 %v1472, 83
        %v2049 = vpop.permute.xlu0 %2048
        %2050 = vrot.lane.b32.xlu0 %v1333, 83
        %v2051 = vpop.permute.xlu0 %2050
        %2052 = vrot.lane.b32.xlu0 %v1339, 83
        %v2053 = vpop.permute.xlu0 %2052
        %2054 = vrot.lane.b32.xlu0 %v1340, 83
        %v2055 = vpop.permute.xlu0 %2054
        %2056 = vrot.lane.b32.xlu0 %v1344, 83
        %v2057 = vpop.permute.xlu0 %2056
        %2058 = vrot.lane.b32.xlu0 %v1350, 83
        %v2059 = vpop.permute.xlu0 %2058
        %2060 = vrot.lane.b32.xlu0 %v1351, 83
        %v2061 = vpop.permute.xlu0 %2060
        %2062 = vrot.lane.b32.xlu0 %v1355, 83
        %v2063 = vpop.permute.xlu0 %2062
        %2064 = vrot.lane.b32.xlu0 %v1361, 83
        %v2065 = vpop.permute.xlu0 %2064
        %2066 = vrot.lane.b32.xlu0 %v1362, 83
        %v2067 = vpop.permute.xlu0 %2066
        %2068 = vrot.lane.b32.xlu0 %v1366, 83
        %v2069 = vpop.permute.xlu0 %2068
        %2070 = vrot.lane.b32.xlu0 %v1372, 83
        %v2071 = vpop.permute.xlu0 %2070
        %2072 = vrot.lane.b32.xlu0 %v1373, 83
        %v2073 = vpop.permute.xlu0 %2072
        %2074 = vrot.lane.b32.xlu0 %v1377, 83
        %v2075 = vpop.permute.xlu0 %2074
        %2076 = vrot.lane.b32.xlu0 %v1383, 83
        %v2077 = vpop.permute.xlu0 %2076
        %2078 = vrot.lane.b32.xlu0 %v1384, 83
        %v2079 = vpop.permute.xlu0 %2078
        %2080 = vrot.lane.b32.xlu0 %v1388, 83
        %v2081 = vpop.permute.xlu0 %2080
        %2082 = vrot.lane.b32.xlu0 %v1394, 83
        %v2083 = vpop.permute.xlu0 %2082
        %2084 = vrot.lane.b32.xlu0 %v1395, 83
        %v2085 = vpop.permute.xlu0 %2084
        %2086 = vrot.lane.b32.xlu0 %v1510, 83
        %v2087 = vpop.permute.xlu0 %2086
        %2088 = vrot.lane.b32.xlu0 %v1516, 83
        %v2089 = vpop.permute.xlu0 %2088
        %2090 = vrot.lane.b32.xlu0 %v1517, 83
        %v2091 = vpop.permute.xlu0 %2090
        %vm2092 = vcmask 678912
        %v2093 = vsel %vm2092, %v1997, %v1999
        %v2094 = vsel %vm2092, %v1999, %v2001
        %v2095 = vsel %vm2092, %v2003, %v2005
        %v2096 = vsel %vm2092, %v2005, %v2007
        %v2097 = vsel %vm2092, %v2009, %v2011
        %v2098 = vsel %vm2092, %v2011, %v2013
        %v2099 = vsel %vm2092, %v2015, %v2017
        %v2100 = vsel %vm2092, %v2017, %v2019
        %v2101 = vsel %vm2092, %v2021, %v2023
        %v2102 = vsel %vm2092, %v2023, %v2025
        %v2103 = vsel %vm2092, %v2027, %v2029
        %v2104 = vsel %vm2092, %v2029, %v2031
        %v2105 = vsel %vm2092, %v2033, %v2035
        %v2106 = vsel %vm2092, %v2035, %v2037
        %v2107 = vsel %vm2092, %v2039, %v2041
        %v2108 = vsel %vm2092, %v2041, %v2043
        %v2109 = vsel %vm2092, %v2045, %v2047
        %v2110 = vsel %vm2092, %v2047, %v2049
        %v2111 = vsel %vm2092, %v2051, %v2053
        %v2112 = vsel %vm2092, %v2053, %v2055
        %v2113 = vsel %vm2092, %v2057, %v2059
        %v2114 = vsel %vm2092, %v2059, %v2061
        %v2115 = vsel %vm2092, %v2063, %v2065
        %v2116 = vsel %vm2092, %v2065, %v2067
        %v2117 = vsel %vm2092, %v2069, %v2071
        %v2118 = vsel %vm2092, %v2071, %v2073
        %v2119 = vsel %vm2092, %v2075, %v2077
        %v2120 = vsel %vm2092, %v2077, %v2079
        %v2121 = vsel %vm2092, %v2081, %v2083
        %v2122 = vsel %vm2092, %v2083, %v2085
        %v2123 = vsel %vm2092, %v2087, %v2089
        %v2124 = vsel %vm2092, %v2089, %v2091
        %2157 = vmatprep.subr.bf16.mxu0 %v2094
        %2158 = vmatpush1.bf16.msra.mxu0 %v2093
        %2159 = vmatprep.subr.bf16.mxu0 %v2096
        %2160 = vmatpush1.bf16.msra.mxu0 %v2095
        %2161 = vmatprep.subr.bf16.mxu0 %v2098
        %2162 = vmatpush1.bf16.msra.mxu0 %v2097
        %2163 = vmatprep.subr.bf16.mxu0 %v2100
        %2164 = vmatpush1.bf16.msra.mxu0 %v2099
        %2165 = vmatprep.subr.bf16.mxu0 %v2102
        %2166 = vmatpush1.bf16.msra.mxu0 %v2101
        %2167 = vmatprep.subr.bf16.mxu0 %v2104
        %2168 = vmatpush1.bf16.msra.mxu0 %v2103
        %2169 = vmatprep.subr.bf16.mxu0 %v2106
        %2170 = vmatpush1.bf16.msra.mxu0 %v2105
        %2171 = vmatprep.subr.bf16.mxu0 %v2108
        %2172 = vmatpush1.bf16.msra.mxu0 %v2107
        %2173 = vmatprep.subr.bf16.mxu0 %v2110
        %2174 = vmatpush1.bf16.msra.mxu0 %v2109
        %2175 = vmatprep.subr.bf16.mxu0 %v2112
        %2176 = vmatpush1.bf16.msra.mxu0 %v2111
        %2177 = vmatprep.subr.bf16.mxu0 %v2114
        %2178 = vmatpush1.bf16.msra.mxu0 %v2113
        %2179 = vmatprep.subr.bf16.mxu0 %v2116
        %2180 = vmatpush1.bf16.msra.mxu0 %v2115
        %2181 = vmatprep.subr.bf16.mxu0 %v2118
        %2182 = vmatpush1.bf16.msra.mxu0 %v2117
        %2183 = vmatprep.subr.bf16.mxu0 %v2120
        %2184 = vmatpush1.bf16.msra.mxu0 %v2119
        %2185 = vmatprep.subr.bf16.mxu0 %v2122
        %2186 = vmatpush1.bf16.msra.mxu0 %v2121
        %2187 = vmatprep.subr.bf16.mxu0 %v2124
        %2188 = vmatpush1.bf16.msra.mxu0 %v2123
        %2189 = vmatprep.mubr.bf16.mxu0 %v1993
        %2190 = vmatmul.mubr.bf16.gmra.mrb[0].mxu0 %v1992
        %v2191 = vpop.f32.mrb[0].mxu0
        %v2192 = vadd.f32 0.0, %v2191
        %v2193 = vpop.f32.mrb[0].mxu0
        %v2194 = vadd.f32 0.0, %v2193
        %v2195 = vpop.f32.mrb[0].mxu0
        %v2196 = vpop.f32.mrb[0].mxu0
        %2197 = vdwg.mxu0
        %v2198 = vadd.f32 %v1986, %v2192
        %v2199 = vadd.f32 %v1987, %v2194
        %v2200 = vld [vmem:[#allocation3 + $0x8] sm:$0xff]
        %v2201 = vld [vmem:[#allocation3 + $0x10] sm:$0xff]
        %v2202 = vld [vmem:[#allocation3] sm:$0xff]
        %2205 = vrot.lane.b32.xlu0 %v2200, 15
        %v2206 = vpop.permute.xlu0 %2205
        %2207 = vrot.lane.b32.xlu0 %v2201, 15
        %v2208 = vpop.permute.xlu0 %2207
        %v2209 = vsel %vm1470, %v2206, %v2208
        %2211 = vrot.lane.b32.xlu0 %v2202, 16
        %v2212 = vpop.permute.xlu0 %2211
        %2213 = vrot.lane.b32.xlu0 %v2200, 16
        %v2214 = vpop.permute.xlu0 %2213
        %2215 = vrot.lane.b32.xlu0 %v2201, 16
        %v2216 = vpop.permute.xlu0 %2215
        %v2217 = vsel %vm1338, %v2212, %v2214
        %v2218 = vsel %vm1338, %v2214, %v2216
        %2219 = vrot.lane.b32.xlu0 %v2202, 17
        %v2220 = vpop.permute.xlu0 %2219
        %2221 = vrot.lane.b32.xlu0 %v2200, 17
        %v2222 = vpop.permute.xlu0 %2221
        %2223 = vrot.lane.b32.xlu0 %v2201, 17
        %v2224 = vpop.permute.xlu0 %2223
        %v2225 = vsel %vm1349, %v2220, %v2222
        %v2226 = vsel %vm1349, %v2222, %v2224
        %2227 = vrot.lane.b32.xlu0 %v2202, 18
        %v2228 = vpop.permute.xlu0 %2227
        %2229 = vrot.lane.b32.xlu0 %v2200, 18
        %v2230 = vpop.permute.xlu0 %2229
        %2231 = vrot.lane.b32.xlu0 %v2201, 18
        %v2232 = vpop.permute.xlu0 %2231
        %v2233 = vsel %vm1360, %v2228, %v2230
        %v2234 = vsel %vm1360, %v2230, %v2232
        %2235 = vrot.lane.b32.xlu0 %v2202, 19
        %v2236 = vpop.permute.xlu0 %2235
        %2237 = vrot.lane.b32.xlu0 %v2200, 19
        %v2238 = vpop.permute.xlu0 %2237
        %2239 = vrot.lane.b32.xlu0 %v2201, 19
        %v2240 = vpop.permute.xlu0 %2239
        %v2241 = vsel %vm1371, %v2236, %v2238
        %v2242 = vsel %vm1371, %v2238, %v2240
        %2243 = vrot.lane.b32.xlu0 %v2202, 20
        %v2244 = vpop.permute.xlu0 %2243
        %2245 = vrot.lane.b32.xlu0 %v2200, 20
        %v2246 = vpop.permute.xlu0 %2245
        %2247 = vrot.lane.b32.xlu0 %v2201, 20
        %v2248 = vpop.permute.xlu0 %2247
        %v2249 = vsel %vm1382, %v2244, %v2246
        %v2250 = vsel %vm1382, %v2246, %v2248
        %2251 = vrot.lane.b32.xlu0 %v2202, 21
        %v2252 = vpop.permute.xlu0 %2251
        %2253 = vrot.lane.b32.xlu0 %v2200, 21
        %v2254 = vpop.permute.xlu0 %2253
        %2255 = vrot.lane.b32.xlu0 %v2201, 21
        %v2256 = vpop.permute.xlu0 %2255
        %v2257 = vsel %vm1393, %v2252, %v2254
        %v2258 = vsel %vm1393, %v2254, %v2256
        %2259 = vrot.lane.b32.xlu0 %v2202, 22
        %v2260 = vpop.permute.xlu0 %2259
        %2261 = vrot.lane.b32.xlu0 %v2200, 22
        %v2262 = vpop.permute.xlu0 %2261
        %2263 = vrot.lane.b32.xlu0 %v2201, 22
        %v2264 = vpop.permute.xlu0 %2263
        %v2265 = vsel %vm1404, %v2260, %v2262
        %v2266 = vsel %vm1404, %v2262, %v2264
        %v2267 = vld [vmem:[#allocation11 + $0x38] sm:$0x33]
        %v2269 = vunpack.c.l.b16 %v2267
        %v2270 = vunpack.c.h.b16 %v2267
        %v2271 = vpack.c.b16 %v2269, %v2269
        %v2272 = vpack.c.b16 %v2270, %v2270
        %2275 = vrot.lane.b32.xlu0 %v1240, 113
        %v2276 = vpop.permute.xlu0 %2275
        %2277 = vrot.lane.b32.xlu0 %v1238, 113
        %v2278 = vpop.permute.xlu0 %2277
        %2279 = vrot.lane.b32.xlu0 %v1239, 113
        %v2280 = vpop.permute.xlu0 %2279
        %2281 = vrot.lane.b32.xlu0 %v1245, 113
        %v2282 = vpop.permute.xlu0 %2281
        %2283 = vrot.lane.b32.xlu0 %v1251, 113
        %v2284 = vpop.permute.xlu0 %2283
        %2285 = vrot.lane.b32.xlu0 %v1252, 113
        %v2286 = vpop.permute.xlu0 %2285
        %2287 = vrot.lane.b32.xlu0 %v1256, 113
        %v2288 = vpop.permute.xlu0 %2287
        %2289 = vrot.lane.b32.xlu0 %v1262, 113
        %v2290 = vpop.permute.xlu0 %2289
        %2291 = vrot.lane.b32.xlu0 %v1263, 113
        %v2292 = vpop.permute.xlu0 %2291
        %2293 = vrot.lane.b32.xlu0 %v1267, 113
        %v2294 = vpop.permute.xlu0 %2293
        %2295 = vrot.lane.b32.xlu0 %v1273, 113
        %v2296 = vpop.permute.xlu0 %2295
        %2297 = vrot.lane.b32.xlu0 %v1274, 113
        %v2298 = vpop.permute.xlu0 %2297
        %2299 = vrot.lane.b32.xlu0 %v1278, 113
        %v2300 = vpop.permute.xlu0 %2299
        %2301 = vrot.lane.b32.xlu0 %v1284, 113
        %v2302 = vpop.permute.xlu0 %2301
        %2303 = vrot.lane.b32.xlu0 %v1285, 113
        %v2304 = vpop.permute.xlu0 %2303
        %2305 = vrot.lane.b32.xlu0 %v1289, 113
        %v2306 = vpop.permute.xlu0 %2305
        %2307 = vrot.lane.b32.xlu0 %v1295, 113
        %v2308 = vpop.permute.xlu0 %2307
        %2309 = vrot.lane.b32.xlu0 %v1296, 113
        %v2310 = vpop.permute.xlu0 %2309
        %2311 = vrot.lane.b32.xlu0 %v1300, 113
        %v2312 = vpop.permute.xlu0 %2311
        %2313 = vrot.lane.b32.xlu0 %v1306, 113
        %v2314 = vpop.permute.xlu0 %2313
        %2315 = vrot.lane.b32.xlu0 %v1307, 113
        %v2316 = vpop.permute.xlu0 %2315
        %2317 = vrot.lane.b32.xlu0 %v1311, 113
        %v2318 = vpop.permute.xlu0 %2317
        %2319 = vrot.lane.b32.xlu0 %v1317, 113
        %v2320 = vpop.permute.xlu0 %2319
        %2321 = vrot.lane.b32.xlu0 %v1318, 113
        %v2322 = vpop.permute.xlu0 %2321
        %2323 = vrot.lane.b32.xlu0 %v2206, 113
        %v2324 = vpop.permute.xlu0 %2323
        %2325 = vrot.lane.b32.xlu0 %v2209, 113
        %v2326 = vpop.permute.xlu0 %2325
        %2327 = vrot.lane.b32.xlu0 %v2208, 113
        %v2328 = vpop.permute.xlu0 %2327
        %2329 = vrot.lane.b32.xlu0 %v2217, 113
        %v2330 = vpop.permute.xlu0 %2329
        %2331 = vrot.lane.b32.xlu0 %v2218, 113
        %v2332 = vpop.permute.xlu0 %2331
        %2333 = vrot.lane.b32.xlu0 %v2216, 113
        %v2334 = vpop.permute.xlu0 %2333
        %2335 = vrot.lane.b32.xlu0 %v2225, 113
        %v2336 = vpop.permute.xlu0 %2335
        %2337 = vrot.lane.b32.xlu0 %v2226, 113
        %v2338 = vpop.permute.xlu0 %2337
        %2339 = vrot.lane.b32.xlu0 %v2224, 113
        %v2340 = vpop.permute.xlu0 %2339
        %2341 = vrot.lane.b32.xlu0 %v2233, 113
        %v2342 = vpop.permute.xlu0 %2341
        %2343 = vrot.lane.b32.xlu0 %v2234, 113
        %v2344 = vpop.permute.xlu0 %2343
        %2345 = vrot.lane.b32.xlu0 %v2232, 113
        %v2346 = vpop.permute.xlu0 %2345
        %2347 = vrot.lane.b32.xlu0 %v2241, 113
        %v2348 = vpop.permute.xlu0 %2347
        %2349 = vrot.lane.b32.xlu0 %v2242, 113
        %v2350 = vpop.permute.xlu0 %2349
        %2351 = vrot.lane.b32.xlu0 %v2240, 113
        %v2352 = vpop.permute.xlu0 %2351
        %2353 = vrot.lane.b32.xlu0 %v2249, 113
        %v2354 = vpop.permute.xlu0 %2353
        %2355 = vrot.lane.b32.xlu0 %v2250, 113
        %v2356 = vpop.permute.xlu0 %2355
        %2357 = vrot.lane.b32.xlu0 %v2248, 113
        %v2358 = vpop.permute.xlu0 %2357
        %2359 = vrot.lane.b32.xlu0 %v2257, 113
        %v2360 = vpop.permute.xlu0 %2359
        %2361 = vrot.lane.b32.xlu0 %v2258, 113
        %v2362 = vpop.permute.xlu0 %2361
        %2363 = vrot.lane.b32.xlu0 %v2256, 113
        %v2364 = vpop.permute.xlu0 %2363
        %2365 = vrot.lane.b32.xlu0 %v2265, 113
        %v2366 = vpop.permute.xlu0 %2365
        %2367 = vrot.lane.b32.xlu0 %v2266, 113
        %v2368 = vpop.permute.xlu0 %2367
        %2369 = vrot.lane.b32.xlu0 %v2264, 113
        %v2370 = vpop.permute.xlu0 %2369
        %v2371 = vsel %vm523, %v2276, %v2278
        %v2372 = vsel %vm523, %v2278, %v2280
        %v2373 = vsel %vm523, %v2282, %v2284
        %v2374 = vsel %vm523, %v2284, %v2286
        %v2375 = vsel %vm523, %v2288, %v2290
        %v2376 = vsel %vm523, %v2290, %v2292
        %v2377 = vsel %vm523, %v2294, %v2296
        %v2378 = vsel %vm523, %v2296, %v2298
        %v2379 = vsel %vm523, %v2300, %v2302
        %v2380 = vsel %vm523, %v2302, %v2304
        %v2381 = vsel %vm523, %v2306, %v2308
        %v2382 = vsel %vm523, %v2308, %v2310
        %v2383 = vsel %vm523, %v2312, %v2314
        %v2384 = vsel %vm523, %v2314, %v2316
        %v2385 = vsel %vm523, %v2318, %v2320
        %v2386 = vsel %vm523, %v2320, %v2322
        %v2387 = vsel %vm523, %v2324, %v2326
        %v2388 = vsel %vm523, %v2326, %v2328
        %v2389 = vsel %vm523, %v2330, %v2332
        %v2390 = vsel %vm523, %v2332, %v2334
        %v2391 = vsel %vm523, %v2336, %v2338
        %v2392 = vsel %vm523, %v2338, %v2340
        %v2393 = vsel %vm523, %v2342, %v2344
        %v2394 = vsel %vm523, %v2344, %v2346
        %v2395 = vsel %vm523, %v2348, %v2350
        %v2396 = vsel %vm523, %v2350, %v2352
        %v2397 = vsel %vm523, %v2354, %v2356
        %v2398 = vsel %vm523, %v2356, %v2358
        %v2399 = vsel %vm523, %v2360, %v2362
        %v2400 = vsel %vm523, %v2362, %v2364
        %v2401 = vsel %vm523, %v2366, %v2368
        %v2402 = vsel %vm523, %v2368, %v2370
        %2435 = vmatprep.subr.bf16.mxu0 %v2372
        %2436 = vmatpush1.bf16.msra.mxu0 %v2371
        %2437 = vmatprep.subr.bf16.mxu0 %v2374
        %2438 = vmatpush1.bf16.msra.mxu0 %v2373
        %2439 = vmatprep.subr.bf16.mxu0 %v2376
        %2440 = vmatpush1.bf16.msra.mxu0 %v2375
        %2441 = vmatprep.subr.bf16.mxu0 %v2378
        %2442 = vmatpush1.bf16.msra.mxu0 %v2377
        %2443 = vmatprep.subr.bf16.mxu0 %v2380
        %2444 = vmatpush1.bf16.msra.mxu0 %v2379
        %2445 = vmatprep.subr.bf16.mxu0 %v2382
        %2446 = vmatpush1.bf16.msra.mxu0 %v2381
        %2447 = vmatprep.subr.bf16.mxu0 %v2384
        %2448 = vmatpush1.bf16.msra.mxu0 %v2383
        %2449 = vmatprep.subr.bf16.mxu0 %v2386
        %2450 = vmatpush1.bf16.msra.mxu0 %v2385
        %2451 = vmatprep.subr.bf16.mxu0 %v2388
        %2452 = vmatpush1.bf16.msra.mxu0 %v2387
        %2453 = vmatprep.subr.bf16.mxu0 %v2390
        %2454 = vmatpush1.bf16.msra.mxu0 %v2389
        %2455 = vmatprep.subr.bf16.mxu0 %v2392
        %2456 = vmatpush1.bf16.msra.mxu0 %v2391
        %2457 = vmatprep.subr.bf16.mxu0 %v2394
        %2458 = vmatpush1.bf16.msra.mxu0 %v2393
        %2459 = vmatprep.subr.bf16.mxu0 %v2396
        %2460 = vmatpush1.bf16.msra.mxu0 %v2395
        %2461 = vmatprep.subr.bf16.mxu0 %v2398
        %2462 = vmatpush1.bf16.msra.mxu0 %v2397
        %2463 = vmatprep.subr.bf16.mxu0 %v2400
        %2464 = vmatpush1.bf16.msra.mxu0 %v2399
        %2465 = vmatprep.subr.bf16.mxu0 %v2402
        %2466 = vmatpush1.bf16.msra.mxu0 %v2401
        %2467 = vmatprep.mubr.bf16.mxu0 %v2272
        %2468 = vmatmul.mubr.bf16.gmra.mrb[0].mxu0 %v2271
        %v2469 = vpop.f32.mrb[0].mxu0
        %v2470 = vadd.f32 0.0, %v2469
        %v2471 = vpop.f32.mrb[0].mxu0
        %v2472 = vadd.f32 0.0, %v2471
        %v2473 = vpop.f32.mrb[0].mxu0
        %v2474 = vpop.f32.mrb[0].mxu0
        %2475 = vdwg.mxu0
        %v2476 = vadd.f32 %v2198, %v2470
        %v2477 = vadd.f32 %v2199, %v2472
        %v2478 = vld [vmem:[#allocation11 + $0x40] sm:$0x3]
        %2479 = vrot.lane.b32.xlu0 %v2202, 8
        %v2480 = vpop.permute.xlu0 %2479
        %2481 = vrot.lane.b32.xlu0 %v2200, 8
        %v2482 = vpop.permute.xlu0 %2481
        %2483 = vrot.lane.b32.xlu0 %v2201, 8
        %v2484 = vpop.permute.xlu0 %2483
        %v2485 = vsel %vm1327, %v2480, %v2482
        %v2486 = vsel %vm1327, %v2482, %v2484
        %v2490 = vsel %vm710, %v2478, 0
        %2492 = vmatprep.subr.bf16.mxu0 %v2486
        %2493 = vmatpush1.bf16.msra.mxu0 %v2485
        %2494 = vmatprep.subr.bf16.mxu0 0
        %2495 = vmatpush1.bf16.msra.mxu0 0
        %2496 = vmatprep.subr.bf16.mxu0 0
        %2497 = vmatpush1.bf16.msra.mxu0 0
        %2498 = vmatprep.subr.bf16.mxu0 0
        %2499 = vmatpush1.bf16.msra.mxu0 0
        %2500 = vmatprep.subr.bf16.mxu0 0
        %2501 = vmatpush1.bf16.msra.mxu0 0
        %2502 = vmatprep.subr.bf16.mxu0 0
        %2503 = vmatpush1.bf16.msra.mxu0 0
        %2504 = vmatprep.subr.bf16.mxu0 0
        %2505 = vmatpush1.bf16.msra.mxu0 0
        %2506 = vmatprep.subr.bf16.mxu0 0
        %2507 = vmatpush1.bf16.msra.mxu0 0
        %2508 = vmatprep.subr.bf16.mxu0 0
        %2509 = vmatpush1.bf16.msra.mxu0 0
        %2510 = vmatprep.subr.bf16.mxu0 0
        %2511 = vmatpush1.bf16.msra.mxu0 0
        %2512 = vmatprep.subr.bf16.mxu0 0
        %2513 = vmatpush1.bf16.msra.mxu0 0
        %2514 = vmatprep.subr.bf16.mxu0 0
        %2515 = vmatpush1.bf16.msra.mxu0 0
        %2516 = vmatprep.subr.bf16.mxu0 0
        %2517 = vmatpush1.bf16.msra.mxu0 0
        %2518 = vmatprep.subr.bf16.mxu0 0
        %2519 = vmatpush1.bf16.msra.mxu0 0
        %2520 = vmatprep.subr.bf16.mxu0 0
        %2521 = vmatpush1.bf16.msra.mxu0 0
        %2522 = vmatprep.subr.bf16.mxu0 0
        %2523 = vmatpush1.bf16.msra.mxu0 0
        %2524 = vmatprep.mubr.bf16.mxu0 0
        %2525 = vmatmul.mubr.bf16.gmra.mrb[0].mxu0 %v2490
        %v2526 = vpop.f32.mrb[0].mxu0
        %v2527 = vadd.f32 0.0, %v2526
        %v2528 = vpop.f32.mrb[0].mxu0
        %v2529 = vadd.f32 0.0, %v2528
        %v2530 = vpop.f32.mrb[0].mxu0
        %v2531 = vpop.f32.mrb[0].mxu0
        %2532 = vdwg.mxu0
        %v2533 = vadd.f32 %v2476, %v2527
        %v2534 = vadd.f32 %v2477, %v2529
        %v2535 = vld [vmem:[#allocation12] sm:$0x7]
        %2537 = vset.pattern.permute.xlu0 5
        %2538 = vperm.xlu0 %2537, %v2535
        %v2539 = vpop.permute.xlu0 %2538
        %v2541 = vadd.f32 %v2533, %v2539
        %v2542 = vadd.f32 %v2534, %v2539
        %v2545 = vcombine.low %v2541, %v2542
        %2547 = vst [vmem:[%s294] sm:$0x77] %v2545
        %s2548 = sand.u32 %s143, 1
        %s2549 = scalar_lea.sflag [#allocation6], %s2548
        %s2550 = sand.u32 %s143, 1
        %s2551 = smul.addr %s2550, 8
        %s2552 = scalar_lea.vmem [#allocation14], %s2551
        // Predicated region
        $region61: #{fsrcnn_forward.1} parent=39 // pred_check
          %p2553 = pneg %p153
        $region62: #{fsrcnn_forward.1} parent=39 // pred_check_branch
          %2555 = sbr.rel (%p2553) target = $region64
        $region63: #{fsrcnn_forward.1} parent=39 // pred_region
          %s2557 = ssub.s32 128, 128
          %2558 = vsyncadd %s2549, %s2557
          %s2559 = smul.addr %s25, 2
          %s2560 = smul.addr %s2559, 64
          %s2561 = scalar_lea.hbm %s5, %s2560
          %s2563 = sshll.u32 %s2552, 4
          %s2564 = int_to_ptr.vmem [resolvable:$true] %s2563
          %2566 = dma.vmem_to_hbm [thread:$0]  %s2564, 128, %s2561, %s2549
        $region64: #{fsrcnn_forward.1} parent=39 // pred_fallthru
          _
      $region40: #{fsrcnn_forward.1} parent=5 // pred_fallthru
        _
      %p2567 = scmp.le.s32.totalorder 2, %s20
      // Predicated region
      $region65: #{fsrcnn_forward.1} parent=5 // pred_check
        %p2568 = pneg %p2567
      $region66: #{fsrcnn_forward.1} parent=5 // pred_check_branch
        %2570 = sbr.rel (%p2568) target = $region68
      $region67: #{fsrcnn_forward.1} parent=5 // pred_region
        %s2571 = ssub.s32 %s20, 2
        // Predicated region
        $region69: #{fsrcnn_forward.1} parent=67 // pred_check
          %p2572 = pneg %p159
        $region70: #{fsrcnn_forward.1} parent=67 // pred_check_branch
          %2574 = sbr.rel (%p2572) target = $region72
        $region71: #{fsrcnn_forward.1} parent=67 // pred_region
          %s2575 = sand.u32 %s144, 1
          %s2576 = scalar_lea.sflag [#allocation6], %s2575
          %s2577 = sand.u32 %s144, 1
          %s2578 = smul.addr %s2577, 8
          %s2579 = scalar_lea.vmem [#allocation14], %s2578
          %2580 = dma.done %s2576, 128
        $region72: #{fsrcnn_forward.1} parent=67 // pred_fallthru
          _
      $region68: #{fsrcnn_forward.1} parent=5 // pred_fallthru
        _
    $region6: #{fsrcnn_forward.1} parent=1 // loop_footer
      %s24 = sadd.s32 1, %s20
    $region7: #{fsrcnn_forward.1} parent=1 // loop_footer_branch
      %19 = sbr.rel target = $region3
    $region8: #{fsrcnn_forward.1} parent=1 // loop_exit
      _
    %2581 = vsyncpa [#allocation5], 1
    %s2582 = scalar_lea.sflag [#allocation5], 1
    %2583 = vsyncpa %s2582, 1
    %2584 = vsyncpa [#allocation10], 1
    %2585 = vsyncpa [#allocation13], 1
    %2586 = vsyncpa [#allocation6], 1
    %s2587 = scalar_lea.sflag [#allocation6], 1
    %2588 = vsyncpa %s2587, 1
    %2589 = vsyncpa [#allocation7], 1
    %s2590 = scalar_lea.sflag [#allocation7], 1
    %2591 = vsyncpa %s2590, 1

</llo_original>
